<compile_context>
chip_gen: v5e
topology: v5e:2x2
jax: 0.10.0
libtpu: 0.0.40
codegen_flags: <defaults>
</compile_context>

<pallas_src>
import jax
import jax.numpy as jnp
from jax.experimental import pallas as pl
from jax.experimental.pallas import tpu as pltpu

EPS = 1e-5


def _tree_sum(terms):
    """Balanced-tree sum of a list of arrays (short VALU dependency chain)."""
    while len(terms) > 1:
        nxt = [terms[i] + terms[i + 1] for i in range(0, len(terms) - 1, 2)]
        if len(terms) % 2:
            nxt.append(terms[-1])
        terms = nxt
    return terms[0]


def _read_weights(w_ref, cout, cin):
    """Hoist all SMEM weight scalar reads before the MAC loops (scalar-slot relief)."""
    return [[[w_ref[(co * cin + ci) * 9 + k] for k in range(9)]
             for ci in range(cin)]
            for co in range(cout)]


def _conv3x3_relu(slabs, weights):
    """relu(conv3x3_valid(.)) for one image.

    slabs   : list of Cin (H, W) float32 arrays (per-channel slabs; W on lanes).
    weights : python-hoisted SMEM scalars weights[co][ci][k].
    Returns a list of Cout (H-2, W-2) float32 arrays.
    """
    # TODO(synk): for C >= 32 use im2col + jnp.dot(..., preferred_element_type=f32)
    # on the MXU instead of scalar*vreg VPU MACs; scalar path is right for C=4.
    cin = len(slabs)
    H, W = slabs[0].shape
    Ho, Wo = H - 2, W - 2
    # Hoist the 9*Cin shifted patches out of the output-channel loop.
    patches = []
    for ci in range(cin):
        pc = []
        for ky in range(3):
            for kx in range(3):
                pc.append(slabs[ci][ky:ky + Ho, kx:kx + Wo])
        patches.append(pc)
    outs = []
    for co in range(len(weights)):
        terms = []
        for ci in range(cin):
            wk = weights[co][ci]
            for k in range(9):
                terms.append(patches[ci][k] * wk[k])
        outs.append(jnp.maximum(_tree_sum(terms), 0.0))
    return outs


def _bn_scale_bias(stats_ref, g_ref, b_ref, c, n_channels, inv_count):
    """Finish the cross-batch reduction for channel c; returns (1,1) scale/bias vregs."""
    s = jnp.sum(stats_ref[c:c + 1, :], axis=1, keepdims=True) * inv_count
    ss = jnp.sum(stats_ref[n_channels + c:n_channels + c + 1, :],
                 axis=1, keepdims=True) * inv_count
    var = ss - s * s                      # biased variance, f32 throughout
    scale = g_ref[c] * jax.lax.rsqrt(var + EPS)
    bias = b_ref[c] - s * scale
    return scale, bias


# --------------------------- Stage A --------------------------------------- #
def _conv1_relu_stats_kernel(x_ref, w1_ref, h1_ref, stats1_ref):
    n = pl.program_id(0)
    cin = x_ref.shape[1]
    cout = h1_ref.shape[1]

    @pl.when(n == 0)
    def _init():
        stats1_ref[...] = jnp.zeros_like(stats1_ref)

    w = _read_weights(w1_ref, cout, cin)
    slabs = [x_ref[0, ci].astype(jnp.float32) for ci in range(cin)]
    hs = _conv3x3_relu(slabs, w)
    for co in range(cout):
        h = hs[co]
        h1_ref[0, co] = h.astype(h1_ref.dtype)
        # Cross-tile BN stats kept as lane-vectors (column sums): pure vreg adds.
        stats1_ref[co:co + 1, :] += jnp.sum(h, axis=0, keepdims=True)
        stats1_ref[cout + co:cout + co + 1, :] += jnp.sum(h * h, axis=0, keepdims=True)


# --------------------------- Stage B --------------------------------------- #
def _bn1_conv2_relu_stats_kernel(h1_ref, stats1_ref, w2_ref, g1_ref, b1_ref,
                                 h2_ref, stats2_ref):
    n = pl.program_id(0)
    cin = h1_ref.shape[1]
    cout = h2_ref.shape[1]
    Ho, Wo = h1_ref.shape[2], h1_ref.shape[3]

    @pl.when(n == 0)
    def _init():
        stats2_ref[...] = jnp.zeros_like(stats2_ref)

    inv_count = 1.0 / (pl.num_programs(0) * Ho * Wo)

    slabs = []
    for ci in range(cin):
        scale, bias = _bn_scale_bias(stats1_ref, g1_ref, b1_ref, ci, cin, inv_count)
        slabs.append(h1_ref[0, ci].astype(jnp.float32) * scale + bias)

    w = _read_weights(w2_ref, cout, cin)
    hs = _conv3x3_relu(slabs, w)
    for co in range(cout):
        h = hs[co]
        h2_ref[0, co] = h.astype(h2_ref.dtype)
        stats2_ref[co:co + 1, :] += jnp.sum(h, axis=0, keepdims=True)
        stats2_ref[cout + co:cout + co + 1, :] += jnp.sum(h * h, axis=0, keepdims=True)


# --------------------------- Stage C --------------------------------------- #
def _bn2_residual_relu_kernel(h2_ref, stats2_ref, g2_ref, b2_ref, o_ref):
    cout = o_ref.shape[1]
    Ho2, Wo2 = h2_ref.shape[2], h2_ref.shape[3]
    inv_count = 1.0 / (pl.num_programs(0) * Ho2 * Wo2)
    for co in range(cout):
        # gamma2/beta2 arrive pre-doubled: relu(bn2 + identity_skip(bn2)) == relu(2*bn2).
        scale, bias = _bn_scale_bias(stats2_ref, g2_ref, b2_ref, co, cout, inv_count)
        y = h2_ref[0, co].astype(jnp.float32) * scale + bias
        o_ref[0, co] = jnp.maximum(y, 0.0).astype(o_ref.dtype)


# --------------------------- Wrapper ---------------------------------------- #
def residual_block(x_nchw, w1_oihw, w2_oihw, g1, b1, g2, b2):
    N, Cin, H, W = x_nchw.shape
    Cout = w1_oihw.shape[0]
    assert Cin == Cout, "identity skip path requires in_channels == out_channels"
    Ho, Wo = H - 2, W - 2          # conv1 VALID
    Ho2, Wo2 = Ho - 2, Wo - 2      # conv2 VALID

    f32 = jnp.float32
    # Row-major OIHW flatten -> kernel indexes ((co*Cin + ci)*3 + ky)*3 + kx.
    w1_flat = w1_oihw.astype(f32).reshape(-1)
    w2_flat = w2_oihw.astype(f32).reshape(-1)
    # Fold the identity-skip `h += h` (factor 2) into bn2's affine parameters.
    g2x = (2.0 * g2).astype(f32)
    b2x = (2.0 * b2).astype(f32)

    smem = pl.BlockSpec(memory_space=pltpu.MemorySpace.SMEM)

    def cparams(sem):
        return pltpu.CompilerParams(dimension_semantics=sem,
                                    vmem_limit_bytes=32 * 1024 * 1024)

    conv_flops = 2 * 9 * Cin * Cout

    # Stage A: per-image conv1+relu, cross-batch bn1 statistics (accumulator).
    h1, stats1 = pl.pallas_call(
        _conv1_relu_stats_kernel,
        grid=(N,),
        in_specs=[pl.BlockSpec((1, Cin, H, W), lambda n: (n, 0, 0, 0)), smem],
        out_specs=[pl.BlockSpec((1, Cout, Ho, Wo), lambda n: (n, 0, 0, 0)),
                   pl.BlockSpec((2 * Cout, Wo), lambda n: (0, 0))],
        out_shape=[jax.ShapeDtypeStruct((N, Cout, Ho, Wo), f32),
                   jax.ShapeDtypeStruct((2 * Cout, Wo), f32)],
        compiler_params=cparams(("arbitrary",)),   # stats live across the N axis
        cost_estimate=pl.CostEstimate(
            flops=N * Ho * Wo * (conv_flops + 5 * Cout),
            transcendentals=0,
            bytes_accessed=4 * (N * Cin * H * W + w1_flat.size
                                + N * Cout * Ho * Wo + 2 * Cout * Wo)),
    )(x_nchw, w1_flat)

    # Stage B: bn1 normalize + conv2 + relu, cross-batch bn2 statistics.
    h2, stats2 = pl.pallas_call(
        _bn1_conv2_relu_stats_kernel,
        grid=(N,),
        in_specs=[pl.BlockSpec((1, Cout, Ho, Wo), lambda n: (n, 0, 0, 0)),
                  pl.BlockSpec((2 * Cout, Wo), lambda n: (0, 0)),
                  smem, smem, smem],
        out_specs=[pl.BlockSpec((1, Cout, Ho2, Wo2), lambda n: (n, 0, 0, 0)),
                   pl.BlockSpec((2 * Cout, Wo2), lambda n: (0, 0))],
        out_shape=[jax.ShapeDtypeStruct((N, Cout, Ho2, Wo2), f32),
                   jax.ShapeDtypeStruct((2 * Cout, Wo2), f32)],
        compiler_params=cparams(("arbitrary",)),
        cost_estimate=pl.CostEstimate(
            flops=N * (2 * Cin * Ho * Wo + Ho2 * Wo2 * (conv_flops + 5 * Cout)),
            transcendentals=N * Cin,
            bytes_accessed=4 * (N * Cout * Ho * Wo + 2 * Cout * Wo + w2_flat.size
                                + 2 * Cout + N * Cout * Ho2 * Wo2 + 2 * Cout * Wo2)),
    )(h1, stats1, w2_flat, g1.astype(f32), b1.astype(f32))

    # Stage C: bn2 normalize (skip folded) + relu. Independent per image ->
    # "parallel" so both v7x TensorCores get work (no-op on v5e/v6e).
    out = pl.pallas_call(
        _bn2_residual_relu_kernel,
        grid=(N,),
        in_specs=[pl.BlockSpec((1, Cout, Ho2, Wo2), lambda n: (n, 0, 0, 0)),
                  pl.BlockSpec((2 * Cout, Wo2), lambda n: (0, 0)),
                  smem, smem],
        out_specs=pl.BlockSpec((1, Cout, Ho2, Wo2), lambda n: (n, 0, 0, 0)),
        out_shape=jax.ShapeDtypeStruct((N, Cout, Ho2, Wo2), x_nchw.dtype),
        compiler_params=cparams(("parallel",)),
        cost_estimate=pl.CostEstimate(
            flops=3 * N * Cout * Ho2 * Wo2,
            transcendentals=N * Cout,
            bytes_accessed=4 * (2 * N * Cout * Ho2 * Wo2 + 2 * Cout * Wo2 + 2 * Cout)),
    )(h2, stats2, g2x, b2x)
    return out


def residual_block_reference(x, w1, w2, g1, b1, g2, b2):
    """Pure-JAX reference (NCHW) for correctness checking."""
    def conv(a, w):
        return jax.lax.conv_general_dilated(
            a, w, window_strides=(1, 1), padding="VALID",
            dimension_numbers=("NCHW", "OIHW", "NCHW"))

    def bn(a, g, b):
        mean = jnp.mean(a, axis=(0, 2, 3), keepdims=True)
        var = jnp.mean((a - mean) ** 2, axis=(0, 2, 3), keepdims=True)
        return (a - mean) * jax.lax.rsqrt(var + EPS) * g.reshape(1, -1, 1, 1) \
            + b.reshape(1, -1, 1, 1)

    h = jnp.maximum(conv(x, w1), 0.0)
    h = bn(h, g1, b1)
    h = jnp.maximum(conv(h, w2), 0.0)
    h = bn(h, g2, b2)
    h = h + h                       # identity skip of the transformed activation
    return jnp.maximum(h, 0.0)


if __name__ == "__main__":
    key = jax.random.PRNGKey(0)
    kx, k1, k2 = jax.random.split(key, 3)

    N, C, H, W = 2, 4, 16, 16                   # in_channels == out_channels == 4, stride 1
    x = jax.random.normal(kx, (N, C, H, W), dtype=jnp.float32)

    # Deterministic synthetic parameters (module __init__ shapes; bias=False convs).
    w1 = 0.1 * jax.random.normal(k1, (C, C, 3, 3), dtype=jnp.float32)   # conv1 OIHW
    w2 = 0.1 * jax.random.normal(k2, (C, C, 3, 3), dtype=jnp.float32)   # conv2 OIHW
    g1 = jnp.ones((C,), jnp.float32); b1 = jnp.zeros((C,), jnp.float32)  # bn1 defaults
    g2 = jnp.ones((C,), jnp.float32); b2 = jnp.zeros((C,), jnp.float32)  # bn2 defaults

    out = jax.block_until_ready(residual_block(x, w1, w2, g1, b1, g2, b2))
    ref = jax.block_until_ready(residual_block_reference(x, w1, w2, g1, b1, g2, b2))

    assert out.shape == (N, C, H - 4, W - 4), out.shape
    assert jnp.allclose(out, ref, atol=1e-4, rtol=1e-4), "mismatch vs pure-JAX reference"

    print("KERNEL_OK")
</pallas_src>

<mosaic_0001>
module attributes {stable_mosaic.version = 11 : i64} {
  func.func @_conv1_relu_stats_kernel(%arg0: i32, %arg1: memref<1x4x16x16xf32, #tpu.memory_space<vmem>>, %arg2: memref<144xf32, #tpu.memory_space<smem>>, %arg3: memref<1x4x14x14xf32, #tpu.memory_space<vmem>>, %arg4: memref<8x14xf32, #tpu.memory_space<vmem>>) attributes {dimension_semantics = [#tpu.dimension_semantics<arbitrary>], iteration_bounds = array<i64: 2>, scalar_prefetch = 0 : i64, scratch_operands = 0 : i64, tpu.core_type = #tpu.core_type<tc>, window_params = [{transform_indices = @transform_0, window_bounds = array<i64: 1, 4, 16, 16>}, {transform_indices = @transform_1, window_bounds = array<i64: 144>}, {transform_indices = @transform_2, window_bounds = array<i64: 1, 4, 14, 14>}, {pipeline_mode = #tpu.pipeline_mode<synchronous>, transform_indices = @transform_3, window_bounds = array<i64: 8, 14>}]} {
    %c0_i32 = arith.constant 0 : i32
    %0 = arith.cmpi eq, %arg0, %c0_i32 : i32
    %1 = arith.extui %0 : i1 to i32
    %c0_i32_0 = arith.constant 0 : i32
    %2 = arith.cmpi ne, %1, %c0_i32_0 : i32
    scf.if %2 {
      %cst_76 = arith.constant 0.000000e+00 : f32
      %683 = vector.broadcast %cst_76 : f32 to vector<8x14xf32>
      %c0_77 = arith.constant 0 : index
      %c0_78 = arith.constant 0 : index
      %684 = vector.load %arg4[%c0_77, %c0_78] : memref<8x14xf32, #tpu.memory_space<vmem>>, vector<8x14xf32>
      tpu.vector_store %arg4[%c0_77, %c0_78], %683 {strides = array<i32>} : memref<8x14xf32, #tpu.memory_space<vmem>>, vector<8x14xf32>,
    } else {
    }
    %c0 = arith.constant 0 : index
    %3 = memref.load %arg2[%c0] : memref<144xf32, #tpu.memory_space<smem>>
    %c1 = arith.constant 1 : index
    %4 = memref.load %arg2[%c1] : memref<144xf32, #tpu.memory_space<smem>>
    %c2 = arith.constant 2 : index
    %5 = memref.load %arg2[%c2] : memref<144xf32, #tpu.memory_space<smem>>
    %c3 = arith.constant 3 : index
    %6 = memref.load %arg2[%c3] : memref<144xf32, #tpu.memory_space<smem>>
    %c4 = arith.constant 4 : index
    %7 = memref.load %arg2[%c4] : memref<144xf32, #tpu.memory_space<smem>>
    %c5 = arith.constant 5 : index
    %8 = memref.load %arg2[%c5] : memref<144xf32, #tpu.memory_space<smem>>
    %c6 = arith.constant 6 : index
    %9 = memref.load %arg2[%c6] : memref<144xf32, #tpu.memory_space<smem>>
    %c7 = arith.constant 7 : index
    %10 = memref.load %arg2[%c7] : memref<144xf32, #tpu.memory_space<smem>>
    %c8 = arith.constant 8 : index
    %11 = memref.load %arg2[%c8] : memref<144xf32, #tpu.memory_space<smem>>
    %c9 = arith.constant 9 : index
    %12 = memref.load %arg2[%c9] : memref<144xf32, #tpu.memory_space<smem>>
    %c10 = arith.constant 10 : index
    %13 = memref.load %arg2[%c10] : memref<144xf32, #tpu.memory_space<smem>>
    %c11 = arith.constant 11 : index
    %14 = memref.load %arg2[%c11] : memref<144xf32, #tpu.memory_space<smem>>
    %c12 = arith.constant 12 : index
    %15 = memref.load %arg2[%c12] : memref<144xf32, #tpu.memory_space<smem>>
    %c13 = arith.constant 13 : index
    %16 = memref.load %arg2[%c13] : memref<144xf32, #tpu.memory_space<smem>>
    %c14 = arith.constant 14 : index
    %17 = memref.load %arg2[%c14] : memref<144xf32, #tpu.memory_space<smem>>
    %c15 = arith.constant 15 : index
    %18 = memref.load %arg2[%c15] : memref<144xf32, #tpu.memory_space<smem>>
    %c16 = arith.constant 16 : index
    %19 = memref.load %arg2[%c16] : memref<144xf32, #tpu.memory_space<smem>>
    %c17 = arith.constant 17 : index
    %20 = memref.load %arg2[%c17] : memref<144xf32, #tpu.memory_space<smem>>
    %c18 = arith.constant 18 : index
    %21 = memref.load %arg2[%c18] : memref<144xf32, #tpu.memory_space<smem>>
    %c19 = arith.constant 19 : index
    %22 = memref.load %arg2[%c19] : memref<144xf32, #tpu.memory_space<smem>>
    %c20 = arith.constant 20 : index
    %23 = memref.load %arg2[%c20] : memref<144xf32, #tpu.memory_space<smem>>
    %c21 = arith.constant 21 : index
    %24 = memref.load %arg2[%c21] : memref<144xf32, #tpu.memory_space<smem>>
    %c22 = arith.constant 22 : index
    %25 = memref.load %arg2[%c22] : memref<144xf32, #tpu.memory_space<smem>>
    %c23 = arith.constant 23 : index
    %26 = memref.load %arg2[%c23] : memref<144xf32, #tpu.memory_space<smem>>
    %c24 = arith.constant 24 : index
    %27 = memref.load %arg2[%c24] : memref<144xf32, #tpu.memory_space<smem>>
    %c25 = arith.constant 25 : index
    %28 = memref.load %arg2[%c25] : memref<144xf32, #tpu.memory_space<smem>>
    %c26 = arith.constant 26 : index
    %29 = memref.load %arg2[%c26] : memref<144xf32, #tpu.memory_space<smem>>
    %c27 = arith.constant 27 : index
    %30 = memref.load %arg2[%c27] : memref<144xf32, #tpu.memory_space<smem>>
    %c28 = arith.constant 28 : index
    %31 = memref.load %arg2[%c28] : memref<144xf32, #tpu.memory_space<smem>>
    %c29 = arith.constant 29 : index
    %32 = memref.load %arg2[%c29] : memref<144xf32, #tpu.memory_space<smem>>
    %c30 = arith.constant 30 : index
    %33 = memref.load %arg2[%c30] : memref<144xf32, #tpu.memory_space<smem>>
    %c31 = arith.constant 31 : index
    %34 = memref.load %arg2[%c31] : memref<144xf32, #tpu.memory_space<smem>>
    %c32 = arith.constant 32 : index
    %35 = memref.load %arg2[%c32] : memref<144xf32, #tpu.memory_space<smem>>
    %c33 = arith.constant 33 : index
    %36 = memref.load %arg2[%c33] : memref<144xf32, #tpu.memory_space<smem>>
    %c34 = arith.constant 34 : index
    %37 = memref.load %arg2[%c34] : memref<144xf32, #tpu.memory_space<smem>>
    %c35 = arith.constant 35 : index
    %38 = memref.load %arg2[%c35] : memref<144xf32, #tpu.memory_space<smem>>
    %c36 = arith.constant 36 : index
    %39 = memref.load %arg2[%c36] : memref<144xf32, #tpu.memory_space<smem>>
    %c37 = arith.constant 37 : index
    %40 = memref.load %arg2[%c37] : memref<144xf32, #tpu.memory_space<smem>>
    %c38 = arith.constant 38 : index
    %41 = memref.load %arg2[%c38] : memref<144xf32, #tpu.memory_space<smem>>
    %c39 = arith.constant 39 : index
    %42 = memref.load %arg2[%c39] : memref<144xf32, #tpu.memory_space<smem>>
    %c40 = arith.constant 40 : index
    %43 = memref.load %arg2[%c40] : memref<144xf32, #tpu.memory_space<smem>>
    %c41 = arith.constant 41 : index
    %44 = memref.load %arg2[%c41] : memref<144xf32, #tpu.memory_space<smem>>
    %c42 = arith.constant 42 : index
    %45 = memref.load %arg2[%c42] : memref<144xf32, #tpu.memory_space<smem>>
    %c43 = arith.constant 43 : index
    %46 = memref.load %arg2[%c43] : memref<144xf32, #tpu.memory_space<smem>>
    %c44 = arith.constant 44 : index
    %47 = memref.load %arg2[%c44] : memref<144xf32, #tpu.memory_space<smem>>
    %c45 = arith.constant 45 : index
    %48 = memref.load %arg2[%c45] : memref<144xf32, #tpu.memory_space<smem>>
    %c46 = arith.constant 46 : index
    %49 = memref.load %arg2[%c46] : memref<144xf32, #tpu.memory_space<smem>>
    %c47 = arith.constant 47 : index
    %50 = memref.load %arg2[%c47] : memref<144xf32, #tpu.memory_space<smem>>
    %c48 = arith.constant 48 : index
    %51 = memref.load %arg2[%c48] : memref<144xf32, #tpu.memory_space<smem>>
    %c49 = arith.constant 49 : index
    %52 = memref.load %arg2[%c49] : memref<144xf32, #tpu.memory_space<smem>>
    %c50 = arith.constant 50 : index
    %53 = memref.load %arg2[%c50] : memref<144xf32, #tpu.memory_space<smem>>
    %c51 = arith.constant 51 : index
    %54 = memref.load %arg2[%c51] : memref<144xf32, #tpu.memory_space<smem>>
    %c52 = arith.constant 52 : index
    %55 = memref.load %arg2[%c52] : memref<144xf32, #tpu.memory_space<smem>>
    %c53 = arith.constant 53 : index
    %56 = memref.load %arg2[%c53] : memref<144xf32, #tpu.memory_space<smem>>
    %c54 = arith.constant 54 : index
    %57 = memref.load %arg2[%c54] : memref<144xf32, #tpu.memory_space<smem>>
    %c55 = arith.constant 55 : index
    %58 = memref.load %arg2[%c55] : memref<144xf32, #tpu.memory_space<smem>>
    %c56 = arith.constant 56 : index
    %59 = memref.load %arg2[%c56] : memref<144xf32, #tpu.memory_space<smem>>
    %c57 = arith.constant 57 : index
    %60 = memref.load %arg2[%c57] : memref<144xf32, #tpu.memory_space<smem>>
    %c58 = arith.constant 58 : index
    %61 = memref.load %arg2[%c58] : memref<144xf32, #tpu.memory_space<smem>>
    %c59 = arith.constant 59 : index
    %62 = memref.load %arg2[%c59] : memref<144xf32, #tpu.memory_space<smem>>
    %c60 = arith.constant 60 : index
    %63 = memref.load %arg2[%c60] : memref<144xf32, #tpu.memory_space<smem>>
    %c61 = arith.constant 61 : index
    %64 = memref.load %arg2[%c61] : memref<144xf32, #tpu.memory_space<smem>>
    %c62 = arith.constant 62 : index
    %65 = memref.load %arg2[%c62] : memref<144xf32, #tpu.memory_space<smem>>
    %c63 = arith.constant 63 : index
    %66 = memref.load %arg2[%c63] : memref<144xf32, #tpu.memory_space<smem>>
    %c64 = arith.constant 64 : index
    %67 = memref.load %arg2[%c64] : memref<144xf32, #tpu.memory_space<smem>>
    %c65 = arith.constant 65 : index
    %68 = memref.load %arg2[%c65] : memref<144xf32, #tpu.memory_space<smem>>
    %c66 = arith.constant 66 : index
    %69 = memref.load %arg2[%c66] : memref<144xf32, #tpu.memory_space<smem>>
    %c67 = arith.constant 67 : index
    %70 = memref.load %arg2[%c67] : memref<144xf32, #tpu.memory_space<smem>>
    %c68 = arith.constant 68 : index
    %71 = memref.load %arg2[%c68] : memref<144xf32, #tpu.memory_space<smem>>
    %c69 = arith.constant 69 : index
    %72 = memref.load %arg2[%c69] : memref<144xf32, #tpu.memory_space<smem>>
    %c70 = arith.constant 70 : index
    %73 = memref.load %arg2[%c70] : memref<144xf32, #tpu.memory_space<smem>>
    %c71 = arith.constant 71 : index
    %74 = memref.load %arg2[%c71] : memref<144xf32, #tpu.memory_space<smem>>
    %c72 = arith.constant 72 : index
    %75 = memref.load %arg2[%c72] : memref<144xf32, #tpu.memory_space<smem>>
    %c73 = arith.constant 73 : index
    %76 = memref.load %arg2[%c73] : memref<144xf32, #tpu.memory_space<smem>>
    %c74 = arith.constant 74 : index
    %77 = memref.load %arg2[%c74] : memref<144xf32, #tpu.memory_space<smem>>
    %c75 = arith.constant 75 : index
    %78 = memref.load %arg2[%c75] : memref<144xf32, #tpu.memory_space<smem>>
    %c76 = arith.constant 76 : index
    %79 = memref.load %arg2[%c76] : memref<144xf32, #tpu.memory_space<smem>>
    %c77 = arith.constant 77 : index
    %80 = memref.load %arg2[%c77] : memref<144xf32, #tpu.memory_space<smem>>
    %c78 = arith.constant 78 : index
    %81 = memref.load %arg2[%c78] : memref<144xf32, #tpu.memory_space<smem>>
    %c79 = arith.constant 79 : index
    %82 = memref.load %arg2[%c79] : memref<144xf32, #tpu.memory_space<smem>>
    %c80 = arith.constant 80 : index
    %83 = memref.load %arg2[%c80] : memref<144xf32, #tpu.memory_space<smem>>
    %c81 = arith.constant 81 : index
    %84 = memref.load %arg2[%c81] : memref<144xf32, #tpu.memory_space<smem>>
    %c82 = arith.constant 82 : index
    %85 = memref.load %arg2[%c82] : memref<144xf32, #tpu.memory_space<smem>>
    %c83 = arith.constant 83 : index
    %86 = memref.load %arg2[%c83] : memref<144xf32, #tpu.memory_space<smem>>
    %c84 = arith.constant 84 : index
    %87 = memref.load %arg2[%c84] : memref<144xf32, #tpu.memory_space<smem>>
    %c85 = arith.constant 85 : index
    %88 = memref.load %arg2[%c85] : memref<144xf32, #tpu.memory_space<smem>>
    %c86 = arith.constant 86 : index
    %89 = memref.load %arg2[%c86] : memref<144xf32, #tpu.memory_space<smem>>
    %c87 = arith.constant 87 : index
    %90 = memref.load %arg2[%c87] : memref<144xf32, #tpu.memory_space<smem>>
    %c88 = arith.constant 88 : index
    %91 = memref.load %arg2[%c88] : memref<144xf32, #tpu.memory_space<smem>>
    %c89 = arith.constant 89 : index
    %92 = memref.load %arg2[%c89] : memref<144xf32, #tpu.memory_space<smem>>
    %c90 = arith.constant 90 : index
    %93 = memref.load %arg2[%c90] : memref<144xf32, #tpu.memory_space<smem>>
    %c91 = arith.constant 91 : index
    %94 = memref.load %arg2[%c91] : memref<144xf32, #tpu.memory_space<smem>>
    %c92 = arith.constant 92 : index
    %95 = memref.load %arg2[%c92] : memref<144xf32, #tpu.memory_space<smem>>
    %c93 = arith.constant 93 : index
    %96 = memref.load %arg2[%c93] : memref<144xf32, #tpu.memory_space<smem>>
    %c94 = arith.constant 94 : index
    %97 = memref.load %arg2[%c94] : memref<144xf32, #tpu.memory_space<smem>>
    %c95 = arith.constant 95 : index
    %98 = memref.load %arg2[%c95] : memref<144xf32, #tpu.memory_space<smem>>
    %c96 = arith.constant 96 : index
    %99 = memref.load %arg2[%c96] : memref<144xf32, #tpu.memory_space<smem>>
    %c97 = arith.constant 97 : index
    %100 = memref.load %arg2[%c97] : memref<144xf32, #tpu.memory_space<smem>>
    %c98 = arith.constant 98 : index
    %101 = memref.load %arg2[%c98] : memref<144xf32, #tpu.memory_space<smem>>
    %c99 = arith.constant 99 : index
    %102 = memref.load %arg2[%c99] : memref<144xf32, #tpu.memory_space<smem>>
    %c100 = arith.constant 100 : index
    %103 = memref.load %arg2[%c100] : memref<144xf32, #tpu.memory_space<smem>>
    %c101 = arith.constant 101 : index
    %104 = memref.load %arg2[%c101] : memref<144xf32, #tpu.memory_space<smem>>
    %c102 = arith.constant 102 : index
    %105 = memref.load %arg2[%c102] : memref<144xf32, #tpu.memory_space<smem>>
    %c103 = arith.constant 103 : index
    %106 = memref.load %arg2[%c103] : memref<144xf32, #tpu.memory_space<smem>>
    %c104 = arith.constant 104 : index
    %107 = memref.load %arg2[%c104] : memref<144xf32, #tpu.memory_space<smem>>
    %c105 = arith.constant 105 : index
    %108 = memref.load %arg2[%c105] : memref<144xf32, #tpu.memory_space<smem>>
    %c106 = arith.constant 106 : index
    %109 = memref.load %arg2[%c106] : memref<144xf32, #tpu.memory_space<smem>>
    %c107 = arith.constant 107 : index
    %110 = memref.load %arg2[%c107] : memref<144xf32, #tpu.memory_space<smem>>
    %c108 = arith.constant 108 : index
    %111 = memref.load %arg2[%c108] : memref<144xf32, #tpu.memory_space<smem>>
    %c109 = arith.constant 109 : index
    %112 = memref.load %arg2[%c109] : memref<144xf32, #tpu.memory_space<smem>>
    %c110 = arith.constant 110 : index
    %113 = memref.load %arg2[%c110] : memref<144xf32, #tpu.memory_space<smem>>
    %c111 = arith.constant 111 : index
    %114 = memref.load %arg2[%c111] : memref<144xf32, #tpu.memory_space<smem>>
    %c112 = arith.constant 112 : index
    %115 = memref.load %arg2[%c112] : memref<144xf32, #tpu.memory_space<smem>>
    %c113 = arith.constant 113 : index
    %116 = memref.load %arg2[%c113] : memref<144xf32, #tpu.memory_space<smem>>
    %c114 = arith.constant 114 : index
    %117 = memref.load %arg2[%c114] : memref<144xf32, #tpu.memory_space<smem>>
    %c115 = arith.constant 115 : index
    %118 = memref.load %arg2[%c115] : memref<144xf32, #tpu.memory_space<smem>>
    %c116 = arith.constant 116 : index
    %119 = memref.load %arg2[%c116] : memref<144xf32, #tpu.memory_space<smem>>
    %c117 = arith.constant 117 : index
    %120 = memref.load %arg2[%c117] : memref<144xf32, #tpu.memory_space<smem>>
    %c118 = arith.constant 118 : index
    %121 = memref.load %arg2[%c118] : memref<144xf32, #tpu.memory_space<smem>>
    %c119 = arith.constant 119 : index
    %122 = memref.load %arg2[%c119] : memref<144xf32, #tpu.memory_space<smem>>
    %c120 = arith.constant 120 : index
    %123 = memref.load %arg2[%c120] : memref<144xf32, #tpu.memory_space<smem>>
    %c121 = arith.constant 121 : index
    %124 = memref.load %arg2[%c121] : memref<144xf32, #tpu.memory_space<smem>>
    %c122 = arith.constant 122 : index
    %125 = memref.load %arg2[%c122] : memref<144xf32, #tpu.memory_space<smem>>
    %c123 = arith.constant 123 : index
    %126 = memref.load %arg2[%c123] : memref<144xf32, #tpu.memory_space<smem>>
    %c124 = arith.constant 124 : index
    %127 = memref.load %arg2[%c124] : memref<144xf32, #tpu.memory_space<smem>>
    %c125 = arith.constant 125 : index
    %128 = memref.load %arg2[%c125] : memref<144xf32, #tpu.memory_space<smem>>
    %c126 = arith.constant 126 : index
    %129 = memref.load %arg2[%c126] : memref<144xf32, #tpu.memory_space<smem>>
    %c127 = arith.constant 127 : index
    %130 = memref.load %arg2[%c127] : memref<144xf32, #tpu.memory_space<smem>>
    %c128 = arith.constant 128 : index
    %131 = memref.load %arg2[%c128] : memref<144xf32, #tpu.memory_space<smem>>
    %c129 = arith.constant 129 : index
    %132 = memref.load %arg2[%c129] : memref<144xf32, #tpu.memory_space<smem>>
    %c130 = arith.constant 130 : index
    %133 = memref.load %arg2[%c130] : memref<144xf32, #tpu.memory_space<smem>>
    %c131 = arith.constant 131 : index
    %134 = memref.load %arg2[%c131] : memref<144xf32, #tpu.memory_space<smem>>
    %c132 = arith.constant 132 : index
    %135 = memref.load %arg2[%c132] : memref<144xf32, #tpu.memory_space<smem>>
    %c133 = arith.constant 133 : index
    %136 = memref.load %arg2[%c133] : memref<144xf32, #tpu.memory_space<smem>>
    %c134 = arith.constant 134 : index
    %137 = memref.load %arg2[%c134] : memref<144xf32, #tpu.memory_space<smem>>
    %c135 = arith.constant 135 : index
    %138 = memref.load %arg2[%c135] : memref<144xf32, #tpu.memory_space<smem>>
    %c136 = arith.constant 136 : index
    %139 = memref.load %arg2[%c136] : memref<144xf32, #tpu.memory_space<smem>>
    %c137 = arith.constant 137 : index
    %140 = memref.load %arg2[%c137] : memref<144xf32, #tpu.memory_space<smem>>
    %c138 = arith.constant 138 : index
    %141 = memref.load %arg2[%c138] : memref<144xf32, #tpu.memory_space<smem>>
    %c139 = arith.constant 139 : index
    %142 = memref.load %arg2[%c139] : memref<144xf32, #tpu.memory_space<smem>>
    %c140 = arith.constant 140 : index
    %143 = memref.load %arg2[%c140] : memref<144xf32, #tpu.memory_space<smem>>
    %c141 = arith.constant 141 : index
    %144 = memref.load %arg2[%c141] : memref<144xf32, #tpu.memory_space<smem>>
    %c142 = arith.constant 142 : index
    %145 = memref.load %arg2[%c142] : memref<144xf32, #tpu.memory_space<smem>>
    %c143 = arith.constant 143 : index
    %146 = memref.load %arg2[%c143] : memref<144xf32, #tpu.memory_space<smem>>
    %c0_1 = arith.constant 0 : index
    %c0_2 = arith.constant 0 : index
    %c0_3 = arith.constant 0 : index
    %c0_4 = arith.constant 0 : index
    %147 = vector.load %arg1[%c0_1, %c0_2, %c0_3, %c0_4] : memref<1x4x16x16xf32, #tpu.memory_space<vmem>>, vector<1x1x16x16xf32>
    %148 = vector.shape_cast %147 : vector<1x1x16x16xf32> to vector<16x16xf32>
    %c0_5 = arith.constant 0 : index
    %c1_6 = arith.constant 1 : index
    %c0_7 = arith.constant 0 : index
    %c0_8 = arith.constant 0 : index
    %149 = vector.load %arg1[%c0_5, %c1_6, %c0_7, %c0_8] : memref<1x4x16x16xf32, #tpu.memory_space<vmem>>, vector<1x1x16x16xf32>
    %150 = vector.shape_cast %149 : vector<1x1x16x16xf32> to vector<16x16xf32>
    %c0_9 = arith.constant 0 : index
    %c2_10 = arith.constant 2 : index
    %c0_11 = arith.constant 0 : index
    %c0_12 = arith.constant 0 : index
    %151 = vector.load %arg1[%c0_9, %c2_10, %c0_11, %c0_12] : memref<1x4x16x16xf32, #tpu.memory_space<vmem>>, vector<1x1x16x16xf32>
    %152 = vector.shape_cast %151 : vector<1x1x16x16xf32> to vector<16x16xf32>
    %c0_13 = arith.constant 0 : index
    %c3_14 = arith.constant 3 : index
    %c0_15 = arith.constant 0 : index
    %c0_16 = arith.constant 0 : index
    %153 = vector.load %arg1[%c0_13, %c3_14, %c0_15, %c0_16] : memref<1x4x16x16xf32, #tpu.memory_space<vmem>>, vector<1x1x16x16xf32>
    %154 = vector.shape_cast %153 : vector<1x1x16x16xf32> to vector<16x16xf32>
    %155 = vector.extract_strided_slice %148 {offsets = [0, 0], sizes = [14, 14], strides = [1, 1]} : vector<16x16xf32> to vector<14x14xf32>
    %156 = vector.extract_strided_slice %148 {offsets = [0, 1], sizes = [14, 14], strides = [1, 1]} : vector<16x16xf32> to vector<14x14xf32>
    %157 = vector.extract_strided_slice %148 {offsets = [0, 2], sizes = [14, 14], strides = [1, 1]} : vector<16x16xf32> to vector<14x14xf32>
    %158 = vector.extract_strided_slice %148 {offsets = [1, 0], sizes = [14, 14], strides = [1, 1]} : vector<16x16xf32> to vector<14x14xf32>
    %159 = vector.extract_strided_slice %148 {offsets = [1, 1], sizes = [14, 14], strides = [1, 1]} : vector<16x16xf32> to vector<14x14xf32>
    %160 = vector.extract_strided_slice %148 {offsets = [1, 2], sizes = [14, 14], strides = [1, 1]} : vector<16x16xf32> to vector<14x14xf32>
    %161 = vector.extract_strided_slice %148 {offsets = [2, 0], sizes = [14, 14], strides = [1, 1]} : vector<16x16xf32> to vector<14x14xf32>
    %162 = vector.extract_strided_slice %148 {offsets = [2, 1], sizes = [14, 14], strides = [1, 1]} : vector<16x16xf32> to vector<14x14xf32>
    %163 = vector.extract_strided_slice %148 {offsets = [2, 2], sizes = [14, 14], strides = [1, 1]} : vector<16x16xf32> to vector<14x14xf32>
    %164 = vector.extract_strided_slice %150 {offsets = [0, 0], sizes = [14, 14], strides = [1, 1]} : vector<16x16xf32> to vector<14x14xf32>
    %165 = vector.extract_strided_slice %150 {offsets = [0, 1], sizes = [14, 14], strides = [1, 1]} : vector<16x16xf32> to vector<14x14xf32>
    %166 = vector.extract_strided_slice %150 {offsets = [0, 2], sizes = [14, 14], strides = [1, 1]} : vector<16x16xf32> to vector<14x14xf32>
    %167 = vector.extract_strided_slice %150 {offsets = [1, 0], sizes = [14, 14], strides = [1, 1]} : vector<16x16xf32> to vector<14x14xf32>
    %168 = vector.extract_strided_slice %150 {offsets = [1, 1], sizes = [14, 14], strides = [1, 1]} : vector<16x16xf32> to vector<14x14xf32>
    %169 = vector.extract_strided_slice %150 {offsets = [1, 2], sizes = [14, 14], strides = [1, 1]} : vector<16x16xf32> to vector<14x14xf32>
    %170 = vector.extract_strided_slice %150 {offsets = [2, 0], sizes = [14, 14], strides = [1, 1]} : vector<16x16xf32> to vector<14x14xf32>
    %171 = vector.extract_strided_slice %150 {offsets = [2, 1], sizes = [14, 14], strides = [1, 1]} : vector<16x16xf32> to vector<14x14xf32>
    %172 = vector.extract_strided_slice %150 {offsets = [2, 2], sizes = [14, 14], strides = [1, 1]} : vector<16x16xf32> to vector<14x14xf32>
    %173 = vector.extract_strided_slice %152 {offsets = [0, 0], sizes = [14, 14], strides = [1, 1]} : vector<16x16xf32> to vector<14x14xf32>
    %174 = vector.extract_strided_slice %152 {offsets = [0, 1], sizes = [14, 14], strides = [1, 1]} : vector<16x16xf32> to vector<14x14xf32>
    %175 = vector.extract_strided_slice %152 {offsets = [0, 2], sizes = [14, 14], strides = [1, 1]} : vector<16x16xf32> to vector<14x14xf32>
    %176 = vector.extract_strided_slice %152 {offsets = [1, 0], sizes = [14, 14], strides = [1, 1]} : vector<16x16xf32> to vector<14x14xf32>
    %177 = vector.extract_strided_slice %152 {offsets = [1, 1], sizes = [14, 14], strides = [1, 1]} : vector<16x16xf32> to vector<14x14xf32>
    %178 = vector.extract_strided_slice %152 {offsets = [1, 2], sizes = [14, 14], strides = [1, 1]} : vector<16x16xf32> to vector<14x14xf32>
    %179 = vector.extract_strided_slice %152 {offsets = [2, 0], sizes = [14, 14], strides = [1, 1]} : vector<16x16xf32> to vector<14x14xf32>
    %180 = vector.extract_strided_slice %152 {offsets = [2, 1], sizes = [14, 14], strides = [1, 1]} : vector<16x16xf32> to vector<14x14xf32>
    %181 = vector.extract_strided_slice %152 {offsets = [2, 2], sizes = [14, 14], strides = [1, 1]} : vector<16x16xf32> to vector<14x14xf32>
    %182 = vector.extract_strided_slice %154 {offsets = [0, 0], sizes = [14, 14], strides = [1, 1]} : vector<16x16xf32> to vector<14x14xf32>
    %183 = vector.extract_strided_slice %154 {offsets = [0, 1], sizes = [14, 14], strides = [1, 1]} : vector<16x16xf32> to vector<14x14xf32>
    %184 = vector.extract_strided_slice %154 {offsets = [0, 2], sizes = [14, 14], strides = [1, 1]} : vector<16x16xf32> to vector<14x14xf32>
    %185 = vector.extract_strided_slice %154 {offsets = [1, 0], sizes = [14, 14], strides = [1, 1]} : vector<16x16xf32> to vector<14x14xf32>
    %186 = vector.extract_strided_slice %154 {offsets = [1, 1], sizes = [14, 14], strides = [1, 1]} : vector<16x16xf32> to vector<14x14xf32>
    %187 = vector.extract_strided_slice %154 {offsets = [1, 2], sizes = [14, 14], strides = [1, 1]} : vector<16x16xf32> to vector<14x14xf32>
    %188 = vector.extract_strided_slice %154 {offsets = [2, 0], sizes = [14, 14], strides = [1, 1]} : vector<16x16xf32> to vector<14x14xf32>
    %189 = vector.extract_strided_slice %154 {offsets = [2, 1], sizes = [14, 14], strides = [1, 1]} : vector<16x16xf32> to vector<14x14xf32>
    %190 = vector.extract_strided_slice %154 {offsets = [2, 2], sizes = [14, 14], strides = [1, 1]} : vector<16x16xf32> to vector<14x14xf32>
    %191 = vector.broadcast %3 : f32 to vector<14x14xf32>
    %192 = arith.mulf %155, %191 : vector<14x14xf32>
    %193 = vector.broadcast %4 : f32 to vector<14x14xf32>
    %194 = arith.mulf %156, %193 : vector<14x14xf32>
    %195 = vector.broadcast %5 : f32 to vector<14x14xf32>
    %196 = arith.mulf %157, %195 : vector<14x14xf32>
    %197 = vector.broadcast %6 : f32 to vector<14x14xf32>
    %198 = arith.mulf %158, %197 : vector<14x14xf32>
    %199 = vector.broadcast %7 : f32 to vector<14x14xf32>
    %200 = arith.mulf %159, %199 : vector<14x14xf32>
    %201 = vector.broadcast %8 : f32 to vector<14x14xf32>
    %202 = arith.mulf %160, %201 : vector<14x14xf32>
    %203 = vector.broadcast %9 : f32 to vector<14x14xf32>
    %204 = arith.mulf %161, %203 : vector<14x14xf32>
    %205 = vector.broadcast %10 : f32 to vector<14x14xf32>
    %206 = arith.mulf %162, %205 : vector<14x14xf32>
    %207 = vector.broadcast %11 : f32 to vector<14x14xf32>
    %208 = arith.mulf %163, %207 : vector<14x14xf32>
    %209 = vector.broadcast %12 : f32 to vector<14x14xf32>
    %210 = arith.mulf %164, %209 : vector<14x14xf32>
    %211 = vector.broadcast %13 : f32 to vector<14x14xf32>
    %212 = arith.mulf %165, %211 : vector<14x14xf32>
    %213 = vector.broadcast %14 : f32 to vector<14x14xf32>
    %214 = arith.mulf %166, %213 : vector<14x14xf32>
    %215 = vector.broadcast %15 : f32 to vector<14x14xf32>
    %216 = arith.mulf %167, %215 : vector<14x14xf32>
    %217 = vector.broadcast %16 : f32 to vector<14x14xf32>
    %218 = arith.mulf %168, %217 : vector<14x14xf32>
    %219 = vector.broadcast %17 : f32 to vector<14x14xf32>
    %220 = arith.mulf %169, %219 : vector<14x14xf32>
    %221 = vector.broadcast %18 : f32 to vector<14x14xf32>
    %222 = arith.mulf %170, %221 : vector<14x14xf32>
    %223 = vector.broadcast %19 : f32 to vector<14x14xf32>
    %224 = arith.mulf %171, %223 : vector<14x14xf32>
    %225 = vector.broadcast %20 : f32 to vector<14x14xf32>
    %226 = arith.mulf %172, %225 : vector<14x14xf32>
    %227 = vector.broadcast %21 : f32 to vector<14x14xf32>
    %228 = arith.mulf %173, %227 : vector<14x14xf32>
    %229 = vector.broadcast %22 : f32 to vector<14x14xf32>
    %230 = arith.mulf %174, %229 : vector<14x14xf32>
    %231 = vector.broadcast %23 : f32 to vector<14x14xf32>
    %232 = arith.mulf %175, %231 : vector<14x14xf32>
    %233 = vector.broadcast %24 : f32 to vector<14x14xf32>
    %234 = arith.mulf %176, %233 : vector<14x14xf32>
    %235 = vector.broadcast %25 : f32 to vector<14x14xf32>
    %236 = arith.mulf %177, %235 : vector<14x14xf32>
    %237 = vector.broadcast %26 : f32 to vector<14x14xf32>
    %238 = arith.mulf %178, %237 : vector<14x14xf32>
    %239 = vector.broadcast %27 : f32 to vector<14x14xf32>
    %240 = arith.mulf %179, %239 : vector<14x14xf32>
    %241 = vector.broadcast %28 : f32 to vector<14x14xf32>
    %242 = arith.mulf %180, %241 : vector<14x14xf32>
    %243 = vector.broadcast %29 : f32 to vector<14x14xf32>
    %244 = arith.mulf %181, %243 : vector<14x14xf32>
    %245 = vector.broadcast %30 : f32 to vector<14x14xf32>
    %246 = arith.mulf %182, %245 : vector<14x14xf32>
    %247 = vector.broadcast %31 : f32 to vector<14x14xf32>
    %248 = arith.mulf %183, %247 : vector<14x14xf32>
    %249 = vector.broadcast %32 : f32 to vector<14x14xf32>
    %250 = arith.mulf %184, %249 : vector<14x14xf32>
    %251 = vector.broadcast %33 : f32 to vector<14x14xf32>
    %252 = arith.mulf %185, %251 : vector<14x14xf32>
    %253 = vector.broadcast %34 : f32 to vector<14x14xf32>
    %254 = arith.mulf %186, %253 : vector<14x14xf32>
    %255 = vector.broadcast %35 : f32 to vector<14x14xf32>
    %256 = arith.mulf %187, %255 : vector<14x14xf32>
    %257 = vector.broadcast %36 : f32 to vector<14x14xf32>
    %258 = arith.mulf %188, %257 : vector<14x14xf32>
    %259 = vector.broadcast %37 : f32 to vector<14x14xf32>
    %260 = arith.mulf %189, %259 : vector<14x14xf32>
    %261 = vector.broadcast %38 : f32 to vector<14x14xf32>
    %262 = arith.mulf %190, %261 : vector<14x14xf32>
    %263 = arith.addf %192, %194 : vector<14x14xf32>
    %264 = arith.addf %196, %198 : vector<14x14xf32>
    %265 = arith.addf %200, %202 : vector<14x14xf32>
    %266 = arith.addf %204, %206 : vector<14x14xf32>
    %267 = arith.addf %208, %210 : vector<14x14xf32>
    %268 = arith.addf %212, %214 : vector<14x14xf32>
    %269 = arith.addf %216, %218 : vector<14x14xf32>
    %270 = arith.addf %220, %222 : vector<14x14xf32>
    %271 = arith.addf %224, %226 : vector<14x14xf32>
    %272 = arith.addf %228, %230 : vector<14x14xf32>
    %273 = arith.addf %232, %234 : vector<14x14xf32>
    %274 = arith.addf %236, %238 : vector<14x14xf32>
    %275 = arith.addf %240, %242 : vector<14x14xf32>
    %276 = arith.addf %244, %246 : vector<14x14xf32>
    %277 = arith.addf %248, %250 : vector<14x14xf32>
    %278 = arith.addf %252, %254 : vector<14x14xf32>
    %279 = arith.addf %256, %258 : vector<14x14xf32>
    %280 = arith.addf %260, %262 : vector<14x14xf32>
    %281 = arith.addf %263, %264 : vector<14x14xf32>
    %282 = arith.addf %265, %266 : vector<14x14xf32>
    %283 = arith.addf %267, %268 : vector<14x14xf32>
    %284 = arith.addf %269, %270 : vector<14x14xf32>
    %285 = arith.addf %271, %272 : vector<14x14xf32>
    %286 = arith.addf %273, %274 : vector<14x14xf32>
    %287 = arith.addf %275, %276 : vector<14x14xf32>
    %288 = arith.addf %277, %278 : vector<14x14xf32>
    %289 = arith.addf %279, %280 : vector<14x14xf32>
    %290 = arith.addf %281, %282 : vector<14x14xf32>
    %291 = arith.addf %283, %284 : vector<14x14xf32>
    %292 = arith.addf %285, %286 : vector<14x14xf32>
    %293 = arith.addf %287, %288 : vector<14x14xf32>
    %294 = arith.addf %290, %291 : vector<14x14xf32>
    %295 = arith.addf %292, %293 : vector<14x14xf32>
    %296 = arith.addf %294, %295 : vector<14x14xf32>
    %297 = arith.addf %296, %289 : vector<14x14xf32>
    %cst = arith.constant 0.000000e+00 : f32
    %298 = vector.broadcast %cst : f32 to vector<14x14xf32>
    %299 = arith.maximumf %297, %298 : vector<14x14xf32>
    %300 = vector.broadcast %39 : f32 to vector<14x14xf32>
    %301 = arith.mulf %155, %300 : vector<14x14xf32>
    %302 = vector.broadcast %40 : f32 to vector<14x14xf32>
    %303 = arith.mulf %156, %302 : vector<14x14xf32>
    %304 = vector.broadcast %41 : f32 to vector<14x14xf32>
    %305 = arith.mulf %157, %304 : vector<14x14xf32>
    %306 = vector.broadcast %42 : f32 to vector<14x14xf32>
    %307 = arith.mulf %158, %306 : vector<14x14xf32>
    %308 = vector.broadcast %43 : f32 to vector<14x14xf32>
    %309 = arith.mulf %159, %308 : vector<14x14xf32>
    %310 = vector.broadcast %44 : f32 to vector<14x14xf32>
    %311 = arith.mulf %160, %310 : vector<14x14xf32>
    %312 = vector.broadcast %45 : f32 to vector<14x14xf32>
    %313 = arith.mulf %161, %312 : vector<14x14xf32>
    %314 = vector.broadcast %46 : f32 to vector<14x14xf32>
    %315 = arith.mulf %162, %314 : vector<14x14xf32>
    %316 = vector.broadcast %47 : f32 to vector<14x14xf32>
    %317 = arith.mulf %163, %316 : vector<14x14xf32>
    %318 = vector.broadcast %48 : f32 to vector<14x14xf32>
    %319 = arith.mulf %164, %318 : vector<14x14xf32>
    %320 = vector.broadcast %49 : f32 to vector<14x14xf32>
    %321 = arith.mulf %165, %320 : vector<14x14xf32>
    %322 = vector.broadcast %50 : f32 to vector<14x14xf32>
    %323 = arith.mulf %166, %322 : vector<14x14xf32>
    %324 = vector.broadcast %51 : f32 to vector<14x14xf32>
    %325 = arith.mulf %167, %324 : vector<14x14xf32>
    %326 = vector.broadcast %52 : f32 to vector<14x14xf32>
    %327 = arith.mulf %168, %326 : vector<14x14xf32>
    %328 = vector.broadcast %53 : f32 to vector<14x14xf32>
    %329 = arith.mulf %169, %328 : vector<14x14xf32>
    %330 = vector.broadcast %54 : f32 to vector<14x14xf32>
    %331 = arith.mulf %170, %330 : vector<14x14xf32>
    %332 = vector.broadcast %55 : f32 to vector<14x14xf32>
    %333 = arith.mulf %171, %332 : vector<14x14xf32>
    %334 = vector.broadcast %56 : f32 to vector<14x14xf32>
    %335 = arith.mulf %172, %334 : vector<14x14xf32>
    %336 = vector.broadcast %57 : f32 to vector<14x14xf32>
    %337 = arith.mulf %173, %336 : vector<14x14xf32>
    %338 = vector.broadcast %58 : f32 to vector<14x14xf32>
    %339 = arith.mulf %174, %338 : vector<14x14xf32>
    %340 = vector.broadcast %59 : f32 to vector<14x14xf32>
    %341 = arith.mulf %175, %340 : vector<14x14xf32>
    %342 = vector.broadcast %60 : f32 to vector<14x14xf32>
    %343 = arith.mulf %176, %342 : vector<14x14xf32>
    %344 = vector.broadcast %61 : f32 to vector<14x14xf32>
    %345 = arith.mulf %177, %344 : vector<14x14xf32>
    %346 = vector.broadcast %62 : f32 to vector<14x14xf32>
    %347 = arith.mulf %178, %346 : vector<14x14xf32>
    %348 = vector.broadcast %63 : f32 to vector<14x14xf32>
    %349 = arith.mulf %179, %348 : vector<14x14xf32>
    %350 = vector.broadcast %64 : f32 to vector<14x14xf32>
    %351 = arith.mulf %180, %350 : vector<14x14xf32>
    %352 = vector.broadcast %65 : f32 to vector<14x14xf32>
    %353 = arith.mulf %181, %352 : vector<14x14xf32>
    %354 = vector.broadcast %66 : f32 to vector<14x14xf32>
    %355 = arith.mulf %182, %354 : vector<14x14xf32>
    %356 = vector.broadcast %67 : f32 to vector<14x14xf32>
    %357 = arith.mulf %183, %356 : vector<14x14xf32>
    %358 = vector.broadcast %68 : f32 to vector<14x14xf32>
    %359 = arith.mulf %184, %358 : vector<14x14xf32>
    %360 = vector.broadcast %69 : f32 to vector<14x14xf32>
    %361 = arith.mulf %185, %360 : vector<14x14xf32>
    %362 = vector.broadcast %70 : f32 to vector<14x14xf32>
    %363 = arith.mulf %186, %362 : vector<14x14xf32>
    %364 = vector.broadcast %71 : f32 to vector<14x14xf32>
    %365 = arith.mulf %187, %364 : vector<14x14xf32>
    %366 = vector.broadcast %72 : f32 to vector<14x14xf32>
    %367 = arith.mulf %188, %366 : vector<14x14xf32>
    %368 = vector.broadcast %73 : f32 to vector<14x14xf32>
    %369 = arith.mulf %189, %368 : vector<14x14xf32>
    %370 = vector.broadcast %74 : f32 to vector<14x14xf32>
    %371 = arith.mulf %190, %370 : vector<14x14xf32>
    %372 = arith.addf %301, %303 : vector<14x14xf32>
    %373 = arith.addf %305, %307 : vector<14x14xf32>
    %374 = arith.addf %309, %311 : vector<14x14xf32>
    %375 = arith.addf %313, %315 : vector<14x14xf32>
    %376 = arith.addf %317, %319 : vector<14x14xf32>
    %377 = arith.addf %321, %323 : vector<14x14xf32>
    %378 = arith.addf %325, %327 : vector<14x14xf32>
    %379 = arith.addf %329, %331 : vector<14x14xf32>
    %380 = arith.addf %333, %335 : vector<14x14xf32>
    %381 = arith.addf %337, %339 : vector<14x14xf32>
    %382 = arith.addf %341, %343 : vector<14x14xf32>
    %383 = arith.addf %345, %347 : vector<14x14xf32>
    %384 = arith.addf %349, %351 : vector<14x14xf32>
    %385 = arith.addf %353, %355 : vector<14x14xf32>
    %386 = arith.addf %357, %359 : vector<14x14xf32>
    %387 = arith.addf %361, %363 : vector<14x14xf32>
    %388 = arith.addf %365, %367 : vector<14x14xf32>
    %389 = arith.addf %369, %371 : vector<14x14xf32>
    %390 = arith.addf %372, %373 : vector<14x14xf32>
    %391 = arith.addf %374, %375 : vector<14x14xf32>
    %392 = arith.addf %376, %377 : vector<14x14xf32>
    %393 = arith.addf %378, %379 : vector<14x14xf32>
    %394 = arith.addf %380, %381 : vector<14x14xf32>
    %395 = arith.addf %382, %383 : vector<14x14xf32>
    %396 = arith.addf %384, %385 : vector<14x14xf32>
    %397 = arith.addf %386, %387 : vector<14x14xf32>
    %398 = arith.addf %388, %389 : vector<14x14xf32>
    %399 = arith.addf %390, %391 : vector<14x14xf32>
    %400 = arith.addf %392, %393 : vector<14x14xf32>
    %401 = arith.addf %394, %395 : vector<14x14xf32>
    %402 = arith.addf %396, %397 : vector<14x14xf32>
    %403 = arith.addf %399, %400 : vector<14x14xf32>
    %404 = arith.addf %401, %402 : vector<14x14xf32>
    %405 = arith.addf %403, %404 : vector<14x14xf32>
    %406 = arith.addf %405, %398 : vector<14x14xf32>
    %cst_17 = arith.constant 0.000000e+00 : f32
    %407 = vector.broadcast %cst_17 : f32 to vector<14x14xf32>
    %408 = arith.maximumf %406, %407 : vector<14x14xf32>
    %409 = vector.broadcast %75 : f32 to vector<14x14xf32>
    %410 = arith.mulf %155, %409 : vector<14x14xf32>
    %411 = vector.broadcast %76 : f32 to vector<14x14xf32>
    %412 = arith.mulf %156, %411 : vector<14x14xf32>
    %413 = vector.broadcast %77 : f32 to vector<14x14xf32>
    %414 = arith.mulf %157, %413 : vector<14x14xf32>
    %415 = vector.broadcast %78 : f32 to vector<14x14xf32>
    %416 = arith.mulf %158, %415 : vector<14x14xf32>
    %417 = vector.broadcast %79 : f32 to vector<14x14xf32>
    %418 = arith.mulf %159, %417 : vector<14x14xf32>
    %419 = vector.broadcast %80 : f32 to vector<14x14xf32>
    %420 = arith.mulf %160, %419 : vector<14x14xf32>
    %421 = vector.broadcast %81 : f32 to vector<14x14xf32>
    %422 = arith.mulf %161, %421 : vector<14x14xf32>
    %423 = vector.broadcast %82 : f32 to vector<14x14xf32>
    %424 = arith.mulf %162, %423 : vector<14x14xf32>
    %425 = vector.broadcast %83 : f32 to vector<14x14xf32>
    %426 = arith.mulf %163, %425 : vector<14x14xf32>
    %427 = vector.broadcast %84 : f32 to vector<14x14xf32>
    %428 = arith.mulf %164, %427 : vector<14x14xf32>
    %429 = vector.broadcast %85 : f32 to vector<14x14xf32>
    %430 = arith.mulf %165, %429 : vector<14x14xf32>
    %431 = vector.broadcast %86 : f32 to vector<14x14xf32>
    %432 = arith.mulf %166, %431 : vector<14x14xf32>
    %433 = vector.broadcast %87 : f32 to vector<14x14xf32>
    %434 = arith.mulf %167, %433 : vector<14x14xf32>
    %435 = vector.broadcast %88 : f32 to vector<14x14xf32>
    %436 = arith.mulf %168, %435 : vector<14x14xf32>
    %437 = vector.broadcast %89 : f32 to vector<14x14xf32>
    %438 = arith.mulf %169, %437 : vector<14x14xf32>
    %439 = vector.broadcast %90 : f32 to vector<14x14xf32>
    %440 = arith.mulf %170, %439 : vector<14x14xf32>
    %441 = vector.broadcast %91 : f32 to vector<14x14xf32>
    %442 = arith.mulf %171, %441 : vector<14x14xf32>
    %443 = vector.broadcast %92 : f32 to vector<14x14xf32>
    %444 = arith.mulf %172, %443 : vector<14x14xf32>
    %445 = vector.broadcast %93 : f32 to vector<14x14xf32>
    %446 = arith.mulf %173, %445 : vector<14x14xf32>
    %447 = vector.broadcast %94 : f32 to vector<14x14xf32>
    %448 = arith.mulf %174, %447 : vector<14x14xf32>
    %449 = vector.broadcast %95 : f32 to vector<14x14xf32>
    %450 = arith.mulf %175, %449 : vector<14x14xf32>
    %451 = vector.broadcast %96 : f32 to vector<14x14xf32>
    %452 = arith.mulf %176, %451 : vector<14x14xf32>
    %453 = vector.broadcast %97 : f32 to vector<14x14xf32>
    %454 = arith.mulf %177, %453 : vector<14x14xf32>
    %455 = vector.broadcast %98 : f32 to vector<14x14xf32>
    %456 = arith.mulf %178, %455 : vector<14x14xf32>
    %457 = vector.broadcast %99 : f32 to vector<14x14xf32>
    %458 = arith.mulf %179, %457 : vector<14x14xf32>
    %459 = vector.broadcast %100 : f32 to vector<14x14xf32>
    %460 = arith.mulf %180, %459 : vector<14x14xf32>
    %461 = vector.broadcast %101 : f32 to vector<14x14xf32>
    %462 = arith.mulf %181, %461 : vector<14x14xf32>
    %463 = vector.broadcast %102 : f32 to vector<14x14xf32>
    %464 = arith.mulf %182, %463 : vector<14x14xf32>
    %465 = vector.broadcast %103 : f32 to vector<14x14xf32>
    %466 = arith.mulf %183, %465 : vector<14x14xf32>
    %467 = vector.broadcast %104 : f32 to vector<14x14xf32>
    %468 = arith.mulf %184, %467 : vector<14x14xf32>
    %469 = vector.broadcast %105 : f32 to vector<14x14xf32>
    %470 = arith.mulf %185, %469 : vector<14x14xf32>
    %471 = vector.broadcast %106 : f32 to vector<14x14xf32>
    %472 = arith.mulf %186, %471 : vector<14x14xf32>
    %473 = vector.broadcast %107 : f32 to vector<14x14xf32>
    %474 = arith.mulf %187, %473 : vector<14x14xf32>
    %475 = vector.broadcast %108 : f32 to vector<14x14xf32>
    %476 = arith.mulf %188, %475 : vector<14x14xf32>
    %477 = vector.broadcast %109 : f32 to vector<14x14xf32>
    %478 = arith.mulf %189, %477 : vector<14x14xf32>
    %479 = vector.broadcast %110 : f32 to vector<14x14xf32>
    %480 = arith.mulf %190, %479 : vector<14x14xf32>
    %481 = arith.addf %410, %412 : vector<14x14xf32>
    %482 = arith.addf %414, %416 : vector<14x14xf32>
    %483 = arith.addf %418, %420 : vector<14x14xf32>
    %484 = arith.addf %422, %424 : vector<14x14xf32>
    %485 = arith.addf %426, %428 : vector<14x14xf32>
    %486 = arith.addf %430, %432 : vector<14x14xf32>
    %487 = arith.addf %434, %436 : vector<14x14xf32>
    %488 = arith.addf %438, %440 : vector<14x14xf32>
    %489 = arith.addf %442, %444 : vector<14x14xf32>
    %490 = arith.addf %446, %448 : vector<14x14xf32>
    %491 = arith.addf %450, %452 : vector<14x14xf32>
    %492 = arith.addf %454, %456 : vector<14x14xf32>
    %493 = arith.addf %458, %460 : vector<14x14xf32>
    %494 = arith.addf %462, %464 : vector<14x14xf32>
    %495 = arith.addf %466, %468 : vector<14x14xf32>
    %496 = arith.addf %470, %472 : vector<14x14xf32>
    %497 = arith.addf %474, %476 : vector<14x14xf32>
    %498 = arith.addf %478, %480 : vector<14x14xf32>
    %499 = arith.addf %481, %482 : vector<14x14xf32>
    %500 = arith.addf %483, %484 : vector<14x14xf32>
    %501 = arith.addf %485, %486 : vector<14x14xf32>
    %502 = arith.addf %487, %488 : vector<14x14xf32>
    %503 = arith.addf %489, %490 : vector<14x14xf32>
    %504 = arith.addf %491, %492 : vector<14x14xf32>
    %505 = arith.addf %493, %494 : vector<14x14xf32>
    %506 = arith.addf %495, %496 : vector<14x14xf32>
    %507 = arith.addf %497, %498 : vector<14x14xf32>
    %508 = arith.addf %499, %500 : vector<14x14xf32>
    %509 = arith.addf %501, %502 : vector<14x14xf32>
    %510 = arith.addf %503, %504 : vector<14x14xf32>
    %511 = arith.addf %505, %506 : vector<14x14xf32>
    %512 = arith.addf %508, %509 : vector<14x14xf32>
    %513 = arith.addf %510, %511 : vector<14x14xf32>
    %514 = arith.addf %512, %513 : vector<14x14xf32>
    %515 = arith.addf %514, %507 : vector<14x14xf32>
    %cst_18 = arith.constant 0.000000e+00 : f32
    %516 = vector.broadcast %cst_18 : f32 to vector<14x14xf32>
    %517 = arith.maximumf %515, %516 : vector<14x14xf32>
    %518 = vector.broadcast %111 : f32 to vector<14x14xf32>
    %519 = arith.mulf %155, %518 : vector<14x14xf32>
    %520 = vector.broadcast %112 : f32 to vector<14x14xf32>
    %521 = arith.mulf %156, %520 : vector<14x14xf32>
    %522 = vector.broadcast %113 : f32 to vector<14x14xf32>
    %523 = arith.mulf %157, %522 : vector<14x14xf32>
    %524 = vector.broadcast %114 : f32 to vector<14x14xf32>
    %525 = arith.mulf %158, %524 : vector<14x14xf32>
    %526 = vector.broadcast %115 : f32 to vector<14x14xf32>
    %527 = arith.mulf %159, %526 : vector<14x14xf32>
    %528 = vector.broadcast %116 : f32 to vector<14x14xf32>
    %529 = arith.mulf %160, %528 : vector<14x14xf32>
    %530 = vector.broadcast %117 : f32 to vector<14x14xf32>
    %531 = arith.mulf %161, %530 : vector<14x14xf32>
    %532 = vector.broadcast %118 : f32 to vector<14x14xf32>
    %533 = arith.mulf %162, %532 : vector<14x14xf32>
    %534 = vector.broadcast %119 : f32 to vector<14x14xf32>
    %535 = arith.mulf %163, %534 : vector<14x14xf32>
    %536 = vector.broadcast %120 : f32 to vector<14x14xf32>
    %537 = arith.mulf %164, %536 : vector<14x14xf32>
    %538 = vector.broadcast %121 : f32 to vector<14x14xf32>
    %539 = arith.mulf %165, %538 : vector<14x14xf32>
    %540 = vector.broadcast %122 : f32 to vector<14x14xf32>
    %541 = arith.mulf %166, %540 : vector<14x14xf32>
    %542 = vector.broadcast %123 : f32 to vector<14x14xf32>
    %543 = arith.mulf %167, %542 : vector<14x14xf32>
    %544 = vector.broadcast %124 : f32 to vector<14x14xf32>
    %545 = arith.mulf %168, %544 : vector<14x14xf32>
    %546 = vector.broadcast %125 : f32 to vector<14x14xf32>
    %547 = arith.mulf %169, %546 : vector<14x14xf32>
    %548 = vector.broadcast %126 : f32 to vector<14x14xf32>
    %549 = arith.mulf %170, %548 : vector<14x14xf32>
    %550 = vector.broadcast %127 : f32 to vector<14x14xf32>
    %551 = arith.mulf %171, %550 : vector<14x14xf32>
    %552 = vector.broadcast %128 : f32 to vector<14x14xf32>
    %553 = arith.mulf %172, %552 : vector<14x14xf32>
    %554 = vector.broadcast %129 : f32 to vector<14x14xf32>
    %555 = arith.mulf %173, %554 : vector<14x14xf32>
    %556 = vector.broadcast %130 : f32 to vector<14x14xf32>
    %557 = arith.mulf %174, %556 : vector<14x14xf32>
    %558 = vector.broadcast %131 : f32 to vector<14x14xf32>
    %559 = arith.mulf %175, %558 : vector<14x14xf32>
    %560 = vector.broadcast %132 : f32 to vector<14x14xf32>
    %561 = arith.mulf %176, %560 : vector<14x14xf32>
    %562 = vector.broadcast %133 : f32 to vector<14x14xf32>
    %563 = arith.mulf %177, %562 : vector<14x14xf32>
    %564 = vector.broadcast %134 : f32 to vector<14x14xf32>
    %565 = arith.mulf %178, %564 : vector<14x14xf32>
    %566 = vector.broadcast %135 : f32 to vector<14x14xf32>
    %567 = arith.mulf %179, %566 : vector<14x14xf32>
    %568 = vector.broadcast %136 : f32 to vector<14x14xf32>
    %569 = arith.mulf %180, %568 : vector<14x14xf32>
    %570 = vector.broadcast %137 : f32 to vector<14x14xf32>
    %571 = arith.mulf %181, %570 : vector<14x14xf32>
    %572 = vector.broadcast %138 : f32 to vector<14x14xf32>
    %573 = arith.mulf %182, %572 : vector<14x14xf32>
    %574 = vector.broadcast %139 : f32 to vector<14x14xf32>
    %575 = arith.mulf %183, %574 : vector<14x14xf32>
    %576 = vector.broadcast %140 : f32 to vector<14x14xf32>
    %577 = arith.mulf %184, %576 : vector<14x14xf32>
    %578 = vector.broadcast %141 : f32 to vector<14x14xf32>
    %579 = arith.mulf %185, %578 : vector<14x14xf32>
    %580 = vector.broadcast %142 : f32 to vector<14x14xf32>
    %581 = arith.mulf %186, %580 : vector<14x14xf32>
    %582 = vector.broadcast %143 : f32 to vector<14x14xf32>
    %583 = arith.mulf %187, %582 : vector<14x14xf32>
    %584 = vector.broadcast %144 : f32 to vector<14x14xf32>
    %585 = arith.mulf %188, %584 : vector<14x14xf32>
    %586 = vector.broadcast %145 : f32 to vector<14x14xf32>
    %587 = arith.mulf %189, %586 : vector<14x14xf32>
    %588 = vector.broadcast %146 : f32 to vector<14x14xf32>
    %589 = arith.mulf %190, %588 : vector<14x14xf32>
    %590 = arith.addf %519, %521 : vector<14x14xf32>
    %591 = arith.addf %523, %525 : vector<14x14xf32>
    %592 = arith.addf %527, %529 : vector<14x14xf32>
    %593 = arith.addf %531, %533 : vector<14x14xf32>
    %594 = arith.addf %535, %537 : vector<14x14xf32>
    %595 = arith.addf %539, %541 : vector<14x14xf32>
    %596 = arith.addf %543, %545 : vector<14x14xf32>
    %597 = arith.addf %547, %549 : vector<14x14xf32>
    %598 = arith.addf %551, %553 : vector<14x14xf32>
    %599 = arith.addf %555, %557 : vector<14x14xf32>
    %600 = arith.addf %559, %561 : vector<14x14xf32>
    %601 = arith.addf %563, %565 : vector<14x14xf32>
    %602 = arith.addf %567, %569 : vector<14x14xf32>
    %603 = arith.addf %571, %573 : vector<14x14xf32>
    %604 = arith.addf %575, %577 : vector<14x14xf32>
    %605 = arith.addf %579, %581 : vector<14x14xf32>
    %606 = arith.addf %583, %585 : vector<14x14xf32>
    %607 = arith.addf %587, %589 : vector<14x14xf32>
    %608 = arith.addf %590, %591 : vector<14x14xf32>
    %609 = arith.addf %592, %593 : vector<14x14xf32>
    %610 = arith.addf %594, %595 : vector<14x14xf32>
    %611 = arith.addf %596, %597 : vector<14x14xf32>
    %612 = arith.addf %598, %599 : vector<14x14xf32>
    %613 = arith.addf %600, %601 : vector<14x14xf32>
    %614 = arith.addf %602, %603 : vector<14x14xf32>
    %615 = arith.addf %604, %605 : vector<14x14xf32>
    %616 = arith.addf %606, %607 : vector<14x14xf32>
    %617 = arith.addf %608, %609 : vector<14x14xf32>
    %618 = arith.addf %610, %611 : vector<14x14xf32>
    %619 = arith.addf %612, %613 : vector<14x14xf32>
    %620 = arith.addf %614, %615 : vector<14x14xf32>
    %621 = arith.addf %617, %618 : vector<14x14xf32>
    %622 = arith.addf %619, %620 : vector<14x14xf32>
    %623 = arith.addf %621, %622 : vector<14x14xf32>
    %624 = arith.addf %623, %616 : vector<14x14xf32>
    %cst_19 = arith.constant 0.000000e+00 : f32
    %625 = vector.broadcast %cst_19 : f32 to vector<14x14xf32>
    %626 = arith.maximumf %624, %625 : vector<14x14xf32>
    %c0_20 = arith.constant 0 : index
    %c0_21 = arith.constant 0 : index
    %c0_22 = arith.constant 0 : index
    %c0_23 = arith.constant 0 : index
    %627 = vector.load %arg3[%c0_20, %c0_21, %c0_22, %c0_23] : memref<1x4x14x14xf32, #tpu.memory_space<vmem>>, vector<1x1x14x14xf32>
    %628 = vector.shape_cast %627 : vector<1x1x14x14xf32> to vector<14x14xf32>
    %629 = vector.shape_cast %299 : vector<14x14xf32> to vector<1x1x14x14xf32>
    tpu.vector_store %arg3[%c0_20, %c0_21, %c0_22, %c0_23], %629 {strides = array<i32>} : memref<1x4x14x14xf32, #tpu.memory_space<vmem>>, vector<1x1x14x14xf32>,
    %c0_24 = arith.constant 0 : index
    %c0_25 = arith.constant 0 : index
    %630 = vector.load %arg4[%c0_24, %c0_25] : memref<8x14xf32, #tpu.memory_space<vmem>>, vector<1x14xf32>
    %cst_26 = arith.constant dense<0.000000e+00> : vector<14xf32>
    %631 = vector.multi_reduction <add>, %299, %cst_26 [0] : vector<14x14xf32> to vector<14xf32>
    %632 = vector.shape_cast %631 : vector<14xf32> to vector<1x14xf32>
    %633 = arith.addf %630, %632 : vector<1x14xf32>
    %c0_27 = arith.constant 0 : index
    %c0_28 = arith.constant 0 : index
    %634 = vector.load %arg4[%c0_27, %c0_28] : memref<8x14xf32, #tpu.memory_space<vmem>>, vector<1x14xf32>
    tpu.vector_store %arg4[%c0_27, %c0_28], %633 {strides = array<i32>} : memref<8x14xf32, #tpu.memory_space<vmem>>, vector<1x14xf32>,
    %c4_29 = arith.constant 4 : index
    %c0_30 = arith.constant 0 : index
    %635 = vector.load %arg4[%c4_29, %c0_30] : memref<8x14xf32, #tpu.memory_space<vmem>>, vector<1x14xf32>
    %636 = arith.mulf %299, %299 : vector<14x14xf32>
    %cst_31 = arith.constant dense<0.000000e+00> : vector<14xf32>
    %637 = vector.multi_reduction <add>, %636, %cst_31 [0] : vector<14x14xf32> to vector<14xf32>
    %638 = vector.shape_cast %637 : vector<14xf32> to vector<1x14xf32>
    %639 = arith.addf %635, %638 : vector<1x14xf32>
    %c4_32 = arith.constant 4 : index
    %c0_33 = arith.constant 0 : index
    %640 = vector.load %arg4[%c4_32, %c0_33] : memref<8x14xf32, #tpu.memory_space<vmem>>, vector<1x14xf32>
    tpu.vector_store %arg4[%c4_32, %c0_33], %639 {strides = array<i32>} : memref<8x14xf32, #tpu.memory_space<vmem>>, vector<1x14xf32>,
    %c0_34 = arith.constant 0 : index
    %c1_35 = arith.constant 1 : index
    %c0_36 = arith.constant 0 : index
    %c0_37 = arith.constant 0 : index
    %641 = vector.load %arg3[%c0_34, %c1_35, %c0_36, %c0_37] : memref<1x4x14x14xf32, #tpu.memory_space<vmem>>, vector<1x1x14x14xf32>
    %642 = vector.shape_cast %641 : vector<1x1x14x14xf32> to vector<14x14xf32>
    %643 = vector.shape_cast %408 : vector<14x14xf32> to vector<1x1x14x14xf32>
    tpu.vector_store %arg3[%c0_34, %c1_35, %c0_36, %c0_37], %643 {strides = array<i32>} : memref<1x4x14x14xf32, #tpu.memory_space<vmem>>, vector<1x1x14x14xf32>,
    %c1_38 = arith.constant 1 : index
    %c0_39 = arith.constant 0 : index
    %644 = vector.load %arg4[%c1_38, %c0_39] : memref<8x14xf32, #tpu.memory_space<vmem>>, vector<1x14xf32>
    %cst_40 = arith.constant dense<0.000000e+00> : vector<14xf32>
    %645 = vector.multi_reduction <add>, %408, %cst_40 [0] : vector<14x14xf32> to vector<14xf32>
    %646 = vector.shape_cast %645 : vector<14xf32> to vector<1x14xf32>
    %647 = arith.addf %644, %646 : vector<1x14xf32>
    %c1_41 = arith.constant 1 : index
    %c0_42 = arith.constant 0 : index
    %648 = vector.load %arg4[%c1_41, %c0_42] : memref<8x14xf32, #tpu.memory_space<vmem>>, vector<1x14xf32>
    tpu.vector_store %arg4[%c1_41, %c0_42], %647 {strides = array<i32>} : memref<8x14xf32, #tpu.memory_space<vmem>>, vector<1x14xf32>,
    %c5_43 = arith.constant 5 : index
    %c0_44 = arith.constant 0 : index
    %649 = vector.load %arg4[%c5_43, %c0_44] : memref<8x14xf32, #tpu.memory_space<vmem>>, vector<1x14xf32>
    %650 = arith.mulf %408, %408 : vector<14x14xf32>
    %cst_45 = arith.constant dense<0.000000e+00> : vector<14xf32>
    %651 = vector.multi_reduction <add>, %650, %cst_45 [0] : vector<14x14xf32> to vector<14xf32>
    %652 = vector.shape_cast %651 : vector<14xf32> to vector<1x14xf32>
    %653 = arith.addf %649, %652 : vector<1x14xf32>
    %c5_46 = arith.constant 5 : index
    %c0_47 = arith.constant 0 : index
    %654 = vector.load %arg4[%c5_46, %c0_47] : memref<8x14xf32, #tpu.memory_space<vmem>>, vector<1x14xf32>
    tpu.vector_store %arg4[%c5_46, %c0_47], %653 {strides = array<i32>} : memref<8x14xf32, #tpu.memory_space<vmem>>, vector<1x14xf32>,
    %c0_48 = arith.constant 0 : index
    %c2_49 = arith.constant 2 : index
    %c0_50 = arith.constant 0 : index
    %c0_51 = arith.constant 0 : index
    %655 = vector.load %arg3[%c0_48, %c2_49, %c0_50, %c0_51] : memref<1x4x14x14xf32, #tpu.memory_space<vmem>>, vector<1x1x14x14xf32>
    %656 = vector.shape_cast %655 : vector<1x1x14x14xf32> to vector<14x14xf32>
    %657 = vector.shape_cast %517 : vector<14x14xf32> to vector<1x1x14x14xf32>
    tpu.vector_store %arg3[%c0_48, %c2_49, %c0_50, %c0_51], %657 {strides = array<i32>} : memref<1x4x14x14xf32, #tpu.memory_space<vmem>>, vector<1x1x14x14xf32>,
    %c2_52 = arith.constant 2 : index
    %c0_53 = arith.constant 0 : index
    %658 = vector.load %arg4[%c2_52, %c0_53] : memref<8x14xf32, #tpu.memory_space<vmem>>, vector<1x14xf32>
    %cst_54 = arith.constant dense<0.000000e+00> : vector<14xf32>
    %659 = vector.multi_reduction <add>, %517, %cst_54 [0] : vector<14x14xf32> to vector<14xf32>
    %660 = vector.shape_cast %659 : vector<14xf32> to vector<1x14xf32>
    %661 = arith.addf %658, %660 : vector<1x14xf32>
    %c2_55 = arith.constant 2 : index
    %c0_56 = arith.constant 0 : index
    %662 = vector.load %arg4[%c2_55, %c0_56] : memref<8x14xf32, #tpu.memory_space<vmem>>, vector<1x14xf32>
    tpu.vector_store %arg4[%c2_55, %c0_56], %661 {strides = array<i32>} : memref<8x14xf32, #tpu.memory_space<vmem>>, vector<1x14xf32>,
    %c6_57 = arith.constant 6 : index
    %c0_58 = arith.constant 0 : index
    %663 = vector.load %arg4[%c6_57, %c0_58] : memref<8x14xf32, #tpu.memory_space<vmem>>, vector<1x14xf32>
    %664 = arith.mulf %517, %517 : vector<14x14xf32>
    %cst_59 = arith.constant dense<0.000000e+00> : vector<14xf32>
    %665 = vector.multi_reduction <add>, %664, %cst_59 [0] : vector<14x14xf32> to vector<14xf32>
    %666 = vector.shape_cast %665 : vector<14xf32> to vector<1x14xf32>
    %667 = arith.addf %663, %666 : vector<1x14xf32>
    %c6_60 = arith.constant 6 : index
    %c0_61 = arith.constant 0 : index
    %668 = vector.load %arg4[%c6_60, %c0_61] : memref<8x14xf32, #tpu.memory_space<vmem>>, vector<1x14xf32>
    tpu.vector_store %arg4[%c6_60, %c0_61], %667 {strides = array<i32>} : memref<8x14xf32, #tpu.memory_space<vmem>>, vector<1x14xf32>,
    %c0_62 = arith.constant 0 : index
    %c3_63 = arith.constant 3 : index
    %c0_64 = arith.constant 0 : index
    %c0_65 = arith.constant 0 : index
    %669 = vector.load %arg3[%c0_62, %c3_63, %c0_64, %c0_65] : memref<1x4x14x14xf32, #tpu.memory_space<vmem>>, vector<1x1x14x14xf32>
    %670 = vector.shape_cast %669 : vector<1x1x14x14xf32> to vector<14x14xf32>
    %671 = vector.shape_cast %626 : vector<14x14xf32> to vector<1x1x14x14xf32>
    tpu.vector_store %arg3[%c0_62, %c3_63, %c0_64, %c0_65], %671 {strides = array<i32>} : memref<1x4x14x14xf32, #tpu.memory_space<vmem>>, vector<1x1x14x14xf32>,
    %c3_66 = arith.constant 3 : index
    %c0_67 = arith.constant 0 : index
    %672 = vector.load %arg4[%c3_66, %c0_67] : memref<8x14xf32, #tpu.memory_space<vmem>>, vector<1x14xf32>
    %cst_68 = arith.constant dense<0.000000e+00> : vector<14xf32>
    %673 = vector.multi_reduction <add>, %626, %cst_68 [0] : vector<14x14xf32> to vector<14xf32>
    %674 = vector.shape_cast %673 : vector<14xf32> to vector<1x14xf32>
    %675 = arith.addf %672, %674 : vector<1x14xf32>
    %c3_69 = arith.constant 3 : index
    %c0_70 = arith.constant 0 : index
    %676 = vector.load %arg4[%c3_69, %c0_70] : memref<8x14xf32, #tpu.memory_space<vmem>>, vector<1x14xf32>
    tpu.vector_store %arg4[%c3_69, %c0_70], %675 {strides = array<i32>} : memref<8x14xf32, #tpu.memory_space<vmem>>, vector<1x14xf32>,
    %c7_71 = arith.constant 7 : index
    %c0_72 = arith.constant 0 : index
    %677 = vector.load %arg4[%c7_71, %c0_72] : memref<8x14xf32, #tpu.memory_space<vmem>>, vector<1x14xf32>
    %678 = arith.mulf %626, %626 : vector<14x14xf32>
    %cst_73 = arith.constant dense<0.000000e+00> : vector<14xf32>
    %679 = vector.multi_reduction <add>, %678, %cst_73 [0] : vector<14x14xf32> to vector<14xf32>
    %680 = vector.shape_cast %679 : vector<14xf32> to vector<1x14xf32>
    %681 = arith.addf %677, %680 : vector<1x14xf32>
    %c7_74 = arith.constant 7 : index
    %c0_75 = arith.constant 0 : index
    %682 = vector.load %arg4[%c7_74, %c0_75] : memref<8x14xf32, #tpu.memory_space<vmem>>, vector<1x14xf32>
    tpu.vector_store %arg4[%c7_74, %c0_75], %681 {strides = array<i32>} : memref<8x14xf32, #tpu.memory_space<vmem>>, vector<1x14xf32>,
    return
  }
  func.func @transform_0(%arg0: i32) -> (i32, i32, i32, i32) {
    %c0_i32 = arith.constant 0 : i32
    %c0_i32_0 = arith.constant 0 : i32
    %c0_i32_1 = arith.constant 0 : i32
    %c0_i32_2 = arith.constant 0 : i32
    return %arg0, %c0_i32, %c0_i32_0, %c0_i32_1 : i32, i32, i32, i32
  }
  func.func @transform_1(%arg0: i32) -> i32 {
    %c0_i32 = arith.constant 0 : i32
    %c0_i32_0 = arith.constant 0 : i32
    return %c0_i32 : i32
  }
  func.func @transform_2(%arg0: i32) -> (i32, i32, i32, i32) {
    %c0_i32 = arith.constant 0 : i32
    %c0_i32_0 = arith.constant 0 : i32
    %c0_i32_1 = arith.constant 0 : i32
    %c0_i32_2 = arith.constant 0 : i32
    return %arg0, %c0_i32, %c0_i32_0, %c0_i32_1 : i32, i32, i32, i32
  }
  func.func @transform_3(%arg0: i32) -> (i32, i32) {
    %c0_i32 = arith.constant 0 : i32
    %c0_i32_0 = arith.constant 0 : i32
    %c0_i32_1 = arith.constant 0 : i32
    return %c0_i32, %c0_i32_0 : i32, i32
  }
}

</mosaic_0001>

<llo_original>
// kernel: tpu_custom_call.1
$region0: #{tpu_custom_call.1}
  #allocation0 [shape = 'u32[]', space=smem, size = 0x4, offset = 0x4, fixed_abs, tag = 'smem constant byte address 0x4 - core index']
  #allocation1 [shape = 'u32[72,128]{1,0:T(1,128)}', space=vmem, size = 0x9000, scoped, tag = 'internal scratch']
  %s0 = inlined_call_operand.hbm [shape: f32[2,4,16,16], index: 0, kind: input, shape index: {}]
  %s1 = inlined_call_operand.hbm [shape: f32[144], index: 1, kind: input, shape index: {}]
  %s2 = inlined_call_operand.vmem [shape: f32[2,4,14,14], index: 2, kind: output, shape index: {0}]
  %s3 = inlined_call_operand.hbm [shape: f32[8,14], index: 3, kind: output, shape index: {1}]
  %4 = xla_tuple %s2, %s3
  %s5 = sld [smem:[#allocation0]]
  $region61: #{tpu_custom_call.1} parent=0
    _
  %s7 = ssub.s32 1, %s5
  %s8 = scalar_select 0, %s7, %s5
  $region1: #{tpu_custom_call.1} parent=0
    #allocation2 [shape = 'u8[65536]{0}', space=vmem, size = 0x10000, scoped, tag = 'input window, operand 0']
    #allocation3 [shape = 's32[2]{0}', space=sflag, size = 0x8, scoped, tag = 'scoped memory for tpu_custom_call.1']
    #allocation4 [shape = 's32[2]{0}', space=sflag, size = 0x8, scoped, tag = 'scoped memory for tpu_custom_call.1']
    #allocation5 [shape = 's32[2]{0}', space=sflag, size = 0x8, scoped, tag = 'scoped memory for tpu_custom_call.1']
    #allocation6 [shape = 'u8[1024]{0}', space=smem, size = 0x400, scoped, tag = 'input window, operand 1, single buffered']
    #allocation7 [shape = 'u8[4096]{0}', space=vmem, size = 0x1000, scoped, tag = 'output window, operand 1, single buffered']
    %9 = vsyncpa [#allocation3], 0
    %s10 = scalar_lea.sflag [#allocation3], 1
    %11 = vsyncpa %s10, 0
    %12 = vsyncpa [#allocation5], 0
    %13 = vsyncpa [#allocation4], 0
    loop: start=0, step=1, limit=4
    $region2: #{tpu_custom_call.1} parent=1 // loop_pre_header
      _
    $region3: #{tpu_custom_call.1} parent=1 // loop_header
      %s15 = sphi 0, %s19
      %p16 = scmp.ge.s32.totalorder %s15, 4
      %s25 = sphi 0, %s27
      %s28 = sphi 0, %s25
      %s29 = sphi 0, %s28
      %s45 = sphi 0, %s29
      %s49 = sphi 0, %s49
      %s51 = sphi 0, %s49
      %s52 = sphi 0, %s51
      %s66 = sphi 0, %s52
      %s72 = sphi 0, %s74
      %s75 = sphi 0, %s72
      %s76 = sphi 0, %s75
      %s92 = sphi 0, %s76
      %s96 = sphi 0, %s96
      %s98 = sphi 0, %s96
      %s99 = sphi 0, %s98
      %s113 = sphi 0, %s99
    $region4: #{tpu_custom_call.1} parent=1 // loop_header_branch
      %18 = sbr.rel (%p16) target = $region8
    $region5: #{tpu_custom_call.1} parent=1 // loop_body
      %s20 = ssub.s32 %s15, 1
      %s21 = ssub.s32 %s15, 2
      %s22 = sadd.s32 %s15, 1
      %s23 = ssub.s32 %s15, %s22
      %p24 = scmp.eq.s32.totalorder %s23, 0
      %s26 = sadd.s32 %s25, 1
      %s27 = scalar_select %p24, %s25, %s26
      %p30 = pneg %p24
      %p31 = scmp.eq.s32.totalorder %s15, 1
      %p32 = por %p30, %p31
      %p33 = scmp.ne.s32.totalorder %s25, %s28
      %p34 = scmp.eq.s32.totalorder %s15, 0
      %p35 = por %p33, %p34
      %p36 = scmp.ne.s32.totalorder %s25, %s28
      %p37 = scmp.eq.s32.totalorder %s20, 1
      %p38 = por %p36, %p37
      %p39 = scmp.ne.s32.totalorder %s28, %s29
      %p40 = scmp.eq.s32.totalorder %s20, 0
      %p41 = por %p39, %p40
      %p42 = scmp.ne.s32.totalorder %s28, %s29
      %p43 = scmp.eq.s32.totalorder %s21, 1
      %p44 = por %p42, %p43
      %p46 = scmp.ne.s32.totalorder %s29, %s45
      %p47 = scmp.eq.s32.totalorder %s21, 0
      %p48 = por %p46, %p47
      %s50 = sadd.s32 %s49, 1
      %p53 = scmp.eq.s32.totalorder %s15, 1
      %p54 = scmp.ne.s32.totalorder %s49, %s51
      %p55 = scmp.eq.s32.totalorder %s15, 0
      %p56 = por %p54, %p55
      %p57 = scmp.ne.s32.totalorder %s49, %s51
      %p58 = scmp.eq.s32.totalorder %s20, 1
      %p59 = por %p57, %p58
      %p60 = scmp.ne.s32.totalorder %s51, %s52
      %p61 = scmp.eq.s32.totalorder %s20, 0
      %p62 = por %p60, %p61
      %p63 = scmp.ne.s32.totalorder %s51, %s52
      %p64 = scmp.eq.s32.totalorder %s21, 1
      %p65 = por %p63, %p64
      %p67 = scmp.ne.s32.totalorder %s52, %s66
      %p68 = scmp.eq.s32.totalorder %s21, 0
      %p69 = por %p67, %p68
      %s70 = ssub.s32 %s15, %s22
      %p71 = scmp.eq.s32.totalorder %s70, 0
      %s73 = sadd.s32 %s72, 1
      %s74 = scalar_select %p71, %s72, %s73
      %p77 = pneg %p71
      %p78 = scmp.eq.s32.totalorder %s15, 1
      %p79 = por %p77, %p78
      %p80 = scmp.ne.s32.totalorder %s72, %s75
      %p81 = scmp.eq.s32.totalorder %s15, 0
      %p82 = por %p80, %p81
      %p83 = scmp.ne.s32.totalorder %s72, %s75
      %p84 = scmp.eq.s32.totalorder %s20, 1
      %p85 = por %p83, %p84
      %p86 = scmp.ne.s32.totalorder %s75, %s76
      %p87 = scmp.eq.s32.totalorder %s20, 0
      %p88 = por %p86, %p87
      %p89 = scmp.ne.s32.totalorder %s75, %s76
      %p90 = scmp.eq.s32.totalorder %s21, 1
      %p91 = por %p89, %p90
      %p93 = scmp.ne.s32.totalorder %s76, %s92
      %p94 = scmp.eq.s32.totalorder %s21, 0
      %p95 = por %p93, %p94
      %s97 = sadd.s32 %s96, 1
      %p100 = scmp.eq.s32.totalorder %s15, 1
      %p101 = scmp.ne.s32.totalorder %s96, %s98
      %p102 = scmp.eq.s32.totalorder %s15, 0
      %p103 = por %p101, %p102
      %p104 = scmp.ne.s32.totalorder %s96, %s98
      %p105 = scmp.eq.s32.totalorder %s20, 1
      %p106 = por %p104, %p105
      %p107 = scmp.ne.s32.totalorder %s98, %s99
      %p108 = scmp.eq.s32.totalorder %s20, 0
      %p109 = por %p107, %p108
      %p110 = scmp.ne.s32.totalorder %s98, %s99
      %p111 = scmp.eq.s32.totalorder %s21, 1
      %p112 = por %p110, %p111
      %p114 = scmp.ne.s32.totalorder %s99, %s113
      %p115 = scmp.eq.s32.totalorder %s21, 0
      %p116 = por %p114, %p115
      %p117 = scmp.le.s32.totalorder 1, %s15
      %p118 = scmp.lt.s32.totalorder %s15, 3
      %p119 = pnand %p117, %p118
      %p120 = pneg %p119
      // Predicated region
      $region9: #{tpu_custom_call.1} parent=5 // pred_check
        _
      $region10: #{tpu_custom_call.1} parent=5 // pred_check_branch
        %122 = sbr.rel (%p119) target = $region12
      $region11: #{tpu_custom_call.1} parent=5 // pred_region
        %s123 = ssub.s32 %s15, 1
        // Predicated region
        $region13: #{tpu_custom_call.1} parent=11 // pred_check
          %p124 = pneg %p62
        $region14: #{tpu_custom_call.1} parent=11 // pred_check_branch
          %126 = sbr.rel (%p124) target = $region16
        $region15: #{tpu_custom_call.1} parent=11 // pred_region
          %128 = vsyncadd [#allocation5], 0
          %s130 = sshll.u32 %s1, 4
          %s131 = int_to_ptr.hbm [resolvable:$true] %s130
          %133 = dma.hbm_to_smem %s131, 32, [#allocation6], [#allocation5]
        $region16: #{tpu_custom_call.1} parent=11 // pred_fallthru
          _
      $region12: #{tpu_custom_call.1} parent=5 // pred_fallthru
        _
      %p134 = scmp.lt.s32.totalorder %s15, 2
      // Predicated region
      $region17: #{tpu_custom_call.1} parent=5 // pred_check
        %p135 = pneg %p134
      $region18: #{tpu_custom_call.1} parent=5 // pred_check_branch
        %137 = sbr.rel (%p135) target = $region20
      $region19: #{tpu_custom_call.1} parent=5 // pred_region
        // Predicated region
        $region21: #{tpu_custom_call.1} parent=19 // pred_check
          %p138 = pneg %p35
        $region22: #{tpu_custom_call.1} parent=19 // pred_check_branch
          %140 = sbr.rel (%p138) target = $region24
        $region23: #{tpu_custom_call.1} parent=19 // pred_region
          %s141 = sand.u32 %s25, 1
          %s142 = scalar_lea.sflag [#allocation3], %s141
          %s143 = sand.u32 %s25, 1
          %s144 = smul.addr %s143, 64
          %s145 = scalar_lea.vmem [#allocation2], %s144
          %147 = vsyncadd %s142, 0
          %s148 = smul.addr %s15, 8
          %s149 = smul.addr %s148, 8
          %s150 = scalar_lea.hbm %s0, %s149
          %s151 = sshll.u32 %s150, 4
          %s152 = int_to_ptr.hbm [resolvable:$true] %s151
          %s153 = sshll.u32 %s145, 4
          %s154 = int_to_ptr.vmem [resolvable:$true] %s153
          %159 = dma.hbm_to_vmem [thread:$0]  %s152, 1024, %s154, %s142, 128, 128, 8
        $region24: #{tpu_custom_call.1} parent=19 // pred_fallthru
          _
      $region20: #{tpu_custom_call.1} parent=5 // pred_fallthru
        _
      %p160 = scmp.le.s32.totalorder 1, %s15
      %p161 = scmp.lt.s32.totalorder %s15, 3
      %p162 = pnand %p160, %p161
      %p163 = pneg %p162
      // Predicated region
      $region25: #{tpu_custom_call.1} parent=5 // pred_check
        _
      $region26: #{tpu_custom_call.1} parent=5 // pred_check_branch
        %165 = sbr.rel (%p162) target = $region28
      $region27: #{tpu_custom_call.1} parent=5 // pred_region
        %s166 = ssub.s32 %s15, 1
        %s167 = sand.u32 %s28, 1
        %s168 = scalar_lea.sflag [#allocation3], %s167
        %s169 = sand.u32 %s28, 1
        %s170 = smul.addr %s169, 64
        %s171 = scalar_lea.vmem [#allocation2], %s170
        // Predicated region
        $region29: #{tpu_custom_call.1} parent=27 // pred_check
          %p172 = pneg %p41
        $region30: #{tpu_custom_call.1} parent=27 // pred_check_branch
          %174 = sbr.rel (%p172) target = $region32
        $region31: #{tpu_custom_call.1} parent=27 // pred_region
          %176 = dma.done %s168, 1024
        $region32: #{tpu_custom_call.1} parent=27 // pred_fallthru
          _
        // Predicated region
        $region33: #{tpu_custom_call.1} parent=27 // pred_check
          %p177 = pneg %p62
        $region34: #{tpu_custom_call.1} parent=27 // pred_check_branch
          %179 = sbr.rel (%p177) target = $region36
        $region35: #{tpu_custom_call.1} parent=27 // pred_region
          %181 = dma.done [#allocation5], 32
        $region36: #{tpu_custom_call.1} parent=27 // pred_fallthru
          _
        %182 = sfence
        %s183 = sand.u32 %s28, 1
        %s184 = scalar_lea.sflag [#allocation3], %s183
        %s185 = sand.u32 %s28, 1
        %s186 = smul.addr %s185, 64
        %s187 = scalar_lea.vmem [#allocation2], %s186
        %p188 = pneg %p41
        %p189 = pneg %p38
        %p190 = pneg %p62
        %p191 = pneg %p59
        %p192 = pneg %p88
        %p193 = pneg %p85
        %p194 = scmp.lt.s32.totalorder %s20, 1
        %s195 = scalar_select %p194, %s20, 1
        %s196 = smul.addr %s195, 8
        %s197 = smul.addr %s196, 8
        %s198 = scalar_lea.vmem %s2, %s197
        %p199 = pneg %p109
        %p200 = pneg %p106
        %p201 = scmp.lt.s32.totalorder %s20, 1
        %s202 = scalar_select %p201, %s20, 1
        %s203 = smul.addr %s202, 8
        %s204 = smul.addr %s203, 8
        %s205 = scalar_lea.vmem %s2, %s204
        %p206 = scmp.eq.s32.totalorder %s20, 0
        // Predicated region
        $region37: #{tpu_custom_call.1} parent=27 // pred_check
          %p207 = pneg %p206
        $region38: #{tpu_custom_call.1} parent=27 // pred_check_branch
          %209 = sbr.rel (%p207) target = $region40
        $region39: #{tpu_custom_call.1} parent=27 // pred_region
          %vm210 = vcmask 113664
          %211 = vst.msk [vmem:[#allocation7] sm:$0xff] %vm210, 0.0
        $region40: #{tpu_custom_call.1} parent=27 // pred_fallthru
          _
        %s212 = sld [smem:[#allocation6]]
        %s213 = sld [smem:[#allocation6 + $0x1]]
        %s214 = sld [smem:[#allocation6 + $0x2]]
        %s215 = sld [smem:[#allocation6 + $0x3]]
        %s216 = sld [smem:[#allocation6 + $0x4]]
        %s217 = sld [smem:[#allocation6 + $0x5]]
        %s218 = sld [smem:[#allocation6 + $0x6]]
        %s219 = sld [smem:[#allocation6 + $0x7]]
        %s220 = sld [smem:[#allocation6 + $0x8]]
        %s221 = sld [smem:[#allocation6 + $0x9]]
        %s222 = sld [smem:[#allocation6 + $0xa]]
        %s223 = sld [smem:[#allocation6 + $0xb]]
        %s224 = sld [smem:[#allocation6 + $0xc]]
        %s225 = sld [smem:[#allocation6 + $0xd]]
        %s226 = sld [smem:[#allocation6 + $0xe]]
        %s227 = sld [smem:[#allocation6 + $0xf]]
        %s228 = sld [smem:[#allocation6 + $0x10]]
        %s229 = sld [smem:[#allocation6 + $0x11]]
        %s230 = sld [smem:[#allocation6 + $0x12]]
        %s231 = sld [smem:[#allocation6 + $0x13]]
        %s232 = sld [smem:[#allocation6 + $0x14]]
        %s233 = sld [smem:[#allocation6 + $0x15]]
        %s234 = sld [smem:[#allocation6 + $0x16]]
        %s235 = sld [smem:[#allocation6 + $0x17]]
        %s236 = sld [smem:[#allocation6 + $0x18]]
        %s237 = sld [smem:[#allocation6 + $0x19]]
        %s238 = sld [smem:[#allocation6 + $0x1a]]
        %s239 = sld [smem:[#allocation6 + $0x1b]]
        %s240 = sld [smem:[#allocation6 + $0x1c]]
        %s241 = sld [smem:[#allocation6 + $0x1d]]
        %s242 = sld [smem:[#allocation6 + $0x1e]]
        %s243 = sld [smem:[#allocation6 + $0x1f]]
        %s244 = sld [smem:[#allocation6 + $0x20]]
        %s245 = sld [smem:[#allocation6 + $0x21]]
        %s246 = sld [smem:[#allocation6 + $0x22]]
        %s247 = sld [smem:[#allocation6 + $0x23]]
        %s248 = sld [smem:[#allocation6 + $0x24]]
        %s249 = sld [smem:[#allocation6 + $0x25]]
        %s250 = sld [smem:[#allocation6 + $0x26]]
        %s251 = sld [smem:[#allocation6 + $0x27]]
        %s252 = sld [smem:[#allocation6 + $0x28]]
        %s253 = sld [smem:[#allocation6 + $0x29]]
        %s254 = sld [smem:[#allocation6 + $0x2a]]
        %s255 = sld [smem:[#allocation6 + $0x2b]]
        %s256 = sld [smem:[#allocation6 + $0x2c]]
        %s257 = sld [smem:[#allocation6 + $0x2d]]
        %s258 = sld [smem:[#allocation6 + $0x2e]]
        %s259 = sld [smem:[#allocation6 + $0x2f]]
        %s260 = sld [smem:[#allocation6 + $0x30]]
        %s261 = sld [smem:[#allocation6 + $0x31]]
        %s262 = sld [smem:[#allocation6 + $0x32]]
        %s263 = sld [smem:[#allocation6 + $0x33]]
        %s264 = sld [smem:[#allocation6 + $0x34]]
        %s265 = sld [smem:[#allocation6 + $0x35]]
        %s266 = sld [smem:[#allocation6 + $0x36]]
        %s267 = sld [smem:[#allocation6 + $0x37]]
        %s268 = sld [smem:[#allocation6 + $0x38]]
        %s269 = sld [smem:[#allocation6 + $0x39]]
        %s270 = sld [smem:[#allocation6 + $0x3a]]
        %s271 = sld [smem:[#allocation6 + $0x3b]]
        %s272 = sld [smem:[#allocation6 + $0x3c]]
        %s273 = sld [smem:[#allocation6 + $0x3d]]
        %s274 = sld [smem:[#allocation6 + $0x3e]]
        %s275 = sld [smem:[#allocation6 + $0x3f]]
        %s276 = sld [smem:[#allocation6 + $0x40]]
        %s277 = sld [smem:[#allocation6 + $0x41]]
        %s278 = sld [smem:[#allocation6 + $0x42]]
        %s279 = sld [smem:[#allocation6 + $0x43]]
        %s280 = sld [smem:[#allocation6 + $0x44]]
        %s281 = sld [smem:[#allocation6 + $0x45]]
        %s282 = sld [smem:[#allocation6 + $0x46]]
        %s283 = sld [smem:[#allocation6 + $0x47]]
        %s284 = sld [smem:[#allocation6 + $0x48]]
        %s285 = sld [smem:[#allocation6 + $0x49]]
        %s286 = sld [smem:[#allocation6 + $0x4a]]
        %s287 = sld [smem:[#allocation6 + $0x4b]]
        %s288 = sld [smem:[#allocation6 + $0x4c]]
        %s289 = sld [smem:[#allocation6 + $0x4d]]
        %s290 = sld [smem:[#allocation6 + $0x4e]]
        %s291 = sld [smem:[#allocation6 + $0x4f]]
        %s292 = sld [smem:[#allocation6 + $0x50]]
        %s293 = sld [smem:[#allocation6 + $0x51]]
        %s294 = sld [smem:[#allocation6 + $0x52]]
        %s295 = sld [smem:[#allocation6 + $0x53]]
        %s296 = sld [smem:[#allocation6 + $0x54]]
        %s297 = sld [smem:[#allocation6 + $0x55]]
        %s298 = sld [smem:[#allocation6 + $0x56]]
        %s299 = sld [smem:[#allocation6 + $0x57]]
        %s300 = sld [smem:[#allocation6 + $0x58]]
        %s301 = sld [smem:[#allocation6 + $0x59]]
        %s302 = sld [smem:[#allocation6 + $0x5a]]
        %s303 = sld [smem:[#allocation6 + $0x5b]]
        %s304 = sld [smem:[#allocation6 + $0x5c]]
        %s305 = sld [smem:[#allocation6 + $0x5d]]
        %s306 = sld [smem:[#allocation6 + $0x5e]]
        %s307 = sld [smem:[#allocation6 + $0x5f]]
        %s308 = sld [smem:[#allocation6 + $0x60]]
        %s309 = sld [smem:[#allocation6 + $0x61]]
        %s310 = sld [smem:[#allocation6 + $0x62]]
        %s311 = sld [smem:[#allocation6 + $0x63]]
        %s312 = sld [smem:[#allocation6 + $0x64]]
        %s313 = sld [smem:[#allocation6 + $0x65]]
        %s314 = sld [smem:[#allocation6 + $0x66]]
        %s315 = sld [smem:[#allocation6 + $0x67]]
        %s316 = sld [smem:[#allocation6 + $0x68]]
        %s317 = sld [smem:[#allocation6 + $0x69]]
        %s318 = sld [smem:[#allocation6 + $0x6a]]
        %s319 = sld [smem:[#allocation6 + $0x6b]]
        %s320 = sld [smem:[#allocation6 + $0x6c]]
        %s321 = sld [smem:[#allocation6 + $0x6d]]
        %s322 = sld [smem:[#allocation6 + $0x6e]]
        %s323 = sld [smem:[#allocation6 + $0x6f]]
        %s324 = sld [smem:[#allocation6 + $0x70]]
        %s325 = sld [smem:[#allocation6 + $0x71]]
        %s326 = sld [smem:[#allocation6 + $0x72]]
        %s327 = sld [smem:[#allocation6 + $0x73]]
        %s328 = sld [smem:[#allocation6 + $0x74]]
        %s329 = sld [smem:[#allocation6 + $0x75]]
        %s330 = sld [smem:[#allocation6 + $0x76]]
        %s331 = sld [smem:[#allocation6 + $0x77]]
        %s332 = sld [smem:[#allocation6 + $0x78]]
        %s333 = sld [smem:[#allocation6 + $0x79]]
        %s334 = sld [smem:[#allocation6 + $0x7a]]
        %s335 = sld [smem:[#allocation6 + $0x7b]]
        %s336 = sld [smem:[#allocation6 + $0x7c]]
        %s337 = sld [smem:[#allocation6 + $0x7d]]
        %s338 = sld [smem:[#allocation6 + $0x7e]]
        %s339 = sld [smem:[#allocation6 + $0x7f]]
        %s340 = sld [smem:[#allocation6 + $0x80]]
        %s341 = sld [smem:[#allocation6 + $0x81]]
        %s342 = sld [smem:[#allocation6 + $0x82]]
        %s343 = sld [smem:[#allocation6 + $0x83]]
        %s344 = sld [smem:[#allocation6 + $0x84]]
        %s345 = sld [smem:[#allocation6 + $0x85]]
        %s346 = sld [smem:[#allocation6 + $0x86]]
        %s347 = sld [smem:[#allocation6 + $0x87]]
        %s348 = sld [smem:[#allocation6 + $0x88]]
        %s349 = sld [smem:[#allocation6 + $0x89]]
        %s350 = sld [smem:[#allocation6 + $0x8a]]
        %s351 = sld [smem:[#allocation6 + $0x8b]]
        %s352 = sld [smem:[#allocation6 + $0x8c]]
        %s353 = sld [smem:[#allocation6 + $0x8d]]
        %s354 = sld [smem:[#allocation6 + $0x8e]]
        %s355 = sld [smem:[#allocation6 + $0x8f]]
        %v356 = vld [vmem:[%s171] sm:$0xff]
        %v357 = vld [vmem:[%s171 + $0x8] sm:$0xff]
        %s358 = scalar_lea.vmem %s171, 16 [#allocation2]
        %v359 = vld [vmem:[%s358] sm:$0xff]
        %v360 = vld [vmem:[%s358 + $0x8] sm:$0xff]
        %s361 = scalar_lea.vmem %s171, 32 [#allocation2]
        %v362 = vld [vmem:[%s361] sm:$0xff]
        %v363 = vld [vmem:[%s361 + $0x8] sm:$0xff]
        %s364 = scalar_lea.vmem %s171, 48 [#allocation2]
        %v365 = vld [vmem:[%s364] sm:$0xff]
        %v366 = vld [vmem:[%s364 + $0x8] sm:$0xff]
        %v367 = vstv %s212
        %v368 = vmul.f32 %v356, %v367
        %v369 = vmul.f32 %v357, %v367
        %v370 = vstv %s213
        %v371 = vmul.f32 %v356, %v370
        %v372 = vmul.f32 %v357, %v370
        %v373 = vstv %s214
        %v374 = vmul.f32 %v356, %v373
        %v375 = vmul.f32 %v357, %v373
        %v376 = vstv %s215
        %v377 = vmul.f32 %v356, %v376
        %v378 = vmul.f32 %v357, %v376
        %v379 = vstv %s216
        %v380 = vmul.f32 %v356, %v379
        %v381 = vmul.f32 %v357, %v379
        %v382 = vstv %s217
        %v383 = vmul.f32 %v356, %v382
        %v384 = vmul.f32 %v357, %v382
        %v385 = vstv %s218
        %v386 = vmul.f32 %v356, %v385
        %v387 = vmul.f32 %v357, %v385
        %v388 = vstv %s219
        %v389 = vmul.f32 %v356, %v388
        %v390 = vmul.f32 %v357, %v388
        %v391 = vstv %s220
        %v392 = vmul.f32 %v356, %v391
        %v393 = vmul.f32 %v357, %v391
        %v394 = vstv %s221
        %v395 = vmul.f32 %v359, %v394
        %v396 = vmul.f32 %v360, %v394
        %v397 = vstv %s222
        %v398 = vmul.f32 %v359, %v397
        %v399 = vmul.f32 %v360, %v397
        %v400 = vstv %s223
        %v401 = vmul.f32 %v359, %v400
        %v402 = vmul.f32 %v360, %v400
        %v403 = vstv %s224
        %v404 = vmul.f32 %v359, %v403
        %v405 = vmul.f32 %v360, %v403
        %v406 = vstv %s225
        %v407 = vmul.f32 %v359, %v406
        %v408 = vmul.f32 %v360, %v406
        %v409 = vstv %s226
        %v410 = vmul.f32 %v359, %v409
        %v411 = vmul.f32 %v360, %v409
        %v412 = vstv %s227
        %v413 = vmul.f32 %v359, %v412
        %v414 = vmul.f32 %v360, %v412
        %v415 = vstv %s228
        %v416 = vmul.f32 %v359, %v415
        %v417 = vmul.f32 %v360, %v415
        %v418 = vstv %s229
        %v419 = vmul.f32 %v359, %v418
        %v420 = vmul.f32 %v360, %v418
        %v421 = vstv %s230
        %v422 = vmul.f32 %v362, %v421
        %v423 = vmul.f32 %v363, %v421
        %v424 = vstv %s231
        %v425 = vmul.f32 %v362, %v424
        %v426 = vmul.f32 %v363, %v424
        %v427 = vstv %s232
        %v428 = vmul.f32 %v362, %v427
        %v429 = vmul.f32 %v363, %v427
        %v430 = vstv %s233
        %v431 = vmul.f32 %v362, %v430
        %v432 = vmul.f32 %v363, %v430
        %v433 = vstv %s234
        %v434 = vmul.f32 %v362, %v433
        %v435 = vmul.f32 %v363, %v433
        %v436 = vstv %s235
        %v437 = vmul.f32 %v362, %v436
        %v438 = vmul.f32 %v363, %v436
        %v439 = vstv %s236
        %v440 = vmul.f32 %v362, %v439
        %v441 = vmul.f32 %v363, %v439
        %v442 = vstv %s237
        %v443 = vmul.f32 %v362, %v442
        %v444 = vmul.f32 %v363, %v442
        %v445 = vstv %s238
        %v446 = vmul.f32 %v362, %v445
        %v447 = vmul.f32 %v363, %v445
        %v448 = vstv %s239
        %v449 = vmul.f32 %v365, %v448
        %v450 = vmul.f32 %v366, %v448
        %v451 = vstv %s240
        %v452 = vmul.f32 %v365, %v451
        %v453 = vmul.f32 %v366, %v451
        %v454 = vstv %s241
        %v455 = vmul.f32 %v365, %v454
        %v456 = vmul.f32 %v366, %v454
        %v457 = vstv %s242
        %v458 = vmul.f32 %v365, %v457
        %v459 = vmul.f32 %v366, %v457
        %v460 = vstv %s243
        %v461 = vmul.f32 %v365, %v460
        %v462 = vmul.f32 %v366, %v460
        %v463 = vstv %s244
        %v464 = vmul.f32 %v365, %v463
        %v465 = vmul.f32 %v366, %v463
        %v466 = vstv %s245
        %v467 = vmul.f32 %v365, %v466
        %v468 = vmul.f32 %v366, %v466
        %v469 = vstv %s246
        %v470 = vmul.f32 %v365, %v469
        %v471 = vmul.f32 %v366, %v469
        %v472 = vstv %s247
        %v473 = vmul.f32 %v365, %v472
        %v474 = vmul.f32 %v366, %v472
        %477 = vrot.lane.b32.xlu0 %v371, 127
        %v478 = vpop.permute.xlu0 %477
        %479 = vrot.lane.b32.xlu0 %v372, 127
        %v480 = vpop.permute.xlu0 %479
        %v483 = vadd.f32 %v368, %v478
        %v484 = vadd.f32 %v369, %v480
        %vm487 = vcmask 1046528
        %v488 = vrot.slane %v377, 1
        %v489 = vrot.slane %v378, 1
        %v490 = vsel %vm487, %v488, %v489
        %491 = vrot.lane.b32.xlu0 %v490, 2
        %v492 = vpop.permute.xlu0 %491
        %493 = vrot.lane.b32.xlu0 %v489, 2
        %v494 = vpop.permute.xlu0 %493
        %v497 = vadd.f32 %v374, %v492
        %v498 = vadd.f32 %v375, %v494
        %501 = vrot.lane.b32.xlu0 %v383, 127
        %v502 = vpop.permute.xlu0 %501
        %503 = vrot.lane.b32.xlu0 %v384, 127
        %v504 = vpop.permute.xlu0 %503
        %v507 = vadd.f32 %v380, %v502
        %v508 = vadd.f32 %v381, %v504
        %511 = vrot.lane.b32.xlu0 %v389, 127
        %v512 = vpop.permute.xlu0 %511
        %513 = vrot.lane.b32.xlu0 %v390, 127
        %v514 = vpop.permute.xlu0 %513
        %v517 = vadd.f32 %v386, %v512
        %v518 = vadd.f32 %v387, %v514
        %vm521 = vcmask 1041408
        %v522 = vrot.slane %v395, 6
        %v523 = vrot.slane %v396, 6
        %v524 = vsel %vm521, %v522, %v523
        %525 = vrot.lane.b32.xlu0 %v522, 2
        %v526 = vpop.permute.xlu0 %525
        %527 = vrot.lane.b32.xlu0 %v524, 2
        %v528 = vpop.permute.xlu0 %527
        %v531 = vadd.f32 %v392, %v526
        %v532 = vadd.f32 %v393, %v528
        %535 = vrot.lane.b32.xlu0 %v401, 127
        %v536 = vpop.permute.xlu0 %535
        %537 = vrot.lane.b32.xlu0 %v402, 127
        %v538 = vpop.permute.xlu0 %537
        %v541 = vadd.f32 %v398, %v536
        %v542 = vadd.f32 %v399, %v538
        %545 = vrot.lane.b32.xlu0 %v407, 127
        %v546 = vpop.permute.xlu0 %545
        %547 = vrot.lane.b32.xlu0 %v408, 127
        %v548 = vpop.permute.xlu0 %547
        %v551 = vadd.f32 %v404, %v546
        %v552 = vadd.f32 %v405, %v548
        %v555 = vrot.slane %v413, 1
        %v556 = vrot.slane %v414, 1
        %v557 = vsel %vm487, %v555, %v556
        %558 = vrot.lane.b32.xlu0 %v557, 2
        %v559 = vpop.permute.xlu0 %558
        %560 = vrot.lane.b32.xlu0 %v556, 2
        %v561 = vpop.permute.xlu0 %560
        %v564 = vadd.f32 %v410, %v559
        %v565 = vadd.f32 %v411, %v561
        %568 = vrot.lane.b32.xlu0 %v419, 127
        %v569 = vpop.permute.xlu0 %568
        %570 = vrot.lane.b32.xlu0 %v420, 127
        %v571 = vpop.permute.xlu0 %570
        %v574 = vadd.f32 %v416, %v569
        %v575 = vadd.f32 %v417, %v571
        %578 = vrot.lane.b32.xlu0 %v425, 127
        %v579 = vpop.permute.xlu0 %578
        %580 = vrot.lane.b32.xlu0 %v426, 127
        %v581 = vpop.permute.xlu0 %580
        %v584 = vadd.f32 %v422, %v579
        %v585 = vadd.f32 %v423, %v581
        %v588 = vrot.slane %v431, 1
        %v589 = vrot.slane %v432, 1
        %v590 = vsel %vm487, %v588, %v589
        %591 = vrot.lane.b32.xlu0 %v590, 2
        %v592 = vpop.permute.xlu0 %591
        %593 = vrot.lane.b32.xlu0 %v589, 2
        %v594 = vpop.permute.xlu0 %593
        %v597 = vadd.f32 %v428, %v592
        %v598 = vadd.f32 %v429, %v594
        %601 = vrot.lane.b32.xlu0 %v437, 127
        %v602 = vpop.permute.xlu0 %601
        %603 = vrot.lane.b32.xlu0 %v438, 127
        %v604 = vpop.permute.xlu0 %603
        %v607 = vadd.f32 %v434, %v602
        %v608 = vadd.f32 %v435, %v604
        %611 = vrot.lane.b32.xlu0 %v443, 127
        %v612 = vpop.permute.xlu0 %611
        %613 = vrot.lane.b32.xlu0 %v444, 127
        %v614 = vpop.permute.xlu0 %613
        %v617 = vadd.f32 %v440, %v612
        %v618 = vadd.f32 %v441, %v614
        %v621 = vrot.slane %v449, 6
        %v622 = vrot.slane %v450, 6
        %v623 = vsel %vm521, %v621, %v622
        %624 = vrot.lane.b32.xlu0 %v621, 2
        %v625 = vpop.permute.xlu0 %624
        %626 = vrot.lane.b32.xlu0 %v623, 2
        %v627 = vpop.permute.xlu0 %626
        %v630 = vadd.f32 %v446, %v625
        %v631 = vadd.f32 %v447, %v627
        %634 = vrot.lane.b32.xlu0 %v455, 127
        %v635 = vpop.permute.xlu0 %634
        %636 = vrot.lane.b32.xlu0 %v456, 127
        %v637 = vpop.permute.xlu0 %636
        %v640 = vadd.f32 %v452, %v635
        %v641 = vadd.f32 %v453, %v637
        %644 = vrot.lane.b32.xlu0 %v461, 127
        %v645 = vpop.permute.xlu0 %644
        %646 = vrot.lane.b32.xlu0 %v462, 127
        %v647 = vpop.permute.xlu0 %646
        %v650 = vadd.f32 %v458, %v645
        %v651 = vadd.f32 %v459, %v647
        %v654 = vrot.slane %v467, 1
        %v655 = vrot.slane %v468, 1
        %v656 = vsel %vm487, %v654, %v655
        %657 = vrot.lane.b32.xlu0 %v656, 2
        %v658 = vpop.permute.xlu0 %657
        %659 = vrot.lane.b32.xlu0 %v655, 2
        %v660 = vpop.permute.xlu0 %659
        %v663 = vadd.f32 %v464, %v658
        %v664 = vadd.f32 %v465, %v660
        %667 = vrot.lane.b32.xlu0 %v473, 127
        %v668 = vpop.permute.xlu0 %667
        %669 = vrot.lane.b32.xlu0 %v474, 127
        %v670 = vpop.permute.xlu0 %669
        %v673 = vadd.f32 %v470, %v668
        %v674 = vadd.f32 %v471, %v670
        %677 = vrot.lane.b32.xlu0 %v497, 126
        %v678 = vpop.permute.xlu0 %677
        %679 = vrot.lane.b32.xlu0 %v498, 126
        %v680 = vpop.permute.xlu0 %679
        %v683 = vadd.f32 %v483, %v678
        %v684 = vadd.f32 %v484, %v680
        %v687 = vrot.slane %v517, 1
        %v688 = vrot.slane %v518, 1
        %v689 = vsel %vm487, %v687, %v688
        %690 = vrot.lane.b32.xlu0 %v689, 1
        %v691 = vpop.permute.xlu0 %690
        %692 = vrot.lane.b32.xlu0 %v688, 1
        %v693 = vpop.permute.xlu0 %692
        %v696 = vadd.f32 %v507, %v691
        %v697 = vadd.f32 %v508, %v693
        %v700 = vrot.slane %v541, 6
        %v701 = vrot.slane %v542, 6
        %v702 = vsel %vm521, %v700, %v701
        %703 = vrot.lane.b32.xlu0 %v700, 1
        %v704 = vpop.permute.xlu0 %703
        %705 = vrot.lane.b32.xlu0 %v702, 1
        %v706 = vpop.permute.xlu0 %705
        %v709 = vadd.f32 %v531, %v704
        %v710 = vadd.f32 %v532, %v706
        %713 = vrot.lane.b32.xlu0 %v564, 126
        %v714 = vpop.permute.xlu0 %713
        %715 = vrot.lane.b32.xlu0 %v565, 126
        %v716 = vpop.permute.xlu0 %715
        %v719 = vadd.f32 %v551, %v714
        %v720 = vadd.f32 %v552, %v716
        %v723 = vrot.slane %v584, 6
        %v724 = vrot.slane %v585, 6
        %v725 = vsel %vm521, %v723, %v724
        %726 = vrot.lane.b32.xlu0 %v723, 1
        %v727 = vpop.permute.xlu0 %726
        %728 = vrot.lane.b32.xlu0 %v725, 1
        %v729 = vpop.permute.xlu0 %728
        %v732 = vadd.f32 %v574, %v727
        %v733 = vadd.f32 %v575, %v729
        %v736 = vrot.slane %v607, 1
        %v737 = vrot.slane %v608, 1
        %v738 = vsel %vm487, %v736, %v737
        %739 = vrot.lane.b32.xlu0 %v738, 1
        %v740 = vpop.permute.xlu0 %739
        %741 = vrot.lane.b32.xlu0 %v737, 1
        %v742 = vpop.permute.xlu0 %741
        %v745 = vadd.f32 %v597, %v740
        %v746 = vadd.f32 %v598, %v742
        %749 = vrot.lane.b32.xlu0 %v630, 126
        %v750 = vpop.permute.xlu0 %749
        %751 = vrot.lane.b32.xlu0 %v631, 126
        %v752 = vpop.permute.xlu0 %751
        %v755 = vadd.f32 %v617, %v750
        %v756 = vadd.f32 %v618, %v752
        %v759 = vrot.slane %v650, 1
        %v760 = vrot.slane %v651, 1
        %v761 = vsel %vm487, %v759, %v760
        %762 = vrot.lane.b32.xlu0 %v761, 1
        %v763 = vpop.permute.xlu0 %762
        %764 = vrot.lane.b32.xlu0 %v760, 1
        %v765 = vpop.permute.xlu0 %764
        %v768 = vadd.f32 %v640, %v763
        %v769 = vadd.f32 %v641, %v765
        %v772 = vrot.slane %v673, 1
        %v773 = vrot.slane %v674, 1
        %v774 = vsel %vm487, %v772, %v773
        %775 = vrot.lane.b32.xlu0 %v774, 1
        %v776 = vpop.permute.xlu0 %775
        %777 = vrot.lane.b32.xlu0 %v773, 1
        %v778 = vpop.permute.xlu0 %777
        %v781 = vadd.f32 %v663, %v776
        %v782 = vadd.f32 %v664, %v778
        %v785 = vrot.slane %v696, 1
        %v786 = vrot.slane %v697, 1
        %v787 = vsel %vm487, %v785, %v786
        %788 = vrot.lane.b32.xlu0 %v787, 127
        %v789 = vpop.permute.xlu0 %788
        %790 = vrot.lane.b32.xlu0 %v786, 127
        %v791 = vpop.permute.xlu0 %790
        %v794 = vadd.f32 %v683, %v789
        %v795 = vadd.f32 %v684, %v791
        %vm798 = vcmask 1040384
        %v799 = vrot.slane %v719, 7
        %v800 = vrot.slane %v720, 7
        %v801 = vsel %vm798, %v799, %v800
        %802 = vrot.lane.b32.xlu0 %v799, 2
        %v803 = vpop.permute.xlu0 %802
        %804 = vrot.lane.b32.xlu0 %v801, 2
        %v805 = vpop.permute.xlu0 %804
        %v808 = vadd.f32 %v709, %v803
        %v809 = vadd.f32 %v710, %v805
        %v812 = vrot.slane %v745, 6
        %v813 = vrot.slane %v746, 6
        %v814 = vsel %vm521, %v812, %v813
        %815 = vrot.lane.b32.xlu0 %v812, 127
        %v816 = vpop.permute.xlu0 %815
        %817 = vrot.lane.b32.xlu0 %v814, 127
        %v818 = vpop.permute.xlu0 %817
        %v821 = vadd.f32 %v732, %v816
        %v822 = vadd.f32 %v733, %v818
        %v825 = vrot.slane %v768, 6
        %v826 = vrot.slane %v769, 6
        %v827 = vsel %vm521, %v825, %v826
        %828 = vrot.lane.b32.xlu0 %v825, 127
        %v829 = vpop.permute.xlu0 %828
        %830 = vrot.lane.b32.xlu0 %v827, 127
        %v831 = vpop.permute.xlu0 %830
        %v834 = vadd.f32 %v755, %v829
        %v835 = vadd.f32 %v756, %v831
        %vm838 = vcmask 1045504
        %v839 = vrot.slane %v808, 2
        %v840 = vrot.slane %v809, 2
        %v841 = vsel %vm838, %v839, %v840
        %842 = vrot.lane.b32.xlu0 %v841, 126
        %v843 = vpop.permute.xlu0 %842
        %844 = vrot.lane.b32.xlu0 %v840, 126
        %v845 = vpop.permute.xlu0 %844
        %v848 = vadd.f32 %v794, %v843
        %v849 = vadd.f32 %v795, %v845
        %852 = vrot.lane.b32.xlu0 %v834, 1
        %v853 = vpop.permute.xlu0 %852
        %854 = vrot.lane.b32.xlu0 %v835, 1
        %v855 = vpop.permute.xlu0 %854
        %v858 = vadd.f32 %v821, %v853
        %v859 = vadd.f32 %v822, %v855
        %v862 = vrot.slane %v858, 2
        %v863 = vrot.slane %v859, 2
        %v864 = vsel %vm838, %v862, %v863
        %865 = vrot.lane.b32.xlu0 %v864, 127
        %v866 = vpop.permute.xlu0 %865
        %867 = vrot.lane.b32.xlu0 %v863, 127
        %v868 = vpop.permute.xlu0 %867
        %v871 = vadd.f32 %v848, %v866
        %v872 = vadd.f32 %v849, %v868
        %v875 = vrot.slane %v781, 1
        %v876 = vrot.slane %v782, 1
        %v877 = vsel %vm487, %v875, %v876
        %878 = vrot.lane.b32.xlu0 %v877, 126
        %v879 = vpop.permute.xlu0 %878
        %880 = vrot.lane.b32.xlu0 %v876, 126
        %v881 = vpop.permute.xlu0 %880
        %v884 = vadd.f32 %v871, %v879
        %v885 = vadd.f32 %v872, %v881
        %v886 = vmax.f32 %v884, 0.0
        %v887 = vmax.f32 %v885, 0.0
        %v888 = vstv %s248
        %v889 = vmul.f32 %v356, %v888
        %v890 = vmul.f32 %v357, %v888
        %v891 = vstv %s249
        %v892 = vmul.f32 %v356, %v891
        %v893 = vmul.f32 %v357, %v891
        %v894 = vstv %s250
        %v895 = vmul.f32 %v356, %v894
        %v896 = vmul.f32 %v357, %v894
        %v897 = vstv %s251
        %v898 = vmul.f32 %v356, %v897
        %v899 = vmul.f32 %v357, %v897
        %v900 = vstv %s252
        %v901 = vmul.f32 %v356, %v900
        %v902 = vmul.f32 %v357, %v900
        %v903 = vstv %s253
        %v904 = vmul.f32 %v356, %v903
        %v905 = vmul.f32 %v357, %v903
        %v906 = vstv %s254
        %v907 = vmul.f32 %v356, %v906
        %v908 = vmul.f32 %v357, %v906
        %v909 = vstv %s255
        %v910 = vmul.f32 %v356, %v909
        %v911 = vmul.f32 %v357, %v909
        %v912 = vstv %s256
        %v913 = vmul.f32 %v356, %v912
        %v914 = vmul.f32 %v357, %v912
        %v915 = vstv %s257
        %v916 = vmul.f32 %v359, %v915
        %v917 = vmul.f32 %v360, %v915
        %v918 = vstv %s258
        %v919 = vmul.f32 %v359, %v918
        %v920 = vmul.f32 %v360, %v918
        %v921 = vstv %s259
        %v922 = vmul.f32 %v359, %v921
        %v923 = vmul.f32 %v360, %v921
        %v924 = vstv %s260
        %v925 = vmul.f32 %v359, %v924
        %v926 = vmul.f32 %v360, %v924
        %v927 = vstv %s261
        %v928 = vmul.f32 %v359, %v927
        %v929 = vmul.f32 %v360, %v927
        %v930 = vstv %s262
        %v931 = vmul.f32 %v359, %v930
        %v932 = vmul.f32 %v360, %v930
        %v933 = vstv %s263
        %v934 = vmul.f32 %v359, %v933
        %v935 = vmul.f32 %v360, %v933
        %v936 = vstv %s264
        %v937 = vmul.f32 %v359, %v936
        %v938 = vmul.f32 %v360, %v936
        %v939 = vstv %s265
        %v940 = vmul.f32 %v359, %v939
        %v941 = vmul.f32 %v360, %v939
        %v942 = vstv %s266
        %v943 = vmul.f32 %v362, %v942
        %v944 = vmul.f32 %v363, %v942
        %v945 = vstv %s267
        %v946 = vmul.f32 %v362, %v945
        %v947 = vmul.f32 %v363, %v945
        %v948 = vstv %s268
        %v949 = vmul.f32 %v362, %v948
        %v950 = vmul.f32 %v363, %v948
        %v951 = vstv %s269
        %v952 = vmul.f32 %v362, %v951
        %v953 = vmul.f32 %v363, %v951
        %v954 = vstv %s270
        %v955 = vmul.f32 %v362, %v954
        %v956 = vmul.f32 %v363, %v954
        %v957 = vstv %s271
        %v958 = vmul.f32 %v362, %v957
        %v959 = vmul.f32 %v363, %v957
        %v960 = vstv %s272
        %v961 = vmul.f32 %v362, %v960
        %v962 = vmul.f32 %v363, %v960
        %v963 = vstv %s273
        %v964 = vmul.f32 %v362, %v963
        %v965 = vmul.f32 %v363, %v963
        %v966 = vstv %s274
        %v967 = vmul.f32 %v362, %v966
        %v968 = vmul.f32 %v363, %v966
        %v969 = vstv %s275
        %v970 = vmul.f32 %v365, %v969
        %v971 = vmul.f32 %v366, %v969
        %v972 = vstv %s276
        %v973 = vmul.f32 %v365, %v972
        %v974 = vmul.f32 %v366, %v972
        %v975 = vstv %s277
        %v976 = vmul.f32 %v365, %v975
        %v977 = vmul.f32 %v366, %v975
        %v978 = vstv %s278
        %v979 = vmul.f32 %v365, %v978
        %v980 = vmul.f32 %v366, %v978
        %v981 = vstv %s279
        %v982 = vmul.f32 %v365, %v981
        %v983 = vmul.f32 %v366, %v981
        %v984 = vstv %s280
        %v985 = vmul.f32 %v365, %v984
        %v986 = vmul.f32 %v366, %v984
        %v987 = vstv %s281
        %v988 = vmul.f32 %v365, %v987
        %v989 = vmul.f32 %v366, %v987
        %v990 = vstv %s282
        %v991 = vmul.f32 %v365, %v990
        %v992 = vmul.f32 %v366, %v990
        %v993 = vstv %s283
        %v994 = vmul.f32 %v365, %v993
        %v995 = vmul.f32 %v366, %v993
        %998 = vrot.lane.b32.xlu0 %v892, 127
        %v999 = vpop.permute.xlu0 %998
        %1000 = vrot.lane.b32.xlu0 %v893, 127
        %v1001 = vpop.permute.xlu0 %1000
        %v1004 = vadd.f32 %v889, %v999
        %v1005 = vadd.f32 %v890, %v1001
        %v1008 = vrot.slane %v898, 1
        %v1009 = vrot.slane %v899, 1
        %v1010 = vsel %vm487, %v1008, %v1009
        %1011 = vrot.lane.b32.xlu0 %v1010, 2
        %v1012 = vpop.permute.xlu0 %1011
        %1013 = vrot.lane.b32.xlu0 %v1009, 2
        %v1014 = vpop.permute.xlu0 %1013
        %v1017 = vadd.f32 %v895, %v1012
        %v1018 = vadd.f32 %v896, %v1014
        %1021 = vrot.lane.b32.xlu0 %v904, 127
        %v1022 = vpop.permute.xlu0 %1021
        %1023 = vrot.lane.b32.xlu0 %v905, 127
        %v1024 = vpop.permute.xlu0 %1023
        %v1027 = vadd.f32 %v901, %v1022
        %v1028 = vadd.f32 %v902, %v1024
        %1031 = vrot.lane.b32.xlu0 %v910, 127
        %v1032 = vpop.permute.xlu0 %1031
        %1033 = vrot.lane.b32.xlu0 %v911, 127
        %v1034 = vpop.permute.xlu0 %1033
        %v1037 = vadd.f32 %v907, %v1032
        %v1038 = vadd.f32 %v908, %v1034
        %v1041 = vrot.slane %v916, 6
        %v1042 = vrot.slane %v917, 6
        %v1043 = vsel %vm521, %v1041, %v1042
        %1044 = vrot.lane.b32.xlu0 %v1041, 2
        %v1045 = vpop.permute.xlu0 %1044
        %1046 = vrot.lane.b32.xlu0 %v1043, 2
        %v1047 = vpop.permute.xlu0 %1046
        %v1050 = vadd.f32 %v913, %v1045
        %v1051 = vadd.f32 %v914, %v1047
        %1054 = vrot.lane.b32.xlu0 %v922, 127
        %v1055 = vpop.permute.xlu0 %1054
        %1056 = vrot.lane.b32.xlu0 %v923, 127
        %v1057 = vpop.permute.xlu0 %1056
        %v1060 = vadd.f32 %v919, %v1055
        %v1061 = vadd.f32 %v920, %v1057
        %1064 = vrot.lane.b32.xlu0 %v928, 127
        %v1065 = vpop.permute.xlu0 %1064
        %1066 = vrot.lane.b32.xlu0 %v929, 127
        %v1067 = vpop.permute.xlu0 %1066
        %v1070 = vadd.f32 %v925, %v1065
        %v1071 = vadd.f32 %v926, %v1067
        %v1074 = vrot.slane %v934, 1
        %v1075 = vrot.slane %v935, 1
        %v1076 = vsel %vm487, %v1074, %v1075
        %1077 = vrot.lane.b32.xlu0 %v1076, 2
        %v1078 = vpop.permute.xlu0 %1077
        %1079 = vrot.lane.b32.xlu0 %v1075, 2
        %v1080 = vpop.permute.xlu0 %1079
        %v1083 = vadd.f32 %v931, %v1078
        %v1084 = vadd.f32 %v932, %v1080
        %1087 = vrot.lane.b32.xlu0 %v940, 127
        %v1088 = vpop.permute.xlu0 %1087
        %1089 = vrot.lane.b32.xlu0 %v941, 127
        %v1090 = vpop.permute.xlu0 %1089
        %v1093 = vadd.f32 %v937, %v1088
        %v1094 = vadd.f32 %v938, %v1090
        %1097 = vrot.lane.b32.xlu0 %v946, 127
        %v1098 = vpop.permute.xlu0 %1097
        %1099 = vrot.lane.b32.xlu0 %v947, 127
        %v1100 = vpop.permute.xlu0 %1099
        %v1103 = vadd.f32 %v943, %v1098
        %v1104 = vadd.f32 %v944, %v1100
        %v1107 = vrot.slane %v952, 1
        %v1108 = vrot.slane %v953, 1
        %v1109 = vsel %vm487, %v1107, %v1108
        %1110 = vrot.lane.b32.xlu0 %v1109, 2
        %v1111 = vpop.permute.xlu0 %1110
        %1112 = vrot.lane.b32.xlu0 %v1108, 2
        %v1113 = vpop.permute.xlu0 %1112
        %v1116 = vadd.f32 %v949, %v1111
        %v1117 = vadd.f32 %v950, %v1113
        %1120 = vrot.lane.b32.xlu0 %v958, 127
        %v1121 = vpop.permute.xlu0 %1120
        %1122 = vrot.lane.b32.xlu0 %v959, 127
        %v1123 = vpop.permute.xlu0 %1122
        %v1126 = vadd.f32 %v955, %v1121
        %v1127 = vadd.f32 %v956, %v1123
        %1130 = vrot.lane.b32.xlu0 %v964, 127
        %v1131 = vpop.permute.xlu0 %1130
        %1132 = vrot.lane.b32.xlu0 %v965, 127
        %v1133 = vpop.permute.xlu0 %1132
        %v1136 = vadd.f32 %v961, %v1131
        %v1137 = vadd.f32 %v962, %v1133
        %v1140 = vrot.slane %v970, 6
        %v1141 = vrot.slane %v971, 6
        %v1142 = vsel %vm521, %v1140, %v1141
        %1143 = vrot.lane.b32.xlu0 %v1140, 2
        %v1144 = vpop.permute.xlu0 %1143
        %1145 = vrot.lane.b32.xlu0 %v1142, 2
        %v1146 = vpop.permute.xlu0 %1145
        %v1149 = vadd.f32 %v967, %v1144
        %v1150 = vadd.f32 %v968, %v1146
        %1153 = vrot.lane.b32.xlu0 %v976, 127
        %v1154 = vpop.permute.xlu0 %1153
        %1155 = vrot.lane.b32.xlu0 %v977, 127
        %v1156 = vpop.permute.xlu0 %1155
        %v1159 = vadd.f32 %v973, %v1154
        %v1160 = vadd.f32 %v974, %v1156
        %1163 = vrot.lane.b32.xlu0 %v982, 127
        %v1164 = vpop.permute.xlu0 %1163
        %1165 = vrot.lane.b32.xlu0 %v983, 127
        %v1166 = vpop.permute.xlu0 %1165
        %v1169 = vadd.f32 %v979, %v1164
        %v1170 = vadd.f32 %v980, %v1166
        %v1173 = vrot.slane %v988, 1
        %v1174 = vrot.slane %v989, 1
        %v1175 = vsel %vm487, %v1173, %v1174
        %1176 = vrot.lane.b32.xlu0 %v1175, 2
        %v1177 = vpop.permute.xlu0 %1176
        %1178 = vrot.lane.b32.xlu0 %v1174, 2
        %v1179 = vpop.permute.xlu0 %1178
        %v1182 = vadd.f32 %v985, %v1177
        %v1183 = vadd.f32 %v986, %v1179
        %1186 = vrot.lane.b32.xlu0 %v994, 127
        %v1187 = vpop.permute.xlu0 %1186
        %1188 = vrot.lane.b32.xlu0 %v995, 127
        %v1189 = vpop.permute.xlu0 %1188
        %v1192 = vadd.f32 %v991, %v1187
        %v1193 = vadd.f32 %v992, %v1189
        %1196 = vrot.lane.b32.xlu0 %v1017, 126
        %v1197 = vpop.permute.xlu0 %1196
        %1198 = vrot.lane.b32.xlu0 %v1018, 126
        %v1199 = vpop.permute.xlu0 %1198
        %v1202 = vadd.f32 %v1004, %v1197
        %v1203 = vadd.f32 %v1005, %v1199
        %v1206 = vrot.slane %v1037, 1
        %v1207 = vrot.slane %v1038, 1
        %v1208 = vsel %vm487, %v1206, %v1207
        %1209 = vrot.lane.b32.xlu0 %v1208, 1
        %v1210 = vpop.permute.xlu0 %1209
        %1211 = vrot.lane.b32.xlu0 %v1207, 1
        %v1212 = vpop.permute.xlu0 %1211
        %v1215 = vadd.f32 %v1027, %v1210
        %v1216 = vadd.f32 %v1028, %v1212
        %v1219 = vrot.slane %v1060, 6
        %v1220 = vrot.slane %v1061, 6
        %v1221 = vsel %vm521, %v1219, %v1220
        %1222 = vrot.lane.b32.xlu0 %v1219, 1
        %v1223 = vpop.permute.xlu0 %1222
        %1224 = vrot.lane.b32.xlu0 %v1221, 1
        %v1225 = vpop.permute.xlu0 %1224
        %v1228 = vadd.f32 %v1050, %v1223
        %v1229 = vadd.f32 %v1051, %v1225
        %1232 = vrot.lane.b32.xlu0 %v1083, 126
        %v1233 = vpop.permute.xlu0 %1232
        %1234 = vrot.lane.b32.xlu0 %v1084, 126
        %v1235 = vpop.permute.xlu0 %1234
        %v1238 = vadd.f32 %v1070, %v1233
        %v1239 = vadd.f32 %v1071, %v1235
        %v1242 = vrot.slane %v1103, 6
        %v1243 = vrot.slane %v1104, 6
        %v1244 = vsel %vm521, %v1242, %v1243
        %1245 = vrot.lane.b32.xlu0 %v1242, 1
        %v1246 = vpop.permute.xlu0 %1245
        %1247 = vrot.lane.b32.xlu0 %v1244, 1
        %v1248 = vpop.permute.xlu0 %1247
        %v1251 = vadd.f32 %v1093, %v1246
        %v1252 = vadd.f32 %v1094, %v1248
        %v1255 = vrot.slane %v1126, 1
        %v1256 = vrot.slane %v1127, 1
        %v1257 = vsel %vm487, %v1255, %v1256
        %1258 = vrot.lane.b32.xlu0 %v1257, 1
        %v1259 = vpop.permute.xlu0 %1258
        %1260 = vrot.lane.b32.xlu0 %v1256, 1
        %v1261 = vpop.permute.xlu0 %1260
        %v1264 = vadd.f32 %v1116, %v1259
        %v1265 = vadd.f32 %v1117, %v1261
        %1268 = vrot.lane.b32.xlu0 %v1149, 126
        %v1269 = vpop.permute.xlu0 %1268
        %1270 = vrot.lane.b32.xlu0 %v1150, 126
        %v1271 = vpop.permute.xlu0 %1270
        %v1274 = vadd.f32 %v1136, %v1269
        %v1275 = vadd.f32 %v1137, %v1271
        %v1278 = vrot.slane %v1169, 1
        %v1279 = vrot.slane %v1170, 1
        %v1280 = vsel %vm487, %v1278, %v1279
        %1281 = vrot.lane.b32.xlu0 %v1280, 1
        %v1282 = vpop.permute.xlu0 %1281
        %1283 = vrot.lane.b32.xlu0 %v1279, 1
        %v1284 = vpop.permute.xlu0 %1283
        %v1287 = vadd.f32 %v1159, %v1282
        %v1288 = vadd.f32 %v1160, %v1284
        %v1291 = vrot.slane %v1192, 1
        %v1292 = vrot.slane %v1193, 1
        %v1293 = vsel %vm487, %v1291, %v1292
        %1294 = vrot.lane.b32.xlu0 %v1293, 1
        %v1295 = vpop.permute.xlu0 %1294
        %1296 = vrot.lane.b32.xlu0 %v1292, 1
        %v1297 = vpop.permute.xlu0 %1296
        %v1300 = vadd.f32 %v1182, %v1295
        %v1301 = vadd.f32 %v1183, %v1297
        %v1304 = vrot.slane %v1215, 1
        %v1305 = vrot.slane %v1216, 1
        %v1306 = vsel %vm487, %v1304, %v1305
        %1307 = vrot.lane.b32.xlu0 %v1306, 127
        %v1308 = vpop.permute.xlu0 %1307
        %1309 = vrot.lane.b32.xlu0 %v1305, 127
        %v1310 = vpop.permute.xlu0 %1309
        %v1313 = vadd.f32 %v1202, %v1308
        %v1314 = vadd.f32 %v1203, %v1310
        %v1317 = vrot.slane %v1238, 7
        %v1318 = vrot.slane %v1239, 7
        %v1319 = vsel %vm798, %v1317, %v1318
        %1320 = vrot.lane.b32.xlu0 %v1317, 2
        %v1321 = vpop.permute.xlu0 %1320
        %1322 = vrot.lane.b32.xlu0 %v1319, 2
        %v1323 = vpop.permute.xlu0 %1322
        %v1326 = vadd.f32 %v1228, %v1321
        %v1327 = vadd.f32 %v1229, %v1323
        %v1330 = vrot.slane %v1264, 6
        %v1331 = vrot.slane %v1265, 6
        %v1332 = vsel %vm521, %v1330, %v1331
        %1333 = vrot.lane.b32.xlu0 %v1330, 127
        %v1334 = vpop.permute.xlu0 %1333
        %1335 = vrot.lane.b32.xlu0 %v1332, 127
        %v1336 = vpop.permute.xlu0 %1335
        %v1339 = vadd.f32 %v1251, %v1334
        %v1340 = vadd.f32 %v1252, %v1336
        %v1343 = vrot.slane %v1287, 6
        %v1344 = vrot.slane %v1288, 6
        %v1345 = vsel %vm521, %v1343, %v1344
        %1346 = vrot.lane.b32.xlu0 %v1343, 127
        %v1347 = vpop.permute.xlu0 %1346
        %1348 = vrot.lane.b32.xlu0 %v1345, 127
        %v1349 = vpop.permute.xlu0 %1348
        %v1352 = vadd.f32 %v1274, %v1347
        %v1353 = vadd.f32 %v1275, %v1349
        %v1356 = vrot.slane %v1326, 2
        %v1357 = vrot.slane %v1327, 2
        %v1358 = vsel %vm838, %v1356, %v1357
        %1359 = vrot.lane.b32.xlu0 %v1358, 126
        %v1360 = vpop.permute.xlu0 %1359
        %1361 = vrot.lane.b32.xlu0 %v1357, 126
        %v1362 = vpop.permute.xlu0 %1361
        %v1365 = vadd.f32 %v1313, %v1360
        %v1366 = vadd.f32 %v1314, %v1362
        %1369 = vrot.lane.b32.xlu0 %v1352, 1
        %v1370 = vpop.permute.xlu0 %1369
        %1371 = vrot.lane.b32.xlu0 %v1353, 1
        %v1372 = vpop.permute.xlu0 %1371
        %v1375 = vadd.f32 %v1339, %v1370
        %v1376 = vadd.f32 %v1340, %v1372
        %v1379 = vrot.slane %v1375, 2
        %v1380 = vrot.slane %v1376, 2
        %v1381 = vsel %vm838, %v1379, %v1380
        %1382 = vrot.lane.b32.xlu0 %v1381, 127
        %v1383 = vpop.permute.xlu0 %1382
        %1384 = vrot.lane.b32.xlu0 %v1380, 127
        %v1385 = vpop.permute.xlu0 %1384
        %v1388 = vadd.f32 %v1365, %v1383
        %v1389 = vadd.f32 %v1366, %v1385
        %v1392 = vrot.slane %v1300, 1
        %v1393 = vrot.slane %v1301, 1
        %v1394 = vsel %vm487, %v1392, %v1393
        %1395 = vrot.lane.b32.xlu0 %v1394, 126
        %v1396 = vpop.permute.xlu0 %1395
        %1397 = vrot.lane.b32.xlu0 %v1393, 126
        %v1398 = vpop.permute.xlu0 %1397
        %v1401 = vadd.f32 %v1388, %v1396
        %v1402 = vadd.f32 %v1389, %v1398
        %v1403 = vmax.f32 %v1401, 0.0
        %v1404 = vmax.f32 %v1402, 0.0
        %v1405 = vstv %s284
        %v1406 = vmul.f32 %v356, %v1405
        %v1407 = vmul.f32 %v357, %v1405
        %v1408 = vstv %s285
        %v1409 = vmul.f32 %v356, %v1408
        %v1410 = vmul.f32 %v357, %v1408
        %v1411 = vstv %s286
        %v1412 = vmul.f32 %v356, %v1411
        %v1413 = vmul.f32 %v357, %v1411
        %v1414 = vstv %s287
        %v1415 = vmul.f32 %v356, %v1414
        %v1416 = vmul.f32 %v357, %v1414
        %v1417 = vstv %s288
        %v1418 = vmul.f32 %v356, %v1417
        %v1419 = vmul.f32 %v357, %v1417
        %v1420 = vstv %s289
        %v1421 = vmul.f32 %v356, %v1420
        %v1422 = vmul.f32 %v357, %v1420
        %v1423 = vstv %s290
        %v1424 = vmul.f32 %v356, %v1423
        %v1425 = vmul.f32 %v357, %v1423
        %v1426 = vstv %s291
        %v1427 = vmul.f32 %v356, %v1426
        %v1428 = vmul.f32 %v357, %v1426
        %v1429 = vstv %s292
        %v1430 = vmul.f32 %v356, %v1429
        %v1431 = vmul.f32 %v357, %v1429
        %v1432 = vstv %s293
        %v1433 = vmul.f32 %v359, %v1432
        %v1434 = vmul.f32 %v360, %v1432
        %v1435 = vstv %s294
        %v1436 = vmul.f32 %v359, %v1435
        %v1437 = vmul.f32 %v360, %v1435
        %v1438 = vstv %s295
        %v1439 = vmul.f32 %v359, %v1438
        %v1440 = vmul.f32 %v360, %v1438
        %v1441 = vstv %s296
        %v1442 = vmul.f32 %v359, %v1441
        %v1443 = vmul.f32 %v360, %v1441
        %v1444 = vstv %s297
        %v1445 = vmul.f32 %v359, %v1444
        %v1446 = vmul.f32 %v360, %v1444
        %v1447 = vstv %s298
        %v1448 = vmul.f32 %v359, %v1447
        %v1449 = vmul.f32 %v360, %v1447
        %v1450 = vstv %s299
        %v1451 = vmul.f32 %v359, %v1450
        %v1452 = vmul.f32 %v360, %v1450
        %v1453 = vstv %s300
        %v1454 = vmul.f32 %v359, %v1453
        %v1455 = vmul.f32 %v360, %v1453
        %v1456 = vstv %s301
        %v1457 = vmul.f32 %v359, %v1456
        %v1458 = vmul.f32 %v360, %v1456
        %v1459 = vstv %s302
        %v1460 = vmul.f32 %v362, %v1459
        %v1461 = vmul.f32 %v363, %v1459
        %v1462 = vstv %s303
        %v1463 = vmul.f32 %v362, %v1462
        %v1464 = vmul.f32 %v363, %v1462
        %v1465 = vstv %s304
        %v1466 = vmul.f32 %v362, %v1465
        %v1467 = vmul.f32 %v363, %v1465
        %v1468 = vstv %s305
        %v1469 = vmul.f32 %v362, %v1468
        %v1470 = vmul.f32 %v363, %v1468
        %v1471 = vstv %s306
        %v1472 = vmul.f32 %v362, %v1471
        %v1473 = vmul.f32 %v363, %v1471
        %v1474 = vstv %s307
        %v1475 = vmul.f32 %v362, %v1474
        %v1476 = vmul.f32 %v363, %v1474
        %v1477 = vstv %s308
        %v1478 = vmul.f32 %v362, %v1477
        %v1479 = vmul.f32 %v363, %v1477
        %v1480 = vstv %s309
        %v1481 = vmul.f32 %v362, %v1480
        %v1482 = vmul.f32 %v363, %v1480
        %v1483 = vstv %s310
        %v1484 = vmul.f32 %v362, %v1483
        %v1485 = vmul.f32 %v363, %v1483
        %v1486 = vstv %s311
        %v1487 = vmul.f32 %v365, %v1486
        %v1488 = vmul.f32 %v366, %v1486
        %v1489 = vstv %s312
        %v1490 = vmul.f32 %v365, %v1489
        %v1491 = vmul.f32 %v366, %v1489
        %v1492 = vstv %s313
        %v1493 = vmul.f32 %v365, %v1492
        %v1494 = vmul.f32 %v366, %v1492
        %v1495 = vstv %s314
        %v1496 = vmul.f32 %v365, %v1495
        %v1497 = vmul.f32 %v366, %v1495
        %v1498 = vstv %s315
        %v1499 = vmul.f32 %v365, %v1498
        %v1500 = vmul.f32 %v366, %v1498
        %v1501 = vstv %s316
        %v1502 = vmul.f32 %v365, %v1501
        %v1503 = vmul.f32 %v366, %v1501
        %v1504 = vstv %s317
        %v1505 = vmul.f32 %v365, %v1504
        %v1506 = vmul.f32 %v366, %v1504
        %v1507 = vstv %s318
        %v1508 = vmul.f32 %v365, %v1507
        %v1509 = vmul.f32 %v366, %v1507
        %v1510 = vstv %s319
        %v1511 = vmul.f32 %v365, %v1510
        %v1512 = vmul.f32 %v366, %v1510
        %1515 = vrot.lane.b32.xlu0 %v1409, 127
        %v1516 = vpop.permute.xlu0 %1515
        %1517 = vrot.lane.b32.xlu0 %v1410, 127
        %v1518 = vpop.permute.xlu0 %1517
        %v1521 = vadd.f32 %v1406, %v1516
        %v1522 = vadd.f32 %v1407, %v1518
        %v1525 = vrot.slane %v1415, 1
        %v1526 = vrot.slane %v1416, 1
        %v1527 = vsel %vm487, %v1525, %v1526
        %1528 = vrot.lane.b32.xlu0 %v1527, 2
        %v1529 = vpop.permute.xlu0 %1528
        %1530 = vrot.lane.b32.xlu0 %v1526, 2
        %v1531 = vpop.permute.xlu0 %1530
        %v1534 = vadd.f32 %v1412, %v1529
        %v1535 = vadd.f32 %v1413, %v1531
        %1538 = vrot.lane.b32.xlu0 %v1421, 127
        %v1539 = vpop.permute.xlu0 %1538
        %1540 = vrot.lane.b32.xlu0 %v1422, 127
        %v1541 = vpop.permute.xlu0 %1540
        %v1544 = vadd.f32 %v1418, %v1539
        %v1545 = vadd.f32 %v1419, %v1541
        %1548 = vrot.lane.b32.xlu0 %v1427, 127
        %v1549 = vpop.permute.xlu0 %1548
        %1550 = vrot.lane.b32.xlu0 %v1428, 127
        %v1551 = vpop.permute.xlu0 %1550
        %v1554 = vadd.f32 %v1424, %v1549
        %v1555 = vadd.f32 %v1425, %v1551
        %v1558 = vrot.slane %v1433, 6
        %v1559 = vrot.slane %v1434, 6
        %v1560 = vsel %vm521, %v1558, %v1559
        %1561 = vrot.lane.b32.xlu0 %v1558, 2
        %v1562 = vpop.permute.xlu0 %1561
        %1563 = vrot.lane.b32.xlu0 %v1560, 2
        %v1564 = vpop.permute.xlu0 %1563
        %v1567 = vadd.f32 %v1430, %v1562
        %v1568 = vadd.f32 %v1431, %v1564
        %1571 = vrot.lane.b32.xlu0 %v1439, 127
        %v1572 = vpop.permute.xlu0 %1571
        %1573 = vrot.lane.b32.xlu0 %v1440, 127
        %v1574 = vpop.permute.xlu0 %1573
        %v1577 = vadd.f32 %v1436, %v1572
        %v1578 = vadd.f32 %v1437, %v1574
        %1581 = vrot.lane.b32.xlu0 %v1445, 127
        %v1582 = vpop.permute.xlu0 %1581
        %1583 = vrot.lane.b32.xlu0 %v1446, 127
        %v1584 = vpop.permute.xlu0 %1583
        %v1587 = vadd.f32 %v1442, %v1582
        %v1588 = vadd.f32 %v1443, %v1584
        %v1591 = vrot.slane %v1451, 1
        %v1592 = vrot.slane %v1452, 1
        %v1593 = vsel %vm487, %v1591, %v1592
        %1594 = vrot.lane.b32.xlu0 %v1593, 2
        %v1595 = vpop.permute.xlu0 %1594
        %1596 = vrot.lane.b32.xlu0 %v1592, 2
        %v1597 = vpop.permute.xlu0 %1596
        %v1600 = vadd.f32 %v1448, %v1595
        %v1601 = vadd.f32 %v1449, %v1597
        %1604 = vrot.lane.b32.xlu0 %v1457, 127
        %v1605 = vpop.permute.xlu0 %1604
        %1606 = vrot.lane.b32.xlu0 %v1458, 127
        %v1607 = vpop.permute.xlu0 %1606
        %v1610 = vadd.f32 %v1454, %v1605
        %v1611 = vadd.f32 %v1455, %v1607
        %1614 = vrot.lane.b32.xlu0 %v1463, 127
        %v1615 = vpop.permute.xlu0 %1614
        %1616 = vrot.lane.b32.xlu0 %v1464, 127
        %v1617 = vpop.permute.xlu0 %1616
        %v1620 = vadd.f32 %v1460, %v1615
        %v1621 = vadd.f32 %v1461, %v1617
        %v1624 = vrot.slane %v1469, 1
        %v1625 = vrot.slane %v1470, 1
        %v1626 = vsel %vm487, %v1624, %v1625
        %1627 = vrot.lane.b32.xlu0 %v1626, 2
        %v1628 = vpop.permute.xlu0 %1627
        %1629 = vrot.lane.b32.xlu0 %v1625, 2
        %v1630 = vpop.permute.xlu0 %1629
        %v1633 = vadd.f32 %v1466, %v1628
        %v1634 = vadd.f32 %v1467, %v1630
        %1637 = vrot.lane.b32.xlu0 %v1475, 127
        %v1638 = vpop.permute.xlu0 %1637
        %1639 = vrot.lane.b32.xlu0 %v1476, 127
        %v1640 = vpop.permute.xlu0 %1639
        %v1643 = vadd.f32 %v1472, %v1638
        %v1644 = vadd.f32 %v1473, %v1640
        %1647 = vrot.lane.b32.xlu0 %v1481, 127
        %v1648 = vpop.permute.xlu0 %1647
        %1649 = vrot.lane.b32.xlu0 %v1482, 127
        %v1650 = vpop.permute.xlu0 %1649
        %v1653 = vadd.f32 %v1478, %v1648
        %v1654 = vadd.f32 %v1479, %v1650
        %v1657 = vrot.slane %v1487, 6
        %v1658 = vrot.slane %v1488, 6
        %v1659 = vsel %vm521, %v1657, %v1658
        %1660 = vrot.lane.b32.xlu0 %v1657, 2
        %v1661 = vpop.permute.xlu0 %1660
        %1662 = vrot.lane.b32.xlu0 %v1659, 2
        %v1663 = vpop.permute.xlu0 %1662
        %v1666 = vadd.f32 %v1484, %v1661
        %v1667 = vadd.f32 %v1485, %v1663
        %1670 = vrot.lane.b32.xlu0 %v1493, 127
        %v1671 = vpop.permute.xlu0 %1670
        %1672 = vrot.lane.b32.xlu0 %v1494, 127
        %v1673 = vpop.permute.xlu0 %1672
        %v1676 = vadd.f32 %v1490, %v1671
        %v1677 = vadd.f32 %v1491, %v1673
        %1680 = vrot.lane.b32.xlu0 %v1499, 127
        %v1681 = vpop.permute.xlu0 %1680
        %1682 = vrot.lane.b32.xlu0 %v1500, 127
        %v1683 = vpop.permute.xlu0 %1682
        %v1686 = vadd.f32 %v1496, %v1681
        %v1687 = vadd.f32 %v1497, %v1683
        %v1690 = vrot.slane %v1505, 1
        %v1691 = vrot.slane %v1506, 1
        %v1692 = vsel %vm487, %v1690, %v1691
        %1693 = vrot.lane.b32.xlu0 %v1692, 2
        %v1694 = vpop.permute.xlu0 %1693
        %1695 = vrot.lane.b32.xlu0 %v1691, 2
        %v1696 = vpop.permute.xlu0 %1695
        %v1699 = vadd.f32 %v1502, %v1694
        %v1700 = vadd.f32 %v1503, %v1696
        %1703 = vrot.lane.b32.xlu0 %v1511, 127
        %v1704 = vpop.permute.xlu0 %1703
        %1705 = vrot.lane.b32.xlu0 %v1512, 127
        %v1706 = vpop.permute.xlu0 %1705
        %v1709 = vadd.f32 %v1508, %v1704
        %v1710 = vadd.f32 %v1509, %v1706
        %1713 = vrot.lane.b32.xlu0 %v1534, 126
        %v1714 = vpop.permute.xlu0 %1713
        %1715 = vrot.lane.b32.xlu0 %v1535, 126
        %v1716 = vpop.permute.xlu0 %1715
        %v1719 = vadd.f32 %v1521, %v1714
        %v1720 = vadd.f32 %v1522, %v1716
        %v1723 = vrot.slane %v1554, 1
        %v1724 = vrot.slane %v1555, 1
        %v1725 = vsel %vm487, %v1723, %v1724
        %1726 = vrot.lane.b32.xlu0 %v1725, 1
        %v1727 = vpop.permute.xlu0 %1726
        %1728 = vrot.lane.b32.xlu0 %v1724, 1
        %v1729 = vpop.permute.xlu0 %1728
        %v1732 = vadd.f32 %v1544, %v1727
        %v1733 = vadd.f32 %v1545, %v1729
        %v1736 = vrot.slane %v1577, 6
        %v1737 = vrot.slane %v1578, 6
        %v1738 = vsel %vm521, %v1736, %v1737
        %1739 = vrot.lane.b32.xlu0 %v1736, 1
        %v1740 = vpop.permute.xlu0 %1739
        %1741 = vrot.lane.b32.xlu0 %v1738, 1
        %v1742 = vpop.permute.xlu0 %1741
        %v1745 = vadd.f32 %v1567, %v1740
        %v1746 = vadd.f32 %v1568, %v1742
        %1749 = vrot.lane.b32.xlu0 %v1600, 126
        %v1750 = vpop.permute.xlu0 %1749
        %1751 = vrot.lane.b32.xlu0 %v1601, 126
        %v1752 = vpop.permute.xlu0 %1751
        %v1755 = vadd.f32 %v1587, %v1750
        %v1756 = vadd.f32 %v1588, %v1752
        %v1759 = vrot.slane %v1620, 6
        %v1760 = vrot.slane %v1621, 6
        %v1761 = vsel %vm521, %v1759, %v1760
        %1762 = vrot.lane.b32.xlu0 %v1759, 1
        %v1763 = vpop.permute.xlu0 %1762
        %1764 = vrot.lane.b32.xlu0 %v1761, 1
        %v1765 = vpop.permute.xlu0 %1764
        %v1768 = vadd.f32 %v1610, %v1763
        %v1769 = vadd.f32 %v1611, %v1765
        %v1772 = vrot.slane %v1643, 1
        %v1773 = vrot.slane %v1644, 1
        %v1774 = vsel %vm487, %v1772, %v1773
        %1775 = vrot.lane.b32.xlu0 %v1774, 1
        %v1776 = vpop.permute.xlu0 %1775
        %1777 = vrot.lane.b32.xlu0 %v1773, 1
        %v1778 = vpop.permute.xlu0 %1777
        %v1781 = vadd.f32 %v1633, %v1776
        %v1782 = vadd.f32 %v1634, %v1778
        %1785 = vrot.lane.b32.xlu0 %v1666, 126
        %v1786 = vpop.permute.xlu0 %1785
        %1787 = vrot.lane.b32.xlu0 %v1667, 126
        %v1788 = vpop.permute.xlu0 %1787
        %v1791 = vadd.f32 %v1653, %v1786
        %v1792 = vadd.f32 %v1654, %v1788
        %v1795 = vrot.slane %v1686, 1
        %v1796 = vrot.slane %v1687, 1
        %v1797 = vsel %vm487, %v1795, %v1796
        %1798 = vrot.lane.b32.xlu0 %v1797, 1
        %v1799 = vpop.permute.xlu0 %1798
        %1800 = vrot.lane.b32.xlu0 %v1796, 1
        %v1801 = vpop.permute.xlu0 %1800
        %v1804 = vadd.f32 %v1676, %v1799
        %v1805 = vadd.f32 %v1677, %v1801
        %v1808 = vrot.slane %v1709, 1
        %v1809 = vrot.slane %v1710, 1
        %v1810 = vsel %vm487, %v1808, %v1809
        %1811 = vrot.lane.b32.xlu0 %v1810, 1
        %v1812 = vpop.permute.xlu0 %1811
        %1813 = vrot.lane.b32.xlu0 %v1809, 1
        %v1814 = vpop.permute.xlu0 %1813
        %v1817 = vadd.f32 %v1699, %v1812
        %v1818 = vadd.f32 %v1700, %v1814
        %v1821 = vrot.slane %v1732, 1
        %v1822 = vrot.slane %v1733, 1
        %v1823 = vsel %vm487, %v1821, %v1822
        %1824 = vrot.lane.b32.xlu0 %v1823, 127
        %v1825 = vpop.permute.xlu0 %1824
        %1826 = vrot.lane.b32.xlu0 %v1822, 127
        %v1827 = vpop.permute.xlu0 %1826
        %v1830 = vadd.f32 %v1719, %v1825
        %v1831 = vadd.f32 %v1720, %v1827
        %v1834 = vrot.slane %v1755, 7
        %v1835 = vrot.slane %v1756, 7
        %v1836 = vsel %vm798, %v1834, %v1835
        %1837 = vrot.lane.b32.xlu0 %v1834, 2
        %v1838 = vpop.permute.xlu0 %1837
        %1839 = vrot.lane.b32.xlu0 %v1836, 2
        %v1840 = vpop.permute.xlu0 %1839
        %v1843 = vadd.f32 %v1745, %v1838
        %v1844 = vadd.f32 %v1746, %v1840
        %v1847 = vrot.slane %v1781, 6
        %v1848 = vrot.slane %v1782, 6
        %v1849 = vsel %vm521, %v1847, %v1848
        %1850 = vrot.lane.b32.xlu0 %v1847, 127
        %v1851 = vpop.permute.xlu0 %1850
        %1852 = vrot.lane.b32.xlu0 %v1849, 127
        %v1853 = vpop.permute.xlu0 %1852
        %v1856 = vadd.f32 %v1768, %v1851
        %v1857 = vadd.f32 %v1769, %v1853
        %v1860 = vrot.slane %v1804, 6
        %v1861 = vrot.slane %v1805, 6
        %v1862 = vsel %vm521, %v1860, %v1861
        %1863 = vrot.lane.b32.xlu0 %v1860, 127
        %v1864 = vpop.permute.xlu0 %1863
        %1865 = vrot.lane.b32.xlu0 %v1862, 127
        %v1866 = vpop.permute.xlu0 %1865
        %v1869 = vadd.f32 %v1791, %v1864
        %v1870 = vadd.f32 %v1792, %v1866
        %v1873 = vrot.slane %v1843, 2
        %v1874 = vrot.slane %v1844, 2
        %v1875 = vsel %vm838, %v1873, %v1874
        %1876 = vrot.lane.b32.xlu0 %v1875, 126
        %v1877 = vpop.permute.xlu0 %1876
        %1878 = vrot.lane.b32.xlu0 %v1874, 126
        %v1879 = vpop.permute.xlu0 %1878
        %v1882 = vadd.f32 %v1830, %v1877
        %v1883 = vadd.f32 %v1831, %v1879
        %1886 = vrot.lane.b32.xlu0 %v1869, 1
        %v1887 = vpop.permute.xlu0 %1886
        %1888 = vrot.lane.b32.xlu0 %v1870, 1
        %v1889 = vpop.permute.xlu0 %1888
        %v1892 = vadd.f32 %v1856, %v1887
        %v1893 = vadd.f32 %v1857, %v1889
        %v1896 = vrot.slane %v1892, 2
        %v1897 = vrot.slane %v1893, 2
        %v1898 = vsel %vm838, %v1896, %v1897
        %1899 = vrot.lane.b32.xlu0 %v1898, 127
        %v1900 = vpop.permute.xlu0 %1899
        %1901 = vrot.lane.b32.xlu0 %v1897, 127
        %v1902 = vpop.permute.xlu0 %1901
        %v1905 = vadd.f32 %v1882, %v1900
        %v1906 = vadd.f32 %v1883, %v1902
        %v1909 = vrot.slane %v1817, 1
        %v1910 = vrot.slane %v1818, 1
        %v1911 = vsel %vm487, %v1909, %v1910
        %1912 = vrot.lane.b32.xlu0 %v1911, 126
        %v1913 = vpop.permute.xlu0 %1912
        %1914 = vrot.lane.b32.xlu0 %v1910, 126
        %v1915 = vpop.permute.xlu0 %1914
        %v1918 = vadd.f32 %v1905, %v1913
        %v1919 = vadd.f32 %v1906, %v1915
        %v1920 = vmax.f32 %v1918, 0.0
        %v1921 = vmax.f32 %v1919, 0.0
        %v1922 = vstv %s320
        %v1923 = vmul.f32 %v356, %v1922
        %v1924 = vmul.f32 %v357, %v1922
        %v1925 = vstv %s321
        %v1926 = vmul.f32 %v356, %v1925
        %v1927 = vmul.f32 %v357, %v1925
        %v1928 = vstv %s322
        %v1929 = vmul.f32 %v356, %v1928
        %v1930 = vmul.f32 %v357, %v1928
        %v1931 = vstv %s323
        %v1932 = vmul.f32 %v356, %v1931
        %v1933 = vmul.f32 %v357, %v1931
        %v1934 = vstv %s324
        %v1935 = vmul.f32 %v356, %v1934
        %v1936 = vmul.f32 %v357, %v1934
        %v1937 = vstv %s325
        %v1938 = vmul.f32 %v356, %v1937
        %v1939 = vmul.f32 %v357, %v1937
        %v1940 = vstv %s326
        %v1941 = vmul.f32 %v356, %v1940
        %v1942 = vmul.f32 %v357, %v1940
        %v1943 = vstv %s327
        %v1944 = vmul.f32 %v356, %v1943
        %v1945 = vmul.f32 %v357, %v1943
        %v1946 = vstv %s328
        %v1947 = vmul.f32 %v356, %v1946
        %v1948 = vmul.f32 %v357, %v1946
        %v1949 = vstv %s329
        %v1950 = vmul.f32 %v359, %v1949
        %v1951 = vmul.f32 %v360, %v1949
        %v1952 = vstv %s330
        %v1953 = vmul.f32 %v359, %v1952
        %v1954 = vmul.f32 %v360, %v1952
        %v1955 = vstv %s331
        %v1956 = vmul.f32 %v359, %v1955
        %v1957 = vmul.f32 %v360, %v1955
        %v1958 = vstv %s332
        %v1959 = vmul.f32 %v359, %v1958
        %v1960 = vmul.f32 %v360, %v1958
        %v1961 = vstv %s333
        %v1962 = vmul.f32 %v359, %v1961
        %v1963 = vmul.f32 %v360, %v1961
        %v1964 = vstv %s334
        %v1965 = vmul.f32 %v359, %v1964
        %v1966 = vmul.f32 %v360, %v1964
        %v1967 = vstv %s335
        %v1968 = vmul.f32 %v359, %v1967
        %v1969 = vmul.f32 %v360, %v1967
        %v1970 = vstv %s336
        %v1971 = vmul.f32 %v359, %v1970
        %v1972 = vmul.f32 %v360, %v1970
        %v1973 = vstv %s337
        %v1974 = vmul.f32 %v359, %v1973
        %v1975 = vmul.f32 %v360, %v1973
        %v1976 = vstv %s338
        %v1977 = vmul.f32 %v362, %v1976
        %v1978 = vmul.f32 %v363, %v1976
        %v1979 = vstv %s339
        %v1980 = vmul.f32 %v362, %v1979
        %v1981 = vmul.f32 %v363, %v1979
        %v1982 = vstv %s340
        %v1983 = vmul.f32 %v362, %v1982
        %v1984 = vmul.f32 %v363, %v1982
        %v1985 = vstv %s341
        %v1986 = vmul.f32 %v362, %v1985
        %v1987 = vmul.f32 %v363, %v1985
        %v1988 = vstv %s342
        %v1989 = vmul.f32 %v362, %v1988
        %v1990 = vmul.f32 %v363, %v1988
        %v1991 = vstv %s343
        %v1992 = vmul.f32 %v362, %v1991
        %v1993 = vmul.f32 %v363, %v1991
        %v1994 = vstv %s344
        %v1995 = vmul.f32 %v362, %v1994
        %v1996 = vmul.f32 %v363, %v1994
        %v1997 = vstv %s345
        %v1998 = vmul.f32 %v362, %v1997
        %v1999 = vmul.f32 %v363, %v1997
        %v2000 = vstv %s346
        %v2001 = vmul.f32 %v362, %v2000
        %v2002 = vmul.f32 %v363, %v2000
        %v2003 = vstv %s347
        %v2004 = vmul.f32 %v365, %v2003
        %v2005 = vmul.f32 %v366, %v2003
        %v2006 = vstv %s348
        %v2007 = vmul.f32 %v365, %v2006
        %v2008 = vmul.f32 %v366, %v2006
        %v2009 = vstv %s349
        %v2010 = vmul.f32 %v365, %v2009
        %v2011 = vmul.f32 %v366, %v2009
        %v2012 = vstv %s350
        %v2013 = vmul.f32 %v365, %v2012
        %v2014 = vmul.f32 %v366, %v2012
        %v2015 = vstv %s351
        %v2016 = vmul.f32 %v365, %v2015
        %v2017 = vmul.f32 %v366, %v2015
        %v2018 = vstv %s352
        %v2019 = vmul.f32 %v365, %v2018
        %v2020 = vmul.f32 %v366, %v2018
        %v2021 = vstv %s353
        %v2022 = vmul.f32 %v365, %v2021
        %v2023 = vmul.f32 %v366, %v2021
        %v2024 = vstv %s354
        %v2025 = vmul.f32 %v365, %v2024
        %v2026 = vmul.f32 %v366, %v2024
        %v2027 = vstv %s355
        %v2028 = vmul.f32 %v365, %v2027
        %v2029 = vmul.f32 %v366, %v2027
        %2032 = vrot.lane.b32.xlu0 %v1926, 127
        %v2033 = vpop.permute.xlu0 %2032
        %2034 = vrot.lane.b32.xlu0 %v1927, 127
        %v2035 = vpop.permute.xlu0 %2034
        %v2038 = vadd.f32 %v1923, %v2033
        %v2039 = vadd.f32 %v1924, %v2035
        %v2042 = vrot.slane %v1932, 1
        %v2043 = vrot.slane %v1933, 1
        %v2044 = vsel %vm487, %v2042, %v2043
        %2045 = vrot.lane.b32.xlu0 %v2044, 2
        %v2046 = vpop.permute.xlu0 %2045
        %2047 = vrot.lane.b32.xlu0 %v2043, 2
        %v2048 = vpop.permute.xlu0 %2047
        %v2051 = vadd.f32 %v1929, %v2046
        %v2052 = vadd.f32 %v1930, %v2048
        %2055 = vrot.lane.b32.xlu0 %v1938, 127
        %v2056 = vpop.permute.xlu0 %2055
        %2057 = vrot.lane.b32.xlu0 %v1939, 127
        %v2058 = vpop.permute.xlu0 %2057
        %v2061 = vadd.f32 %v1935, %v2056
        %v2062 = vadd.f32 %v1936, %v2058
        %2065 = vrot.lane.b32.xlu0 %v1944, 127
        %v2066 = vpop.permute.xlu0 %2065
        %2067 = vrot.lane.b32.xlu0 %v1945, 127
        %v2068 = vpop.permute.xlu0 %2067
        %v2071 = vadd.f32 %v1941, %v2066
        %v2072 = vadd.f32 %v1942, %v2068
        %v2075 = vrot.slane %v1950, 6
        %v2076 = vrot.slane %v1951, 6
        %v2077 = vsel %vm521, %v2075, %v2076
        %2078 = vrot.lane.b32.xlu0 %v2075, 2
        %v2079 = vpop.permute.xlu0 %2078
        %2080 = vrot.lane.b32.xlu0 %v2077, 2
        %v2081 = vpop.permute.xlu0 %2080
        %v2084 = vadd.f32 %v1947, %v2079
        %v2085 = vadd.f32 %v1948, %v2081
        %2088 = vrot.lane.b32.xlu0 %v1956, 127
        %v2089 = vpop.permute.xlu0 %2088
        %2090 = vrot.lane.b32.xlu0 %v1957, 127
        %v2091 = vpop.permute.xlu0 %2090
        %v2094 = vadd.f32 %v1953, %v2089
        %v2095 = vadd.f32 %v1954, %v2091
        %2098 = vrot.lane.b32.xlu0 %v1962, 127
        %v2099 = vpop.permute.xlu0 %2098
        %2100 = vrot.lane.b32.xlu0 %v1963, 127
        %v2101 = vpop.permute.xlu0 %2100
        %v2104 = vadd.f32 %v1959, %v2099
        %v2105 = vadd.f32 %v1960, %v2101
        %v2108 = vrot.slane %v1968, 1
        %v2109 = vrot.slane %v1969, 1
        %v2110 = vsel %vm487, %v2108, %v2109
        %2111 = vrot.lane.b32.xlu0 %v2110, 2
        %v2112 = vpop.permute.xlu0 %2111
        %2113 = vrot.lane.b32.xlu0 %v2109, 2
        %v2114 = vpop.permute.xlu0 %2113
        %v2117 = vadd.f32 %v1965, %v2112
        %v2118 = vadd.f32 %v1966, %v2114
        %2121 = vrot.lane.b32.xlu0 %v1974, 127
        %v2122 = vpop.permute.xlu0 %2121
        %2123 = vrot.lane.b32.xlu0 %v1975, 127
        %v2124 = vpop.permute.xlu0 %2123
        %v2127 = vadd.f32 %v1971, %v2122
        %v2128 = vadd.f32 %v1972, %v2124
        %2131 = vrot.lane.b32.xlu0 %v1980, 127
        %v2132 = vpop.permute.xlu0 %2131
        %2133 = vrot.lane.b32.xlu0 %v1981, 127
        %v2134 = vpop.permute.xlu0 %2133
        %v2137 = vadd.f32 %v1977, %v2132
        %v2138 = vadd.f32 %v1978, %v2134
        %v2141 = vrot.slane %v1986, 1
        %v2142 = vrot.slane %v1987, 1
        %v2143 = vsel %vm487, %v2141, %v2142
        %2144 = vrot.lane.b32.xlu0 %v2143, 2
        %v2145 = vpop.permute.xlu0 %2144
        %2146 = vrot.lane.b32.xlu0 %v2142, 2
        %v2147 = vpop.permute.xlu0 %2146
        %v2150 = vadd.f32 %v1983, %v2145
        %v2151 = vadd.f32 %v1984, %v2147
        %2154 = vrot.lane.b32.xlu0 %v1992, 127
        %v2155 = vpop.permute.xlu0 %2154
        %2156 = vrot.lane.b32.xlu0 %v1993, 127
        %v2157 = vpop.permute.xlu0 %2156
        %v2160 = vadd.f32 %v1989, %v2155
        %v2161 = vadd.f32 %v1990, %v2157
        %2164 = vrot.lane.b32.xlu0 %v1998, 127
        %v2165 = vpop.permute.xlu0 %2164
        %2166 = vrot.lane.b32.xlu0 %v1999, 127
        %v2167 = vpop.permute.xlu0 %2166
        %v2170 = vadd.f32 %v1995, %v2165
        %v2171 = vadd.f32 %v1996, %v2167
        %v2174 = vrot.slane %v2004, 6
        %v2175 = vrot.slane %v2005, 6
        %v2176 = vsel %vm521, %v2174, %v2175
        %2177 = vrot.lane.b32.xlu0 %v2174, 2
        %v2178 = vpop.permute.xlu0 %2177
        %2179 = vrot.lane.b32.xlu0 %v2176, 2
        %v2180 = vpop.permute.xlu0 %2179
        %v2183 = vadd.f32 %v2001, %v2178
        %v2184 = vadd.f32 %v2002, %v2180
        %2187 = vrot.lane.b32.xlu0 %v2010, 127
        %v2188 = vpop.permute.xlu0 %2187
        %2189 = vrot.lane.b32.xlu0 %v2011, 127
        %v2190 = vpop.permute.xlu0 %2189
        %v2193 = vadd.f32 %v2007, %v2188
        %v2194 = vadd.f32 %v2008, %v2190
        %2197 = vrot.lane.b32.xlu0 %v2016, 127
        %v2198 = vpop.permute.xlu0 %2197
        %2199 = vrot.lane.b32.xlu0 %v2017, 127
        %v2200 = vpop.permute.xlu0 %2199
        %v2203 = vadd.f32 %v2013, %v2198
        %v2204 = vadd.f32 %v2014, %v2200
        %v2207 = vrot.slane %v2022, 1
        %v2208 = vrot.slane %v2023, 1
        %v2209 = vsel %vm487, %v2207, %v2208
        %2210 = vrot.lane.b32.xlu0 %v2209, 2
        %v2211 = vpop.permute.xlu0 %2210
        %2212 = vrot.lane.b32.xlu0 %v2208, 2
        %v2213 = vpop.permute.xlu0 %2212
        %v2216 = vadd.f32 %v2019, %v2211
        %v2217 = vadd.f32 %v2020, %v2213
        %2220 = vrot.lane.b32.xlu0 %v2028, 127
        %v2221 = vpop.permute.xlu0 %2220
        %2222 = vrot.lane.b32.xlu0 %v2029, 127
        %v2223 = vpop.permute.xlu0 %2222
        %v2226 = vadd.f32 %v2025, %v2221
        %v2227 = vadd.f32 %v2026, %v2223
        %2230 = vrot.lane.b32.xlu0 %v2051, 126
        %v2231 = vpop.permute.xlu0 %2230
        %2232 = vrot.lane.b32.xlu0 %v2052, 126
        %v2233 = vpop.permute.xlu0 %2232
        %v2236 = vadd.f32 %v2038, %v2231
        %v2237 = vadd.f32 %v2039, %v2233
        %v2240 = vrot.slane %v2071, 1
        %v2241 = vrot.slane %v2072, 1
        %v2242 = vsel %vm487, %v2240, %v2241
        %2243 = vrot.lane.b32.xlu0 %v2242, 1
        %v2244 = vpop.permute.xlu0 %2243
        %2245 = vrot.lane.b32.xlu0 %v2241, 1
        %v2246 = vpop.permute.xlu0 %2245
        %v2249 = vadd.f32 %v2061, %v2244
        %v2250 = vadd.f32 %v2062, %v2246
        %v2253 = vrot.slane %v2094, 6
        %v2254 = vrot.slane %v2095, 6
        %v2255 = vsel %vm521, %v2253, %v2254
        %2256 = vrot.lane.b32.xlu0 %v2253, 1
        %v2257 = vpop.permute.xlu0 %2256
        %2258 = vrot.lane.b32.xlu0 %v2255, 1
        %v2259 = vpop.permute.xlu0 %2258
        %v2262 = vadd.f32 %v2084, %v2257
        %v2263 = vadd.f32 %v2085, %v2259
        %2266 = vrot.lane.b32.xlu0 %v2117, 126
        %v2267 = vpop.permute.xlu0 %2266
        %2268 = vrot.lane.b32.xlu0 %v2118, 126
        %v2269 = vpop.permute.xlu0 %2268
        %v2272 = vadd.f32 %v2104, %v2267
        %v2273 = vadd.f32 %v2105, %v2269
        %v2276 = vrot.slane %v2137, 6
        %v2277 = vrot.slane %v2138, 6
        %v2278 = vsel %vm521, %v2276, %v2277
        %2279 = vrot.lane.b32.xlu0 %v2276, 1
        %v2280 = vpop.permute.xlu0 %2279
        %2281 = vrot.lane.b32.xlu0 %v2278, 1
        %v2282 = vpop.permute.xlu0 %2281
        %v2285 = vadd.f32 %v2127, %v2280
        %v2286 = vadd.f32 %v2128, %v2282
        %v2289 = vrot.slane %v2160, 1
        %v2290 = vrot.slane %v2161, 1
        %v2291 = vsel %vm487, %v2289, %v2290
        %2292 = vrot.lane.b32.xlu0 %v2291, 1
        %v2293 = vpop.permute.xlu0 %2292
        %2294 = vrot.lane.b32.xlu0 %v2290, 1
        %v2295 = vpop.permute.xlu0 %2294
        %v2298 = vadd.f32 %v2150, %v2293
        %v2299 = vadd.f32 %v2151, %v2295
        %2302 = vrot.lane.b32.xlu0 %v2183, 126
        %v2303 = vpop.permute.xlu0 %2302
        %2304 = vrot.lane.b32.xlu0 %v2184, 126
        %v2305 = vpop.permute.xlu0 %2304
        %v2308 = vadd.f32 %v2170, %v2303
        %v2309 = vadd.f32 %v2171, %v2305
        %v2312 = vrot.slane %v2203, 1
        %v2313 = vrot.slane %v2204, 1
        %v2314 = vsel %vm487, %v2312, %v2313
        %2315 = vrot.lane.b32.xlu0 %v2314, 1
        %v2316 = vpop.permute.xlu0 %2315
        %2317 = vrot.lane.b32.xlu0 %v2313, 1
        %v2318 = vpop.permute.xlu0 %2317
        %v2321 = vadd.f32 %v2193, %v2316
        %v2322 = vadd.f32 %v2194, %v2318
        %v2325 = vrot.slane %v2226, 1
        %v2326 = vrot.slane %v2227, 1
        %v2327 = vsel %vm487, %v2325, %v2326
        %2328 = vrot.lane.b32.xlu0 %v2327, 1
        %v2329 = vpop.permute.xlu0 %2328
        %2330 = vrot.lane.b32.xlu0 %v2326, 1
        %v2331 = vpop.permute.xlu0 %2330
        %v2334 = vadd.f32 %v2216, %v2329
        %v2335 = vadd.f32 %v2217, %v2331
        %v2338 = vrot.slane %v2249, 1
        %v2339 = vrot.slane %v2250, 1
        %v2340 = vsel %vm487, %v2338, %v2339
        %2341 = vrot.lane.b32.xlu0 %v2340, 127
        %v2342 = vpop.permute.xlu0 %2341
        %2343 = vrot.lane.b32.xlu0 %v2339, 127
        %v2344 = vpop.permute.xlu0 %2343
        %v2347 = vadd.f32 %v2236, %v2342
        %v2348 = vadd.f32 %v2237, %v2344
        %v2351 = vrot.slane %v2272, 7
        %v2352 = vrot.slane %v2273, 7
        %v2353 = vsel %vm798, %v2351, %v2352
        %2354 = vrot.lane.b32.xlu0 %v2351, 2
        %v2355 = vpop.permute.xlu0 %2354
        %2356 = vrot.lane.b32.xlu0 %v2353, 2
        %v2357 = vpop.permute.xlu0 %2356
        %v2360 = vadd.f32 %v2262, %v2355
        %v2361 = vadd.f32 %v2263, %v2357
        %v2364 = vrot.slane %v2298, 6
        %v2365 = vrot.slane %v2299, 6
        %v2366 = vsel %vm521, %v2364, %v2365
        %2367 = vrot.lane.b32.xlu0 %v2364, 127
        %v2368 = vpop.permute.xlu0 %2367
        %2369 = vrot.lane.b32.xlu0 %v2366, 127
        %v2370 = vpop.permute.xlu0 %2369
        %v2373 = vadd.f32 %v2285, %v2368
        %v2374 = vadd.f32 %v2286, %v2370
        %v2377 = vrot.slane %v2321, 6
        %v2378 = vrot.slane %v2322, 6
        %v2379 = vsel %vm521, %v2377, %v2378
        %2380 = vrot.lane.b32.xlu0 %v2377, 127
        %v2381 = vpop.permute.xlu0 %2380
        %2382 = vrot.lane.b32.xlu0 %v2379, 127
        %v2383 = vpop.permute.xlu0 %2382
        %v2386 = vadd.f32 %v2308, %v2381
        %v2387 = vadd.f32 %v2309, %v2383
        %v2390 = vrot.slane %v2360, 2
        %v2391 = vrot.slane %v2361, 2
        %v2392 = vsel %vm838, %v2390, %v2391
        %2393 = vrot.lane.b32.xlu0 %v2392, 126
        %v2394 = vpop.permute.xlu0 %2393
        %2395 = vrot.lane.b32.xlu0 %v2391, 126
        %v2396 = vpop.permute.xlu0 %2395
        %v2399 = vadd.f32 %v2347, %v2394
        %v2400 = vadd.f32 %v2348, %v2396
        %2403 = vrot.lane.b32.xlu0 %v2386, 1
        %v2404 = vpop.permute.xlu0 %2403
        %2405 = vrot.lane.b32.xlu0 %v2387, 1
        %v2406 = vpop.permute.xlu0 %2405
        %v2409 = vadd.f32 %v2373, %v2404
        %v2410 = vadd.f32 %v2374, %v2406
        %v2413 = vrot.slane %v2409, 2
        %v2414 = vrot.slane %v2410, 2
        %v2415 = vsel %vm838, %v2413, %v2414
        %2416 = vrot.lane.b32.xlu0 %v2415, 127
        %v2417 = vpop.permute.xlu0 %2416
        %2418 = vrot.lane.b32.xlu0 %v2414, 127
        %v2419 = vpop.permute.xlu0 %2418
        %v2422 = vadd.f32 %v2399, %v2417
        %v2423 = vadd.f32 %v2400, %v2419
        %v2426 = vrot.slane %v2334, 1
        %v2427 = vrot.slane %v2335, 1
        %v2428 = vsel %vm487, %v2426, %v2427
        %2429 = vrot.lane.b32.xlu0 %v2428, 126
        %v2430 = vpop.permute.xlu0 %2429
        %2431 = vrot.lane.b32.xlu0 %v2427, 126
        %v2432 = vpop.permute.xlu0 %2431
        %v2435 = vadd.f32 %v2422, %v2430
        %v2436 = vadd.f32 %v2423, %v2432
        %v2437 = vmax.f32 %v2435, 0.0
        %v2438 = vmax.f32 %v2436, 0.0
        %vm2439 = vcmask 113664
        %2440 = vst.msk [vmem:[%s205] sm:$0xff] %vm2439, %v886
        %vm2441 = vcmask 111616
        %2442 = vst.msk [vmem:[%s205 + $0x8] sm:$0x3f] %vm2441, %v887
        %v2443 = vld [vmem:[#allocation7] sm:$0x1]
        %v2444 = vsel %vm2439, %v886, 0.0
        %v2445 = vsel %vm2441, %v887, 0.0
        %v2446 = vadd.f32 %v2444, %v2445
        %v2447 = vrot.slane %v2446, 4
        %v2448 = vadd.f32 %v2446, %v2447
        %v2449 = vrot.slane %v2448, 2
        %v2450 = vadd.f32 %v2448, %v2449
        %v2451 = vrot.slane %v2450, 1
        %v2452 = vadd.f32 %v2450, %v2451
        %v2453 = vadd.f32 %v2443, %v2452
        %vm2454 = vcmask 106496
        %2455 = vst.msk [vmem:[#allocation7] sm:$0x1] %vm2454, %v2453
        %v2456 = vld [vmem:[#allocation7 + $0x4] sm:$0x1]
        %v2457 = vmul.f32 %v886, %v886
        %v2458 = vmul.f32 %v887, %v887
        %v2459 = vsel %vm2439, %v2457, 0.0
        %v2460 = vsel %vm2441, %v2458, 0.0
        %v2461 = vadd.f32 %v2459, %v2460
        %v2462 = vrot.slane %v2461, 4
        %v2463 = vadd.f32 %v2461, %v2462
        %v2464 = vrot.slane %v2463, 2
        %v2465 = vadd.f32 %v2463, %v2464
        %v2466 = vrot.slane %v2465, 1
        %v2467 = vadd.f32 %v2465, %v2466
        %v2468 = vadd.f32 %v2456, %v2467
        %2469 = vst.msk [vmem:[#allocation7 + $0x4] sm:$0x1] %vm2454, %v2468
        %s2470 = scalar_lea.vmem %s205, 16
        %2471 = vst.msk [vmem:[%s2470] sm:$0xff] %vm2439, %v1403
        %2472 = vst.msk [vmem:[%s2470 + $0x8] sm:$0x3f] %vm2441, %v1404
        %v2473 = vld [vmem:[#allocation7 + $0x1] sm:$0x1]
        %v2474 = vsel %vm2439, %v1403, 0.0
        %v2475 = vsel %vm2441, %v1404, 0.0
        %v2476 = vadd.f32 %v2474, %v2475
        %v2477 = vrot.slane %v2476, 4
        %v2478 = vadd.f32 %v2476, %v2477
        %v2479 = vrot.slane %v2478, 2
        %v2480 = vadd.f32 %v2478, %v2479
        %v2481 = vrot.slane %v2480, 1
        %v2482 = vadd.f32 %v2480, %v2481
        %v2483 = vadd.f32 %v2473, %v2482
        %2484 = vst.msk [vmem:[#allocation7 + $0x1] sm:$0x1] %vm2454, %v2483
        %v2485 = vld [vmem:[#allocation7 + $0x5] sm:$0x1]
        %v2486 = vmul.f32 %v1403, %v1403
        %v2487 = vmul.f32 %v1404, %v1404
        %v2488 = vsel %vm2439, %v2486, 0.0
        %v2489 = vsel %vm2441, %v2487, 0.0
        %v2490 = vadd.f32 %v2488, %v2489
        %v2491 = vrot.slane %v2490, 4
        %v2492 = vadd.f32 %v2490, %v2491
        %v2493 = vrot.slane %v2492, 2
        %v2494 = vadd.f32 %v2492, %v2493
        %v2495 = vrot.slane %v2494, 1
        %v2496 = vadd.f32 %v2494, %v2495
        %v2497 = vadd.f32 %v2485, %v2496
        %2498 = vst.msk [vmem:[#allocation7 + $0x5] sm:$0x1] %vm2454, %v2497
        %s2499 = scalar_lea.vmem %s205, 32
        %2500 = vst.msk [vmem:[%s2499] sm:$0xff] %vm2439, %v1920
        %2501 = vst.msk [vmem:[%s2499 + $0x8] sm:$0x3f] %vm2441, %v1921
        %v2502 = vld [vmem:[#allocation7 + $0x2] sm:$0x1]
        %v2503 = vsel %vm2439, %v1920, 0.0
        %v2504 = vsel %vm2441, %v1921, 0.0
        %v2505 = vadd.f32 %v2503, %v2504
        %v2506 = vrot.slane %v2505, 4
        %v2507 = vadd.f32 %v2505, %v2506
        %v2508 = vrot.slane %v2507, 2
        %v2509 = vadd.f32 %v2507, %v2508
        %v2510 = vrot.slane %v2509, 1
        %v2511 = vadd.f32 %v2509, %v2510
        %v2512 = vadd.f32 %v2502, %v2511
        %2513 = vst.msk [vmem:[#allocation7 + $0x2] sm:$0x1] %vm2454, %v2512
        %v2514 = vld [vmem:[#allocation7 + $0x6] sm:$0x1]
        %v2515 = vmul.f32 %v1920, %v1920
        %v2516 = vmul.f32 %v1921, %v1921
        %v2517 = vsel %vm2439, %v2515, 0.0
        %v2518 = vsel %vm2441, %v2516, 0.0
        %v2519 = vadd.f32 %v2517, %v2518
        %v2520 = vrot.slane %v2519, 4
        %v2521 = vadd.f32 %v2519, %v2520
        %v2522 = vrot.slane %v2521, 2
        %v2523 = vadd.f32 %v2521, %v2522
        %v2524 = vrot.slane %v2523, 1
        %v2525 = vadd.f32 %v2523, %v2524
        %v2526 = vadd.f32 %v2514, %v2525
        %2527 = vst.msk [vmem:[#allocation7 + $0x6] sm:$0x1] %vm2454, %v2526
        %s2528 = scalar_lea.vmem %s205, 48
        %2529 = vst.msk [vmem:[%s2528] sm:$0xff] %vm2439, %v2437
        %2530 = vst.msk [vmem:[%s2528 + $0x8] sm:$0x3f] %vm2441, %v2438
        %v2531 = vld [vmem:[#allocation7 + $0x3] sm:$0x1]
        %v2532 = vsel %vm2439, %v2437, 0.0
        %v2533 = vsel %vm2441, %v2438, 0.0
        %v2534 = vadd.f32 %v2532, %v2533
        %v2535 = vrot.slane %v2534, 4
        %v2536 = vadd.f32 %v2534, %v2535
        %v2537 = vrot.slane %v2536, 2
        %v2538 = vadd.f32 %v2536, %v2537
        %v2539 = vrot.slane %v2538, 1
        %v2540 = vadd.f32 %v2538, %v2539
        %v2541 = vadd.f32 %v2531, %v2540
        %2542 = vst.msk [vmem:[#allocation7 + $0x3] sm:$0x1] %vm2454, %v2541
        %v2543 = vld [vmem:[#allocation7 + $0x7] sm:$0x1]
        %v2544 = vmul.f32 %v2437, %v2437
        %v2545 = vmul.f32 %v2438, %v2438
        %v2546 = vsel %vm2439, %v2544, 0.0
        %v2547 = vsel %vm2441, %v2545, 0.0
        %v2548 = vadd.f32 %v2546, %v2547
        %v2549 = vrot.slane %v2548, 4
        %v2550 = vadd.f32 %v2548, %v2549
        %v2551 = vrot.slane %v2550, 2
        %v2552 = vadd.f32 %v2550, %v2551
        %v2553 = vrot.slane %v2552, 1
        %v2554 = vadd.f32 %v2552, %v2553
        %v2555 = vadd.f32 %v2543, %v2554
        %2556 = vst.msk [vmem:[#allocation7 + $0x7] sm:$0x1] %vm2454, %v2555
        %p2557 = scmp.lt.s32.totalorder %s20, 1
        %s2558 = scalar_select %p2557, %s20, 1
        %s2559 = smul.addr %s2558, 8
        %s2560 = smul.addr %s2559, 8
        %s2561 = scalar_lea.vmem %s2, %s2560
        // Predicated region
        $region41: #{tpu_custom_call.1} parent=27 // pred_check
          %p2562 = pneg %p85
        $region42: #{tpu_custom_call.1} parent=27 // pred_check_branch
          %2564 = sbr.rel (%p2562) target = $region44
        $region43: #{tpu_custom_call.1} parent=27 // pred_region
          _
        $region44: #{tpu_custom_call.1} parent=27 // pred_fallthru
          _
        // Predicated region
        $region45: #{tpu_custom_call.1} parent=27 // pred_check
          %p2565 = pneg %p106
        $region46: #{tpu_custom_call.1} parent=27 // pred_check_branch
          %2567 = sbr.rel (%p2565) target = $region48
        $region47: #{tpu_custom_call.1} parent=27 // pred_region
          %2569 = vsyncadd [#allocation4], 0
          %s2571 = sshll.u32 [#allocation7], 4
          %s2572 = int_to_ptr.vmem [resolvable:$true] %s2571
          %s2573 = sshll.u32 %s3, 4
          %s2574 = int_to_ptr.hbm [resolvable:$true] %s2573
          %2576 = dma.vmem_to_hbm [thread:$0]  %s2572, 128, %s2574, [#allocation4]
        $region48: #{tpu_custom_call.1} parent=27 // pred_fallthru
          _
        // Predicated region
        $region49: #{tpu_custom_call.1} parent=27 // pred_check
          %p2577 = pneg %p106
        $region50: #{tpu_custom_call.1} parent=27 // pred_check_branch
          %2579 = sbr.rel (%p2577) target = $region52
        $region51: #{tpu_custom_call.1} parent=27 // pred_region
          %2581 = dma.done [#allocation4], 128
        $region52: #{tpu_custom_call.1} parent=27 // pred_fallthru
          _
      $region28: #{tpu_custom_call.1} parent=5 // pred_fallthru
        _
      %p2582 = scmp.le.s32.totalorder 2, %s15
      // Predicated region
      $region53: #{tpu_custom_call.1} parent=5 // pred_check
        %p2583 = pneg %p2582
      $region54: #{tpu_custom_call.1} parent=5 // pred_check_branch
        %2585 = sbr.rel (%p2583) target = $region56
      $region55: #{tpu_custom_call.1} parent=5 // pred_region
        %s2586 = ssub.s32 %s15, 2
        // Predicated region
        $region57: #{tpu_custom_call.1} parent=55 // pred_check
          %p2587 = pneg %p91
        $region58: #{tpu_custom_call.1} parent=55 // pred_check_branch
          %2589 = sbr.rel (%p2587) target = $region60
        $region59: #{tpu_custom_call.1} parent=55 // pred_region
          %p2590 = scmp.lt.s32.totalorder %s21, 1
          %s2591 = scalar_select %p2590, %s21, 1
          %s2592 = smul.addr %s2591, 8
          %s2593 = smul.addr %s2592, 8
          %s2594 = scalar_lea.vmem %s2, %s2593
        $region60: #{tpu_custom_call.1} parent=55 // pred_fallthru
          _
      $region56: #{tpu_custom_call.1} parent=5 // pred_fallthru
        _
    $region6: #{tpu_custom_call.1} parent=1 // loop_footer
      %s19 = sadd.s32 1, %s15
    $region7: #{tpu_custom_call.1} parent=1 // loop_footer_branch
      %14 = sbr.rel target = $region3
    $region8: #{tpu_custom_call.1} parent=1 // loop_exit
      _
    %2595 = vsyncpa [#allocation3], 1
    %s2596 = scalar_lea.sflag [#allocation3], 1
    %2597 = vsyncpa %s2596, 1
    %2598 = vsyncpa [#allocation4], 1
    %s2599 = scalar_lea.sflag [#allocation4], 1
    %2600 = vsyncpa %s2599, 1
    %2601 = vsyncpa [#allocation5], 1
    %s2602 = scalar_lea.sflag [#allocation5], 1
    %2603 = vsyncpa %s2602, 1

</llo_original>
